<compile_context>
chip_gen: v5e
topology: v5e:2x2
jax: 0.10.0
libtpu: 0.0.40
codegen_flags: <defaults>
</compile_context>

<pallas_src>
import functools

import jax
import jax.numpy as jnp
from jax.experimental import pallas as pl
from jax.experimental.pallas import tpu as pltpu

HIDDEN = 120       # true hidden size (PyTorch semantics)
HIDDEN_PAD = 128   # lane-aligned padded hidden size used inside the kernel


# ----------------------------------------------------------------------------
# Single fused kernel: 2-layer LSTM (wavefront-interleaved) + MLP head.
#   x_ref   : [T*B, 4]   prices, TIME-major flattened (row = t*B + b), f32
#   aux_ref : [B, 128]   lanes 0..6 weekday one-hot, lane 7 dayofyear, rest 0
#   LSTM weights: [in, 4*HP] with gate order (i, f, g, o), each gate block
#   zero-padded 120 -> 128 columns.  w1s = [wih1; whh1] stacked to [2*HP,4*HP].
#   MLP w1 is stacked to [2*HP, 128]: rows 0..119 hidden, 128..134 weekday,
#   135 dayofyear, everything else zero.
#   out_ref : [B, 1]
# ----------------------------------------------------------------------------
def fused_model_kernel(
    x_ref, aux_ref,
    wih0_ref, b0_ref, whh0_ref,
    w1s_ref, b1l_ref,
    w1_ref, b1_ref, w2_ref, b2_ref, w3_ref, b3_ref, w4_ref, b4_ref,
    out_ref,
    *, batch: int, seq_len: int):
  B, T = batch, seq_len
  HP = whh0_ref.shape[0]   # 128 (padded hidden)
  bf16 = jnp.bfloat16

  def sigmoid1(z):
    # sigmoid(x) = 0.5 * tanh(0.5 * x) + 0.5  -> one EUP push instead of two.
    return 0.5 * jnp.tanh(0.5 * z) + 0.5

  def lstm_cell(z, c):
    # Lane-aligned gate slices (HP = 128): free static views, no lane rotates.
    i_g = sigmoid1(z[:, 0 * HP:1 * HP])
    f_g = sigmoid1(z[:, 1 * HP:2 * HP])
    g_g = jnp.tanh(z[:, 2 * HP:3 * HP])
    o_g = sigmoid1(z[:, 3 * HP:4 * HP])
    c_new = f_g * c + i_g * g_g
    h_new = o_g * jnp.tanh(c_new)
    return h_new, c_new

  # ---- Layer-0 input projection: hoisted OFF the serial recurrence.
  # One [T*B, 4] @ [4, 4*HP] matmul + bias (f32; K=4, one-off, not critical).
  xproj0 = (jnp.dot(x_ref[...], wih0_ref[...],
                    preferred_element_type=jnp.float32)
            + b0_ref[...])                                    # [T*B, 4*HP]

  h0 = jnp.zeros((B, HP), jnp.float32)
  c0 = jnp.zeros((B, HP), jnp.float32)
  h1 = jnp.zeros((B, HP), jnp.float32)
  c1 = jnp.zeros((B, HP), jnp.float32)

  b1l = b1l_ref[...]                                          # [1, 4*HP] f32

  # ---- Wavefront-interleaved recurrence (fully unrolled: T static & small).
  # Layer-1 step t depends only on layer-0 step t and layer-1 step t-1, so the
  # LLO scheduler can overlap layer-1 step t with layer-0 step t+1.
  for t in range(T):
    # Layer 0: contiguous time-major slice + bf16 h @ bf16 W_hh (f32 acc).
    z0 = (xproj0[t * B:(t + 1) * B, :]
          + jnp.dot(h0.astype(bf16), whh0_ref[...],
                    preferred_element_type=jnp.float32))
    h0, c0 = lstm_cell(z0, c0)

    # Layer 1: fused K=256 dot  [h0 | h1] @ [wih1; whh1]
    hcat = jnp.concatenate([h0, h1], axis=1).astype(bf16)      # [B, 2*HP]
    z1 = (jnp.dot(hcat, w1s_ref[...],
                  preferred_element_type=jnp.float32) + b1l)
    h1, c1 = lstm_cell(z1, c1)

  # ---- MLP head.  concat(h[:, :120], weekday, dayofyear) is one lane-packed
  # [B, 256] tile against a stacked [256, 128] weight; padded lanes hit zero
  # weight rows so they are inert.  Only the final [B, 1] touches the output.
  feat = jnp.concatenate([h1, aux_ref[...]], axis=1).astype(bf16)   # [B, 256]
  a1 = jnp.maximum(
      jnp.dot(feat, w1_ref[...], preferred_element_type=jnp.float32)
      + b1_ref[...], 0.0)
  a2 = jnp.maximum(
      jnp.dot(a1, w2_ref[...], preferred_element_type=jnp.float32)
      + b2_ref[...], 0.0)
  a3 = jnp.maximum(
      jnp.dot(a2, w3_ref[...], preferred_element_type=jnp.float32)
      + b3_ref[...], 0.0)
  out_ref[...] = (
      jnp.dot(a3, w4_ref[...], preferred_element_type=jnp.float32)
      + b4_ref[...])


# ----------------------------------------------------------------------------
# Wrapper: one pallas_call, everything resident in VMEM (≈ 0.5 MB of weights).
# ----------------------------------------------------------------------------
@jax.jit
def model_forward(padded, prices, weekday, dayofyear):
  B, T, Din = prices.shape
  # Time-major flatten (tiny transpose outside the kernel) -> every recurrence
  # step reads x_t as one contiguous static slice inside the kernel.
  x_tm = jnp.transpose(prices, (1, 0, 2)).reshape(T * B, Din).astype(jnp.float32)
  # Lane-pack weekday/dayofyear into a [B, 128] tile (lanes 0..6 weekday,
  # lane 7 dayofyear, rest 0) so the MLP head is a single K=256 matmul.
  aux = jnp.pad(
      jnp.concatenate([weekday.astype(jnp.float32),
                       dayofyear.astype(jnp.float32)], axis=1),
      ((0, 0), (0, HIDDEN_PAD - 8)))

  kernel = functools.partial(fused_model_kernel, batch=B, seq_len=T)
  n_in = 15
  return pl.pallas_call(
      kernel,
      out_shape=jax.ShapeDtypeStruct((B, 1), jnp.float32),
      in_specs=[pl.BlockSpec(memory_space=pltpu.MemorySpace.VMEM)] * n_in,
      out_specs=pl.BlockSpec(memory_space=pltpu.MemorySpace.VMEM),
  )(x_tm, aux,
    padded["wih0"], padded["b0"], padded["whh0"],
    padded["w1s"], padded["b1l"],
    padded["w1"], padded["b1"], padded["w2"], padded["b2"],
    padded["w3"], padded["b3"], padded["w4"], padded["b4"])


# ----------------------------------------------------------------------------
# Parameters.  init_params builds true-size (H=120) weights in [in, out]
# layout (transposed vs PyTorch); pad_params zero-pads each gate block and the
# hidden dimension to 128, stacks layer-1 / MLP-head weights, and stores the
# large matrices in bfloat16.  Mathematically identical to the unpadded model
# (up to bf16 matmul rounding).
# ----------------------------------------------------------------------------
def init_params(key):
  H = HIDDEN

  def uni(k, shape, fan_in):
    bound = 1.0 / jnp.sqrt(jnp.float32(fan_in))
    return jax.random.uniform(k, shape, jnp.float32, -bound, bound)

  ks = jax.random.split(key, 14)
  return {
      # LSTM layer 0 (input 4);  b* = bias_ih + bias_hh combined
      "wih0": uni(ks[0], (4, 4 * H), H),
      "whh0": uni(ks[1], (H, 4 * H), H),
      "b0":   uni(ks[2], (1, 4 * H), H),
      # LSTM layer 1 (input H)
      "wih1": uni(ks[3], (H, 4 * H), H),
      "whh1": uni(ks[4], (H, 4 * H), H),
      "b1l":  uni(ks[5], (1, 4 * H), H),
      # MLP: Linear(128,128) / (128,32) / (32,8) / (8,1)
      "w1":   uni(ks[6], (H + 7 + 1, 128), H + 8),
      "b1":   uni(ks[7], (1, 128), H + 8),
      "w2":   uni(ks[8], (128, 32), 128),
      "b2":   uni(ks[9], (1, 32), 128),
      "w3":   uni(ks[10], (32, 8), 32),
      "b3":   uni(ks[11], (1, 8), 32),
      "w4":   uni(ks[12], (8, 1), 8),
      "b4":   uni(ks[13], (1, 1), 8),
  }


def pad_params(p):
  H, HP = HIDDEN, HIDDEN_PAD
  bf16 = jnp.bfloat16

  def pad_gate_cols(w):
    # [in, 4H] -> [in, 4HP]: zero-pad each (i,f,g,o) gate block to 128 lanes.
    blocks = [w[:, g * H:(g + 1) * H] for g in range(4)]
    return jnp.concatenate(
        [jnp.pad(blk, ((0, 0), (0, HP - H))) for blk in blocks], axis=1)

  def pad_rows(w, rows):
    return jnp.pad(w, ((0, rows - w.shape[0]), (0, 0)))

  # Layer-1 stacked weight: rows 0..127 multiply h0 (wih1), 128..255 multiply
  # h1 (whh1); padded rows are zero so padded h lanes are inert.
  wih1p = pad_gate_cols(pad_rows(p["wih1"], HP))   # [128, 512]
  whh1p = pad_gate_cols(pad_rows(p["whh1"], HP))   # [128, 512]
  w1s = jnp.concatenate([wih1p, whh1p], axis=0)    # [256, 512]

  # MLP head stacked weight: rows 0..127 multiply h1 (hidden rows, zero pad),
  # rows 128..255 multiply the aux tile (weekday rows 128..134, doy row 135).
  w1 = p["w1"]                                     # [128, 128]
  w1_hid = pad_rows(w1[:H], HP)                    # [128, 128]
  w1_aux = pad_rows(w1[H:H + 8], HP)               # [128, 128]
  w1_stacked = jnp.concatenate([w1_hid, w1_aux], axis=0)   # [256, 128]

  return {
      "wih0": pad_gate_cols(p["wih0"]),                       # f32 (one-off)
      "b0":   pad_gate_cols(p["b0"]),
      "whh0": pad_gate_cols(pad_rows(p["whh0"], HP)).astype(bf16),
      "w1s":  w1s.astype(bf16),
      "b1l":  pad_gate_cols(p["b1l"]),
      "w1":   w1_stacked.astype(bf16),
      "b1":   p["b1"],
      "w2":   p["w2"], "b2": p["b2"],
      "w3":   p["w3"], "b3": p["b3"],
      "w4":   p["w4"], "b4": p["b4"],
  }


# ----------------------------------------------------------------------------
# Pure-JAX reference (unpadded, f32, H=120) for a correctness check.
# ----------------------------------------------------------------------------
def reference_forward(p, prices, weekday, dayofyear):
  H = HIDDEN
  B = prices.shape[0]
  hi = jax.lax.Precision.HIGHEST

  def lstm_layer(x_tm, wih, whh, b):
    def step(carry, x_t):
      h, c = carry
      z = (jnp.dot(x_t, wih, precision=hi)
           + jnp.dot(h, whh, precision=hi) + b)
      i = jax.nn.sigmoid(z[:, :H])
      f = jax.nn.sigmoid(z[:, H:2 * H])
      g = jnp.tanh(z[:, 2 * H:3 * H])
      o = jax.nn.sigmoid(z[:, 3 * H:4 * H])
      c = f * c + i * g
      h = o * jnp.tanh(c)
      return (h, c), h
    init = (jnp.zeros((B, H), jnp.float32), jnp.zeros((B, H), jnp.float32))
    _, ys = jax.lax.scan(step, init, x_tm)
    return ys

  x_tm = jnp.transpose(prices, (1, 0, 2)).astype(jnp.float32)
  seq0 = lstm_layer(x_tm, p["wih0"], p["whh0"], p["b0"])
  seq1 = lstm_layer(seq0, p["wih1"], p["whh1"], p["b1l"])
  feats = jnp.concatenate([seq1[-1], weekday, dayofyear], axis=1)
  h1 = jnp.maximum(jnp.dot(feats, p["w1"], precision=hi) + p["b1"], 0.0)
  h2 = jnp.maximum(jnp.dot(h1, p["w2"], precision=hi) + p["b2"], 0.0)
  h3 = jnp.maximum(jnp.dot(h2, p["w3"], precision=hi) + p["b3"], 0.0)
  return jnp.dot(h3, p["w4"], precision=hi) + p["b4"]


if __name__ == "__main__":
  key = jax.random.PRNGKey(0)
  k_param, k_p, k_w, k_d = jax.random.split(key, 4)

  B, T = 2, 8
  params = init_params(k_param)
  padded = pad_params(params)

  prices = jax.random.normal(k_p, (B, T, 4), jnp.float32)
  weekday = jax.nn.one_hot(
      jax.random.randint(k_w, (B,), 0, 7), 7, dtype=jnp.float32)   # [B, 7]
  dayofyear = jax.random.uniform(k_d, (B, 1), jnp.float32)         # [B, 1]

  out = model_forward(padded, prices, weekday, dayofyear)
  jax.block_until_ready(out)
  assert out.shape == (B, 1), out.shape

  ref = reference_forward(params, prices, weekday, dayofyear)
  # bf16 matmul inputs (f32 accumulation) -> slightly looser tolerance vs the
  # Precision.HIGHEST f32 reference.
  assert jnp.allclose(out, ref, atol=4e-2, rtol=4e-2), (out, ref)

  print("KERNEL_OK")
</pallas_src>

<mosaic_0001>
module attributes {stable_mosaic.version = 11 : i64} {
  func.func @fused_model_kernel(%arg0: memref<16x4xf32, #tpu.memory_space<vmem>>, %arg1: memref<2x128xf32, #tpu.memory_space<vmem>>, %arg2: memref<4x512xf32, #tpu.memory_space<vmem>>, %arg3: memref<1x512xf32, #tpu.memory_space<vmem>>, %arg4: memref<128x512xbf16, #tpu.memory_space<vmem>>, %arg5: memref<256x512xbf16, #tpu.memory_space<vmem>>, %arg6: memref<1x512xf32, #tpu.memory_space<vmem>>, %arg7: memref<256x128xbf16, #tpu.memory_space<vmem>>, %arg8: memref<1x128xf32, #tpu.memory_space<vmem>>, %arg9: memref<128x32xf32, #tpu.memory_space<vmem>>, %arg10: memref<1x32xf32, #tpu.memory_space<vmem>>, %arg11: memref<32x8xf32, #tpu.memory_space<vmem>>, %arg12: memref<1x8xf32, #tpu.memory_space<vmem>>, %arg13: memref<8x1xf32, #tpu.memory_space<vmem>>, %arg14: memref<1x1xf32, #tpu.memory_space<vmem>>, %arg15: memref<2x1xf32, #tpu.memory_space<vmem>>) attributes {dimension_semantics = [], scalar_prefetch = 0 : i64, scratch_operands = 0 : i64, tpu.core_type = #tpu.core_type<tc>} {
    %c0 = arith.constant 0 : index
    %c0_0 = arith.constant 0 : index
    %0 = vector.load %arg0[%c0, %c0_0] : memref<16x4xf32, #tpu.memory_space<vmem>>, vector<16x4xf32>
    %c0_1 = arith.constant 0 : index
    %c0_2 = arith.constant 0 : index
    %1 = vector.load %arg2[%c0_1, %c0_2] : memref<4x512xf32, #tpu.memory_space<vmem>>, vector<4x512xf32>
    %cst = arith.constant dense<0.000000e+00> : vector<16x512xf32>
    %2 = tpu.matmul %0, %1, %cst {dimension_numbers = #tpu.dot_dimension_numbers<[1], [0], [0], [1], [0, 0, 1, 1], [], []>} : vector<16x4xf32>, vector<4x512xf32>, vector<16x512xf32> -> vector<16x512xf32>
    %c0_3 = arith.constant 0 : index
    %c0_4 = arith.constant 0 : index
    %3 = vector.load %arg3[%c0_3, %c0_4] : memref<1x512xf32, #tpu.memory_space<vmem>>, vector<1x512xf32>
    %4 = vector.broadcast %3 : vector<1x512xf32> to vector<16x512xf32>
    %5 = arith.addf %2, %4 : vector<16x512xf32>
    %cst_5 = arith.constant 0.000000e+00 : f32
    %6 = vector.broadcast %cst_5 : f32 to vector<2x128xf32>
    %cst_6 = arith.constant 0.000000e+00 : f32
    %7 = vector.broadcast %cst_6 : f32 to vector<2x128xf32>
    %cst_7 = arith.constant 0.000000e+00 : f32
    %8 = vector.broadcast %cst_7 : f32 to vector<2x128xf32>
    %cst_8 = arith.constant 0.000000e+00 : f32
    %9 = vector.broadcast %cst_8 : f32 to vector<2x128xf32>
    %c0_9 = arith.constant 0 : index
    %c0_10 = arith.constant 0 : index
    %10 = vector.load %arg6[%c0_9, %c0_10] : memref<1x512xf32, #tpu.memory_space<vmem>>, vector<1x512xf32>
    %11 = vector.extract_strided_slice %5 {offsets = [0, 0], sizes = [2, 512], strides = [1, 1]} : vector<16x512xf32> to vector<2x512xf32>
    %12 = arith.truncf %6 : vector<2x128xf32> to vector<2x128xbf16>
    %c0_11 = arith.constant 0 : index
    %c0_12 = arith.constant 0 : index
    %13 = vector.load %arg4[%c0_11, %c0_12] : memref<128x512xbf16, #tpu.memory_space<vmem>>, vector<128x512xbf16>
    %cst_13 = arith.constant dense<0.000000e+00> : vector<2x512xf32>
    %14 = tpu.matmul %12, %13, %cst_13 {dimension_numbers = #tpu.dot_dimension_numbers<[1], [0], [0], [1], [0, 0, 1, 1], [], []>} : vector<2x128xbf16>, vector<128x512xbf16>, vector<2x512xf32> -> vector<2x512xf32>
    %15 = arith.addf %11, %14 : vector<2x512xf32>
    %16 = vector.extract_strided_slice %15 {offsets = [0, 0], sizes = [2, 128], strides = [1, 1]} : vector<2x512xf32> to vector<2x128xf32>
    %cst_14 = arith.constant 5.000000e-01 : f32
    %17 = vector.broadcast %cst_14 : f32 to vector<2x128xf32>
    %18 = arith.mulf %17, %16 : vector<2x128xf32>
    %19 = math.tanh %18 : vector<2x128xf32>
    %cst_15 = arith.constant 5.000000e-01 : f32
    %20 = vector.broadcast %cst_15 : f32 to vector<2x128xf32>
    %21 = arith.mulf %20, %19 : vector<2x128xf32>
    %cst_16 = arith.constant 5.000000e-01 : f32
    %22 = vector.broadcast %cst_16 : f32 to vector<2x128xf32>
    %23 = arith.addf %21, %22 : vector<2x128xf32>
    %24 = vector.extract_strided_slice %15 {offsets = [0, 128], sizes = [2, 128], strides = [1, 1]} : vector<2x512xf32> to vector<2x128xf32>
    %cst_17 = arith.constant 5.000000e-01 : f32
    %25 = vector.broadcast %cst_17 : f32 to vector<2x128xf32>
    %26 = arith.mulf %25, %24 : vector<2x128xf32>
    %27 = math.tanh %26 : vector<2x128xf32>
    %cst_18 = arith.constant 5.000000e-01 : f32
    %28 = vector.broadcast %cst_18 : f32 to vector<2x128xf32>
    %29 = arith.mulf %28, %27 : vector<2x128xf32>
    %cst_19 = arith.constant 5.000000e-01 : f32
    %30 = vector.broadcast %cst_19 : f32 to vector<2x128xf32>
    %31 = arith.addf %29, %30 : vector<2x128xf32>
    %32 = vector.extract_strided_slice %15 {offsets = [0, 256], sizes = [2, 128], strides = [1, 1]} : vector<2x512xf32> to vector<2x128xf32>
    %33 = math.tanh %32 : vector<2x128xf32>
    %34 = vector.extract_strided_slice %15 {offsets = [0, 384], sizes = [2, 128], strides = [1, 1]} : vector<2x512xf32> to vector<2x128xf32>
    %cst_20 = arith.constant 5.000000e-01 : f32
    %35 = vector.broadcast %cst_20 : f32 to vector<2x128xf32>
    %36 = arith.mulf %35, %34 : vector<2x128xf32>
    %37 = math.tanh %36 : vector<2x128xf32>
    %cst_21 = arith.constant 5.000000e-01 : f32
    %38 = vector.broadcast %cst_21 : f32 to vector<2x128xf32>
    %39 = arith.mulf %38, %37 : vector<2x128xf32>
    %cst_22 = arith.constant 5.000000e-01 : f32
    %40 = vector.broadcast %cst_22 : f32 to vector<2x128xf32>
    %41 = arith.addf %39, %40 : vector<2x128xf32>
    %42 = arith.mulf %31, %7 : vector<2x128xf32>
    %43 = arith.mulf %23, %33 : vector<2x128xf32>
    %44 = arith.addf %42, %43 : vector<2x128xf32>
    %45 = math.tanh %44 : vector<2x128xf32>
    %46 = arith.mulf %41, %45 : vector<2x128xf32>
    %47 = tpu.concatenate %46, %8 in 1 : vector<2x128xf32>, vector<2x128xf32> -> vector<2x256xf32>
    %48 = arith.truncf %47 : vector<2x256xf32> to vector<2x256xbf16>
    %c0_23 = arith.constant 0 : index
    %c0_24 = arith.constant 0 : index
    %49 = vector.load %arg5[%c0_23, %c0_24] : memref<256x512xbf16, #tpu.memory_space<vmem>>, vector<256x512xbf16>
    %cst_25 = arith.constant dense<0.000000e+00> : vector<2x512xf32>
    %50 = tpu.matmul %48, %49, %cst_25 {dimension_numbers = #tpu.dot_dimension_numbers<[1], [0], [0], [1], [0, 0, 1, 1], [], []>} : vector<2x256xbf16>, vector<256x512xbf16>, vector<2x512xf32> -> vector<2x512xf32>
    %51 = vector.broadcast %10 : vector<1x512xf32> to vector<2x512xf32>
    %52 = arith.addf %50, %51 : vector<2x512xf32>
    %53 = vector.extract_strided_slice %52 {offsets = [0, 0], sizes = [2, 128], strides = [1, 1]} : vector<2x512xf32> to vector<2x128xf32>
    %cst_26 = arith.constant 5.000000e-01 : f32
    %54 = vector.broadcast %cst_26 : f32 to vector<2x128xf32>
    %55 = arith.mulf %54, %53 : vector<2x128xf32>
    %56 = math.tanh %55 : vector<2x128xf32>
    %cst_27 = arith.constant 5.000000e-01 : f32
    %57 = vector.broadcast %cst_27 : f32 to vector<2x128xf32>
    %58 = arith.mulf %57, %56 : vector<2x128xf32>
    %cst_28 = arith.constant 5.000000e-01 : f32
    %59 = vector.broadcast %cst_28 : f32 to vector<2x128xf32>
    %60 = arith.addf %58, %59 : vector<2x128xf32>
    %61 = vector.extract_strided_slice %52 {offsets = [0, 128], sizes = [2, 128], strides = [1, 1]} : vector<2x512xf32> to vector<2x128xf32>
    %cst_29 = arith.constant 5.000000e-01 : f32
    %62 = vector.broadcast %cst_29 : f32 to vector<2x128xf32>
    %63 = arith.mulf %62, %61 : vector<2x128xf32>
    %64 = math.tanh %63 : vector<2x128xf32>
    %cst_30 = arith.constant 5.000000e-01 : f32
    %65 = vector.broadcast %cst_30 : f32 to vector<2x128xf32>
    %66 = arith.mulf %65, %64 : vector<2x128xf32>
    %cst_31 = arith.constant 5.000000e-01 : f32
    %67 = vector.broadcast %cst_31 : f32 to vector<2x128xf32>
    %68 = arith.addf %66, %67 : vector<2x128xf32>
    %69 = vector.extract_strided_slice %52 {offsets = [0, 256], sizes = [2, 128], strides = [1, 1]} : vector<2x512xf32> to vector<2x128xf32>
    %70 = math.tanh %69 : vector<2x128xf32>
    %71 = vector.extract_strided_slice %52 {offsets = [0, 384], sizes = [2, 128], strides = [1, 1]} : vector<2x512xf32> to vector<2x128xf32>
    %cst_32 = arith.constant 5.000000e-01 : f32
    %72 = vector.broadcast %cst_32 : f32 to vector<2x128xf32>
    %73 = arith.mulf %72, %71 : vector<2x128xf32>
    %74 = math.tanh %73 : vector<2x128xf32>
    %cst_33 = arith.constant 5.000000e-01 : f32
    %75 = vector.broadcast %cst_33 : f32 to vector<2x128xf32>
    %76 = arith.mulf %75, %74 : vector<2x128xf32>
    %cst_34 = arith.constant 5.000000e-01 : f32
    %77 = vector.broadcast %cst_34 : f32 to vector<2x128xf32>
    %78 = arith.addf %76, %77 : vector<2x128xf32>
    %79 = arith.mulf %68, %9 : vector<2x128xf32>
    %80 = arith.mulf %60, %70 : vector<2x128xf32>
    %81 = arith.addf %79, %80 : vector<2x128xf32>
    %82 = math.tanh %81 : vector<2x128xf32>
    %83 = arith.mulf %78, %82 : vector<2x128xf32>
    %84 = vector.extract_strided_slice %5 {offsets = [2, 0], sizes = [2, 512], strides = [1, 1]} : vector<16x512xf32> to vector<2x512xf32>
    %85 = arith.truncf %46 : vector<2x128xf32> to vector<2x128xbf16>
    %c0_35 = arith.constant 0 : index
    %c0_36 = arith.constant 0 : index
    %86 = vector.load %arg4[%c0_35, %c0_36] : memref<128x512xbf16, #tpu.memory_space<vmem>>, vector<128x512xbf16>
    %cst_37 = arith.constant dense<0.000000e+00> : vector<2x512xf32>
    %87 = tpu.matmul %85, %86, %cst_37 {dimension_numbers = #tpu.dot_dimension_numbers<[1], [0], [0], [1], [0, 0, 1, 1], [], []>} : vector<2x128xbf16>, vector<128x512xbf16>, vector<2x512xf32> -> vector<2x512xf32>
    %88 = arith.addf %84, %87 : vector<2x512xf32>
    %89 = vector.extract_strided_slice %88 {offsets = [0, 0], sizes = [2, 128], strides = [1, 1]} : vector<2x512xf32> to vector<2x128xf32>
    %cst_38 = arith.constant 5.000000e-01 : f32
    %90 = vector.broadcast %cst_38 : f32 to vector<2x128xf32>
    %91 = arith.mulf %90, %89 : vector<2x128xf32>
    %92 = math.tanh %91 : vector<2x128xf32>
    %cst_39 = arith.constant 5.000000e-01 : f32
    %93 = vector.broadcast %cst_39 : f32 to vector<2x128xf32>
    %94 = arith.mulf %93, %92 : vector<2x128xf32>
    %cst_40 = arith.constant 5.000000e-01 : f32
    %95 = vector.broadcast %cst_40 : f32 to vector<2x128xf32>
    %96 = arith.addf %94, %95 : vector<2x128xf32>
    %97 = vector.extract_strided_slice %88 {offsets = [0, 128], sizes = [2, 128], strides = [1, 1]} : vector<2x512xf32> to vector<2x128xf32>
    %cst_41 = arith.constant 5.000000e-01 : f32
    %98 = vector.broadcast %cst_41 : f32 to vector<2x128xf32>
    %99 = arith.mulf %98, %97 : vector<2x128xf32>
    %100 = math.tanh %99 : vector<2x128xf32>
    %cst_42 = arith.constant 5.000000e-01 : f32
    %101 = vector.broadcast %cst_42 : f32 to vector<2x128xf32>
    %102 = arith.mulf %101, %100 : vector<2x128xf32>
    %cst_43 = arith.constant 5.000000e-01 : f32
    %103 = vector.broadcast %cst_43 : f32 to vector<2x128xf32>
    %104 = arith.addf %102, %103 : vector<2x128xf32>
    %105 = vector.extract_strided_slice %88 {offsets = [0, 256], sizes = [2, 128], strides = [1, 1]} : vector<2x512xf32> to vector<2x128xf32>
    %106 = math.tanh %105 : vector<2x128xf32>
    %107 = vector.extract_strided_slice %88 {offsets = [0, 384], sizes = [2, 128], strides = [1, 1]} : vector<2x512xf32> to vector<2x128xf32>
    %cst_44 = arith.constant 5.000000e-01 : f32
    %108 = vector.broadcast %cst_44 : f32 to vector<2x128xf32>
    %109 = arith.mulf %108, %107 : vector<2x128xf32>
    %110 = math.tanh %109 : vector<2x128xf32>
    %cst_45 = arith.constant 5.000000e-01 : f32
    %111 = vector.broadcast %cst_45 : f32 to vector<2x128xf32>
    %112 = arith.mulf %111, %110 : vector<2x128xf32>
    %cst_46 = arith.constant 5.000000e-01 : f32
    %113 = vector.broadcast %cst_46 : f32 to vector<2x128xf32>
    %114 = arith.addf %112, %113 : vector<2x128xf32>
    %115 = arith.mulf %104, %44 : vector<2x128xf32>
    %116 = arith.mulf %96, %106 : vector<2x128xf32>
    %117 = arith.addf %115, %116 : vector<2x128xf32>
    %118 = math.tanh %117 : vector<2x128xf32>
    %119 = arith.mulf %114, %118 : vector<2x128xf32>
    %120 = tpu.concatenate %119, %83 in 1 : vector<2x128xf32>, vector<2x128xf32> -> vector<2x256xf32>
    %121 = arith.truncf %120 : vector<2x256xf32> to vector<2x256xbf16>
    %c0_47 = arith.constant 0 : index
    %c0_48 = arith.constant 0 : index
    %122 = vector.load %arg5[%c0_47, %c0_48] : memref<256x512xbf16, #tpu.memory_space<vmem>>, vector<256x512xbf16>
    %cst_49 = arith.constant dense<0.000000e+00> : vector<2x512xf32>
    %123 = tpu.matmul %121, %122, %cst_49 {dimension_numbers = #tpu.dot_dimension_numbers<[1], [0], [0], [1], [0, 0, 1, 1], [], []>} : vector<2x256xbf16>, vector<256x512xbf16>, vector<2x512xf32> -> vector<2x512xf32>
    %124 = vector.broadcast %10 : vector<1x512xf32> to vector<2x512xf32>
    %125 = arith.addf %123, %124 : vector<2x512xf32>
    %126 = vector.extract_strided_slice %125 {offsets = [0, 0], sizes = [2, 128], strides = [1, 1]} : vector<2x512xf32> to vector<2x128xf32>
    %cst_50 = arith.constant 5.000000e-01 : f32
    %127 = vector.broadcast %cst_50 : f32 to vector<2x128xf32>
    %128 = arith.mulf %127, %126 : vector<2x128xf32>
    %129 = math.tanh %128 : vector<2x128xf32>
    %cst_51 = arith.constant 5.000000e-01 : f32
    %130 = vector.broadcast %cst_51 : f32 to vector<2x128xf32>
    %131 = arith.mulf %130, %129 : vector<2x128xf32>
    %cst_52 = arith.constant 5.000000e-01 : f32
    %132 = vector.broadcast %cst_52 : f32 to vector<2x128xf32>
    %133 = arith.addf %131, %132 : vector<2x128xf32>
    %134 = vector.extract_strided_slice %125 {offsets = [0, 128], sizes = [2, 128], strides = [1, 1]} : vector<2x512xf32> to vector<2x128xf32>
    %cst_53 = arith.constant 5.000000e-01 : f32
    %135 = vector.broadcast %cst_53 : f32 to vector<2x128xf32>
    %136 = arith.mulf %135, %134 : vector<2x128xf32>
    %137 = math.tanh %136 : vector<2x128xf32>
    %cst_54 = arith.constant 5.000000e-01 : f32
    %138 = vector.broadcast %cst_54 : f32 to vector<2x128xf32>
    %139 = arith.mulf %138, %137 : vector<2x128xf32>
    %cst_55 = arith.constant 5.000000e-01 : f32
    %140 = vector.broadcast %cst_55 : f32 to vector<2x128xf32>
    %141 = arith.addf %139, %140 : vector<2x128xf32>
    %142 = vector.extract_strided_slice %125 {offsets = [0, 256], sizes = [2, 128], strides = [1, 1]} : vector<2x512xf32> to vector<2x128xf32>
    %143 = math.tanh %142 : vector<2x128xf32>
    %144 = vector.extract_strided_slice %125 {offsets = [0, 384], sizes = [2, 128], strides = [1, 1]} : vector<2x512xf32> to vector<2x128xf32>
    %cst_56 = arith.constant 5.000000e-01 : f32
    %145 = vector.broadcast %cst_56 : f32 to vector<2x128xf32>
    %146 = arith.mulf %145, %144 : vector<2x128xf32>
    %147 = math.tanh %146 : vector<2x128xf32>
    %cst_57 = arith.constant 5.000000e-01 : f32
    %148 = vector.broadcast %cst_57 : f32 to vector<2x128xf32>
    %149 = arith.mulf %148, %147 : vector<2x128xf32>
    %cst_58 = arith.constant 5.000000e-01 : f32
    %150 = vector.broadcast %cst_58 : f32 to vector<2x128xf32>
    %151 = arith.addf %149, %150 : vector<2x128xf32>
    %152 = arith.mulf %141, %81 : vector<2x128xf32>
    %153 = arith.mulf %133, %143 : vector<2x128xf32>
    %154 = arith.addf %152, %153 : vector<2x128xf32>
    %155 = math.tanh %154 : vector<2x128xf32>
    %156 = arith.mulf %151, %155 : vector<2x128xf32>
    %157 = vector.extract_strided_slice %5 {offsets = [4, 0], sizes = [2, 512], strides = [1, 1]} : vector<16x512xf32> to vector<2x512xf32>
    %158 = arith.truncf %119 : vector<2x128xf32> to vector<2x128xbf16>
    %c0_59 = arith.constant 0 : index
    %c0_60 = arith.constant 0 : index
    %159 = vector.load %arg4[%c0_59, %c0_60] : memref<128x512xbf16, #tpu.memory_space<vmem>>, vector<128x512xbf16>
    %cst_61 = arith.constant dense<0.000000e+00> : vector<2x512xf32>
    %160 = tpu.matmul %158, %159, %cst_61 {dimension_numbers = #tpu.dot_dimension_numbers<[1], [0], [0], [1], [0, 0, 1, 1], [], []>} : vector<2x128xbf16>, vector<128x512xbf16>, vector<2x512xf32> -> vector<2x512xf32>
    %161 = arith.addf %157, %160 : vector<2x512xf32>
    %162 = vector.extract_strided_slice %161 {offsets = [0, 0], sizes = [2, 128], strides = [1, 1]} : vector<2x512xf32> to vector<2x128xf32>
    %cst_62 = arith.constant 5.000000e-01 : f32
    %163 = vector.broadcast %cst_62 : f32 to vector<2x128xf32>
    %164 = arith.mulf %163, %162 : vector<2x128xf32>
    %165 = math.tanh %164 : vector<2x128xf32>
    %cst_63 = arith.constant 5.000000e-01 : f32
    %166 = vector.broadcast %cst_63 : f32 to vector<2x128xf32>
    %167 = arith.mulf %166, %165 : vector<2x128xf32>
    %cst_64 = arith.constant 5.000000e-01 : f32
    %168 = vector.broadcast %cst_64 : f32 to vector<2x128xf32>
    %169 = arith.addf %167, %168 : vector<2x128xf32>
    %170 = vector.extract_strided_slice %161 {offsets = [0, 128], sizes = [2, 128], strides = [1, 1]} : vector<2x512xf32> to vector<2x128xf32>
    %cst_65 = arith.constant 5.000000e-01 : f32
    %171 = vector.broadcast %cst_65 : f32 to vector<2x128xf32>
    %172 = arith.mulf %171, %170 : vector<2x128xf32>
    %173 = math.tanh %172 : vector<2x128xf32>
    %cst_66 = arith.constant 5.000000e-01 : f32
    %174 = vector.broadcast %cst_66 : f32 to vector<2x128xf32>
    %175 = arith.mulf %174, %173 : vector<2x128xf32>
    %cst_67 = arith.constant 5.000000e-01 : f32
    %176 = vector.broadcast %cst_67 : f32 to vector<2x128xf32>
    %177 = arith.addf %175, %176 : vector<2x128xf32>
    %178 = vector.extract_strided_slice %161 {offsets = [0, 256], sizes = [2, 128], strides = [1, 1]} : vector<2x512xf32> to vector<2x128xf32>
    %179 = math.tanh %178 : vector<2x128xf32>
    %180 = vector.extract_strided_slice %161 {offsets = [0, 384], sizes = [2, 128], strides = [1, 1]} : vector<2x512xf32> to vector<2x128xf32>
    %cst_68 = arith.constant 5.000000e-01 : f32
    %181 = vector.broadcast %cst_68 : f32 to vector<2x128xf32>
    %182 = arith.mulf %181, %180 : vector<2x128xf32>
    %183 = math.tanh %182 : vector<2x128xf32>
    %cst_69 = arith.constant 5.000000e-01 : f32
    %184 = vector.broadcast %cst_69 : f32 to vector<2x128xf32>
    %185 = arith.mulf %184, %183 : vector<2x128xf32>
    %cst_70 = arith.constant 5.000000e-01 : f32
    %186 = vector.broadcast %cst_70 : f32 to vector<2x128xf32>
    %187 = arith.addf %185, %186 : vector<2x128xf32>
    %188 = arith.mulf %177, %117 : vector<2x128xf32>
    %189 = arith.mulf %169, %179 : vector<2x128xf32>
    %190 = arith.addf %188, %189 : vector<2x128xf32>
    %191 = math.tanh %190 : vector<2x128xf32>
    %192 = arith.mulf %187, %191 : vector<2x128xf32>
    %193 = tpu.concatenate %192, %156 in 1 : vector<2x128xf32>, vector<2x128xf32> -> vector<2x256xf32>
    %194 = arith.truncf %193 : vector<2x256xf32> to vector<2x256xbf16>
    %c0_71 = arith.constant 0 : index
    %c0_72 = arith.constant 0 : index
    %195 = vector.load %arg5[%c0_71, %c0_72] : memref<256x512xbf16, #tpu.memory_space<vmem>>, vector<256x512xbf16>
    %cst_73 = arith.constant dense<0.000000e+00> : vector<2x512xf32>
    %196 = tpu.matmul %194, %195, %cst_73 {dimension_numbers = #tpu.dot_dimension_numbers<[1], [0], [0], [1], [0, 0, 1, 1], [], []>} : vector<2x256xbf16>, vector<256x512xbf16>, vector<2x512xf32> -> vector<2x512xf32>
    %197 = vector.broadcast %10 : vector<1x512xf32> to vector<2x512xf32>
    %198 = arith.addf %196, %197 : vector<2x512xf32>
    %199 = vector.extract_strided_slice %198 {offsets = [0, 0], sizes = [2, 128], strides = [1, 1]} : vector<2x512xf32> to vector<2x128xf32>
    %cst_74 = arith.constant 5.000000e-01 : f32
    %200 = vector.broadcast %cst_74 : f32 to vector<2x128xf32>
    %201 = arith.mulf %200, %199 : vector<2x128xf32>
    %202 = math.tanh %201 : vector<2x128xf32>
    %cst_75 = arith.constant 5.000000e-01 : f32
    %203 = vector.broadcast %cst_75 : f32 to vector<2x128xf32>
    %204 = arith.mulf %203, %202 : vector<2x128xf32>
    %cst_76 = arith.constant 5.000000e-01 : f32
    %205 = vector.broadcast %cst_76 : f32 to vector<2x128xf32>
    %206 = arith.addf %204, %205 : vector<2x128xf32>
    %207 = vector.extract_strided_slice %198 {offsets = [0, 128], sizes = [2, 128], strides = [1, 1]} : vector<2x512xf32> to vector<2x128xf32>
    %cst_77 = arith.constant 5.000000e-01 : f32
    %208 = vector.broadcast %cst_77 : f32 to vector<2x128xf32>
    %209 = arith.mulf %208, %207 : vector<2x128xf32>
    %210 = math.tanh %209 : vector<2x128xf32>
    %cst_78 = arith.constant 5.000000e-01 : f32
    %211 = vector.broadcast %cst_78 : f32 to vector<2x128xf32>
    %212 = arith.mulf %211, %210 : vector<2x128xf32>
    %cst_79 = arith.constant 5.000000e-01 : f32
    %213 = vector.broadcast %cst_79 : f32 to vector<2x128xf32>
    %214 = arith.addf %212, %213 : vector<2x128xf32>
    %215 = vector.extract_strided_slice %198 {offsets = [0, 256], sizes = [2, 128], strides = [1, 1]} : vector<2x512xf32> to vector<2x128xf32>
    %216 = math.tanh %215 : vector<2x128xf32>
    %217 = vector.extract_strided_slice %198 {offsets = [0, 384], sizes = [2, 128], strides = [1, 1]} : vector<2x512xf32> to vector<2x128xf32>
    %cst_80 = arith.constant 5.000000e-01 : f32
    %218 = vector.broadcast %cst_80 : f32 to vector<2x128xf32>
    %219 = arith.mulf %218, %217 : vector<2x128xf32>
    %220 = math.tanh %219 : vector<2x128xf32>
    %cst_81 = arith.constant 5.000000e-01 : f32
    %221 = vector.broadcast %cst_81 : f32 to vector<2x128xf32>
    %222 = arith.mulf %221, %220 : vector<2x128xf32>
    %cst_82 = arith.constant 5.000000e-01 : f32
    %223 = vector.broadcast %cst_82 : f32 to vector<2x128xf32>
    %224 = arith.addf %222, %223 : vector<2x128xf32>
    %225 = arith.mulf %214, %154 : vector<2x128xf32>
    %226 = arith.mulf %206, %216 : vector<2x128xf32>
    %227 = arith.addf %225, %226 : vector<2x128xf32>
    %228 = math.tanh %227 : vector<2x128xf32>
    %229 = arith.mulf %224, %228 : vector<2x128xf32>
    %230 = vector.extract_strided_slice %5 {offsets = [6, 0], sizes = [2, 512], strides = [1, 1]} : vector<16x512xf32> to vector<2x512xf32>
    %231 = arith.truncf %192 : vector<2x128xf32> to vector<2x128xbf16>
    %c0_83 = arith.constant 0 : index
    %c0_84 = arith.constant 0 : index
    %232 = vector.load %arg4[%c0_83, %c0_84] : memref<128x512xbf16, #tpu.memory_space<vmem>>, vector<128x512xbf16>
    %cst_85 = arith.constant dense<0.000000e+00> : vector<2x512xf32>
    %233 = tpu.matmul %231, %232, %cst_85 {dimension_numbers = #tpu.dot_dimension_numbers<[1], [0], [0], [1], [0, 0, 1, 1], [], []>} : vector<2x128xbf16>, vector<128x512xbf16>, vector<2x512xf32> -> vector<2x512xf32>
    %234 = arith.addf %230, %233 : vector<2x512xf32>
    %235 = vector.extract_strided_slice %234 {offsets = [0, 0], sizes = [2, 128], strides = [1, 1]} : vector<2x512xf32> to vector<2x128xf32>
    %cst_86 = arith.constant 5.000000e-01 : f32
    %236 = vector.broadcast %cst_86 : f32 to vector<2x128xf32>
    %237 = arith.mulf %236, %235 : vector<2x128xf32>
    %238 = math.tanh %237 : vector<2x128xf32>
    %cst_87 = arith.constant 5.000000e-01 : f32
    %239 = vector.broadcast %cst_87 : f32 to vector<2x128xf32>
    %240 = arith.mulf %239, %238 : vector<2x128xf32>
    %cst_88 = arith.constant 5.000000e-01 : f32
    %241 = vector.broadcast %cst_88 : f32 to vector<2x128xf32>
    %242 = arith.addf %240, %241 : vector<2x128xf32>
    %243 = vector.extract_strided_slice %234 {offsets = [0, 128], sizes = [2, 128], strides = [1, 1]} : vector<2x512xf32> to vector<2x128xf32>
    %cst_89 = arith.constant 5.000000e-01 : f32
    %244 = vector.broadcast %cst_89 : f32 to vector<2x128xf32>
    %245 = arith.mulf %244, %243 : vector<2x128xf32>
    %246 = math.tanh %245 : vector<2x128xf32>
    %cst_90 = arith.constant 5.000000e-01 : f32
    %247 = vector.broadcast %cst_90 : f32 to vector<2x128xf32>
    %248 = arith.mulf %247, %246 : vector<2x128xf32>
    %cst_91 = arith.constant 5.000000e-01 : f32
    %249 = vector.broadcast %cst_91 : f32 to vector<2x128xf32>
    %250 = arith.addf %248, %249 : vector<2x128xf32>
    %251 = vector.extract_strided_slice %234 {offsets = [0, 256], sizes = [2, 128], strides = [1, 1]} : vector<2x512xf32> to vector<2x128xf32>
    %252 = math.tanh %251 : vector<2x128xf32>
    %253 = vector.extract_strided_slice %234 {offsets = [0, 384], sizes = [2, 128], strides = [1, 1]} : vector<2x512xf32> to vector<2x128xf32>
    %cst_92 = arith.constant 5.000000e-01 : f32
    %254 = vector.broadcast %cst_92 : f32 to vector<2x128xf32>
    %255 = arith.mulf %254, %253 : vector<2x128xf32>
    %256 = math.tanh %255 : vector<2x128xf32>
    %cst_93 = arith.constant 5.000000e-01 : f32
    %257 = vector.broadcast %cst_93 : f32 to vector<2x128xf32>
    %258 = arith.mulf %257, %256 : vector<2x128xf32>
    %cst_94 = arith.constant 5.000000e-01 : f32
    %259 = vector.broadcast %cst_94 : f32 to vector<2x128xf32>
    %260 = arith.addf %258, %259 : vector<2x128xf32>
    %261 = arith.mulf %250, %190 : vector<2x128xf32>
    %262 = arith.mulf %242, %252 : vector<2x128xf32>
    %263 = arith.addf %261, %262 : vector<2x128xf32>
    %264 = math.tanh %263 : vector<2x128xf32>
    %265 = arith.mulf %260, %264 : vector<2x128xf32>
    %266 = tpu.concatenate %265, %229 in 1 : vector<2x128xf32>, vector<2x128xf32> -> vector<2x256xf32>
    %267 = arith.truncf %266 : vector<2x256xf32> to vector<2x256xbf16>
    %c0_95 = arith.constant 0 : index
    %c0_96 = arith.constant 0 : index
    %268 = vector.load %arg5[%c0_95, %c0_96] : memref<256x512xbf16, #tpu.memory_space<vmem>>, vector<256x512xbf16>
    %cst_97 = arith.constant dense<0.000000e+00> : vector<2x512xf32>
    %269 = tpu.matmul %267, %268, %cst_97 {dimension_numbers = #tpu.dot_dimension_numbers<[1], [0], [0], [1], [0, 0, 1, 1], [], []>} : vector<2x256xbf16>, vector<256x512xbf16>, vector<2x512xf32> -> vector<2x512xf32>
    %270 = vector.broadcast %10 : vector<1x512xf32> to vector<2x512xf32>
    %271 = arith.addf %269, %270 : vector<2x512xf32>
    %272 = vector.extract_strided_slice %271 {offsets = [0, 0], sizes = [2, 128], strides = [1, 1]} : vector<2x512xf32> to vector<2x128xf32>
    %cst_98 = arith.constant 5.000000e-01 : f32
    %273 = vector.broadcast %cst_98 : f32 to vector<2x128xf32>
    %274 = arith.mulf %273, %272 : vector<2x128xf32>
    %275 = math.tanh %274 : vector<2x128xf32>
    %cst_99 = arith.constant 5.000000e-01 : f32
    %276 = vector.broadcast %cst_99 : f32 to vector<2x128xf32>
    %277 = arith.mulf %276, %275 : vector<2x128xf32>
    %cst_100 = arith.constant 5.000000e-01 : f32
    %278 = vector.broadcast %cst_100 : f32 to vector<2x128xf32>
    %279 = arith.addf %277, %278 : vector<2x128xf32>
    %280 = vector.extract_strided_slice %271 {offsets = [0, 128], sizes = [2, 128], strides = [1, 1]} : vector<2x512xf32> to vector<2x128xf32>
    %cst_101 = arith.constant 5.000000e-01 : f32
    %281 = vector.broadcast %cst_101 : f32 to vector<2x128xf32>
    %282 = arith.mulf %281, %280 : vector<2x128xf32>
    %283 = math.tanh %282 : vector<2x128xf32>
    %cst_102 = arith.constant 5.000000e-01 : f32
    %284 = vector.broadcast %cst_102 : f32 to vector<2x128xf32>
    %285 = arith.mulf %284, %283 : vector<2x128xf32>
    %cst_103 = arith.constant 5.000000e-01 : f32
    %286 = vector.broadcast %cst_103 : f32 to vector<2x128xf32>
    %287 = arith.addf %285, %286 : vector<2x128xf32>
    %288 = vector.extract_strided_slice %271 {offsets = [0, 256], sizes = [2, 128], strides = [1, 1]} : vector<2x512xf32> to vector<2x128xf32>
    %289 = math.tanh %288 : vector<2x128xf32>
    %290 = vector.extract_strided_slice %271 {offsets = [0, 384], sizes = [2, 128], strides = [1, 1]} : vector<2x512xf32> to vector<2x128xf32>
    %cst_104 = arith.constant 5.000000e-01 : f32
    %291 = vector.broadcast %cst_104 : f32 to vector<2x128xf32>
    %292 = arith.mulf %291, %290 : vector<2x128xf32>
    %293 = math.tanh %292 : vector<2x128xf32>
    %cst_105 = arith.constant 5.000000e-01 : f32
    %294 = vector.broadcast %cst_105 : f32 to vector<2x128xf32>
    %295 = arith.mulf %294, %293 : vector<2x128xf32>
    %cst_106 = arith.constant 5.000000e-01 : f32
    %296 = vector.broadcast %cst_106 : f32 to vector<2x128xf32>
    %297 = arith.addf %295, %296 : vector<2x128xf32>
    %298 = arith.mulf %287, %227 : vector<2x128xf32>
    %299 = arith.mulf %279, %289 : vector<2x128xf32>
    %300 = arith.addf %298, %299 : vector<2x128xf32>
    %301 = math.tanh %300 : vector<2x128xf32>
    %302 = arith.mulf %297, %301 : vector<2x128xf32>
    %303 = vector.extract_strided_slice %5 {offsets = [8, 0], sizes = [2, 512], strides = [1, 1]} : vector<16x512xf32> to vector<2x512xf32>
    %304 = arith.truncf %265 : vector<2x128xf32> to vector<2x128xbf16>
    %c0_107 = arith.constant 0 : index
    %c0_108 = arith.constant 0 : index
    %305 = vector.load %arg4[%c0_107, %c0_108] : memref<128x512xbf16, #tpu.memory_space<vmem>>, vector<128x512xbf16>
    %cst_109 = arith.constant dense<0.000000e+00> : vector<2x512xf32>
    %306 = tpu.matmul %304, %305, %cst_109 {dimension_numbers = #tpu.dot_dimension_numbers<[1], [0], [0], [1], [0, 0, 1, 1], [], []>} : vector<2x128xbf16>, vector<128x512xbf16>, vector<2x512xf32> -> vector<2x512xf32>
    %307 = arith.addf %303, %306 : vector<2x512xf32>
    %308 = vector.extract_strided_slice %307 {offsets = [0, 0], sizes = [2, 128], strides = [1, 1]} : vector<2x512xf32> to vector<2x128xf32>
    %cst_110 = arith.constant 5.000000e-01 : f32
    %309 = vector.broadcast %cst_110 : f32 to vector<2x128xf32>
    %310 = arith.mulf %309, %308 : vector<2x128xf32>
    %311 = math.tanh %310 : vector<2x128xf32>
    %cst_111 = arith.constant 5.000000e-01 : f32
    %312 = vector.broadcast %cst_111 : f32 to vector<2x128xf32>
    %313 = arith.mulf %312, %311 : vector<2x128xf32>
    %cst_112 = arith.constant 5.000000e-01 : f32
    %314 = vector.broadcast %cst_112 : f32 to vector<2x128xf32>
    %315 = arith.addf %313, %314 : vector<2x128xf32>
    %316 = vector.extract_strided_slice %307 {offsets = [0, 128], sizes = [2, 128], strides = [1, 1]} : vector<2x512xf32> to vector<2x128xf32>
    %cst_113 = arith.constant 5.000000e-01 : f32
    %317 = vector.broadcast %cst_113 : f32 to vector<2x128xf32>
    %318 = arith.mulf %317, %316 : vector<2x128xf32>
    %319 = math.tanh %318 : vector<2x128xf32>
    %cst_114 = arith.constant 5.000000e-01 : f32
    %320 = vector.broadcast %cst_114 : f32 to vector<2x128xf32>
    %321 = arith.mulf %320, %319 : vector<2x128xf32>
    %cst_115 = arith.constant 5.000000e-01 : f32
    %322 = vector.broadcast %cst_115 : f32 to vector<2x128xf32>
    %323 = arith.addf %321, %322 : vector<2x128xf32>
    %324 = vector.extract_strided_slice %307 {offsets = [0, 256], sizes = [2, 128], strides = [1, 1]} : vector<2x512xf32> to vector<2x128xf32>
    %325 = math.tanh %324 : vector<2x128xf32>
    %326 = vector.extract_strided_slice %307 {offsets = [0, 384], sizes = [2, 128], strides = [1, 1]} : vector<2x512xf32> to vector<2x128xf32>
    %cst_116 = arith.constant 5.000000e-01 : f32
    %327 = vector.broadcast %cst_116 : f32 to vector<2x128xf32>
    %328 = arith.mulf %327, %326 : vector<2x128xf32>
    %329 = math.tanh %328 : vector<2x128xf32>
    %cst_117 = arith.constant 5.000000e-01 : f32
    %330 = vector.broadcast %cst_117 : f32 to vector<2x128xf32>
    %331 = arith.mulf %330, %329 : vector<2x128xf32>
    %cst_118 = arith.constant 5.000000e-01 : f32
    %332 = vector.broadcast %cst_118 : f32 to vector<2x128xf32>
    %333 = arith.addf %331, %332 : vector<2x128xf32>
    %334 = arith.mulf %323, %263 : vector<2x128xf32>
    %335 = arith.mulf %315, %325 : vector<2x128xf32>
    %336 = arith.addf %334, %335 : vector<2x128xf32>
    %337 = math.tanh %336 : vector<2x128xf32>
    %338 = arith.mulf %333, %337 : vector<2x128xf32>
    %339 = tpu.concatenate %338, %302 in 1 : vector<2x128xf32>, vector<2x128xf32> -> vector<2x256xf32>
    %340 = arith.truncf %339 : vector<2x256xf32> to vector<2x256xbf16>
    %c0_119 = arith.constant 0 : index
    %c0_120 = arith.constant 0 : index
    %341 = vector.load %arg5[%c0_119, %c0_120] : memref<256x512xbf16, #tpu.memory_space<vmem>>, vector<256x512xbf16>
    %cst_121 = arith.constant dense<0.000000e+00> : vector<2x512xf32>
    %342 = tpu.matmul %340, %341, %cst_121 {dimension_numbers = #tpu.dot_dimension_numbers<[1], [0], [0], [1], [0, 0, 1, 1], [], []>} : vector<2x256xbf16>, vector<256x512xbf16>, vector<2x512xf32> -> vector<2x512xf32>
    %343 = vector.broadcast %10 : vector<1x512xf32> to vector<2x512xf32>
    %344 = arith.addf %342, %343 : vector<2x512xf32>
    %345 = vector.extract_strided_slice %344 {offsets = [0, 0], sizes = [2, 128], strides = [1, 1]} : vector<2x512xf32> to vector<2x128xf32>
    %cst_122 = arith.constant 5.000000e-01 : f32
    %346 = vector.broadcast %cst_122 : f32 to vector<2x128xf32>
    %347 = arith.mulf %346, %345 : vector<2x128xf32>
    %348 = math.tanh %347 : vector<2x128xf32>
    %cst_123 = arith.constant 5.000000e-01 : f32
    %349 = vector.broadcast %cst_123 : f32 to vector<2x128xf32>
    %350 = arith.mulf %349, %348 : vector<2x128xf32>
    %cst_124 = arith.constant 5.000000e-01 : f32
    %351 = vector.broadcast %cst_124 : f32 to vector<2x128xf32>
    %352 = arith.addf %350, %351 : vector<2x128xf32>
    %353 = vector.extract_strided_slice %344 {offsets = [0, 128], sizes = [2, 128], strides = [1, 1]} : vector<2x512xf32> to vector<2x128xf32>
    %cst_125 = arith.constant 5.000000e-01 : f32
    %354 = vector.broadcast %cst_125 : f32 to vector<2x128xf32>
    %355 = arith.mulf %354, %353 : vector<2x128xf32>
    %356 = math.tanh %355 : vector<2x128xf32>
    %cst_126 = arith.constant 5.000000e-01 : f32
    %357 = vector.broadcast %cst_126 : f32 to vector<2x128xf32>
    %358 = arith.mulf %357, %356 : vector<2x128xf32>
    %cst_127 = arith.constant 5.000000e-01 : f32
    %359 = vector.broadcast %cst_127 : f32 to vector<2x128xf32>
    %360 = arith.addf %358, %359 : vector<2x128xf32>
    %361 = vector.extract_strided_slice %344 {offsets = [0, 256], sizes = [2, 128], strides = [1, 1]} : vector<2x512xf32> to vector<2x128xf32>
    %362 = math.tanh %361 : vector<2x128xf32>
    %363 = vector.extract_strided_slice %344 {offsets = [0, 384], sizes = [2, 128], strides = [1, 1]} : vector<2x512xf32> to vector<2x128xf32>
    %cst_128 = arith.constant 5.000000e-01 : f32
    %364 = vector.broadcast %cst_128 : f32 to vector<2x128xf32>
    %365 = arith.mulf %364, %363 : vector<2x128xf32>
    %366 = math.tanh %365 : vector<2x128xf32>
    %cst_129 = arith.constant 5.000000e-01 : f32
    %367 = vector.broadcast %cst_129 : f32 to vector<2x128xf32>
    %368 = arith.mulf %367, %366 : vector<2x128xf32>
    %cst_130 = arith.constant 5.000000e-01 : f32
    %369 = vector.broadcast %cst_130 : f32 to vector<2x128xf32>
    %370 = arith.addf %368, %369 : vector<2x128xf32>
    %371 = arith.mulf %360, %300 : vector<2x128xf32>
    %372 = arith.mulf %352, %362 : vector<2x128xf32>
    %373 = arith.addf %371, %372 : vector<2x128xf32>
    %374 = math.tanh %373 : vector<2x128xf32>
    %375 = arith.mulf %370, %374 : vector<2x128xf32>
    %376 = vector.extract_strided_slice %5 {offsets = [10, 0], sizes = [2, 512], strides = [1, 1]} : vector<16x512xf32> to vector<2x512xf32>
    %377 = arith.truncf %338 : vector<2x128xf32> to vector<2x128xbf16>
    %c0_131 = arith.constant 0 : index
    %c0_132 = arith.constant 0 : index
    %378 = vector.load %arg4[%c0_131, %c0_132] : memref<128x512xbf16, #tpu.memory_space<vmem>>, vector<128x512xbf16>
    %cst_133 = arith.constant dense<0.000000e+00> : vector<2x512xf32>
    %379 = tpu.matmul %377, %378, %cst_133 {dimension_numbers = #tpu.dot_dimension_numbers<[1], [0], [0], [1], [0, 0, 1, 1], [], []>} : vector<2x128xbf16>, vector<128x512xbf16>, vector<2x512xf32> -> vector<2x512xf32>
    %380 = arith.addf %376, %379 : vector<2x512xf32>
    %381 = vector.extract_strided_slice %380 {offsets = [0, 0], sizes = [2, 128], strides = [1, 1]} : vector<2x512xf32> to vector<2x128xf32>
    %cst_134 = arith.constant 5.000000e-01 : f32
    %382 = vector.broadcast %cst_134 : f32 to vector<2x128xf32>
    %383 = arith.mulf %382, %381 : vector<2x128xf32>
    %384 = math.tanh %383 : vector<2x128xf32>
    %cst_135 = arith.constant 5.000000e-01 : f32
    %385 = vector.broadcast %cst_135 : f32 to vector<2x128xf32>
    %386 = arith.mulf %385, %384 : vector<2x128xf32>
    %cst_136 = arith.constant 5.000000e-01 : f32
    %387 = vector.broadcast %cst_136 : f32 to vector<2x128xf32>
    %388 = arith.addf %386, %387 : vector<2x128xf32>
    %389 = vector.extract_strided_slice %380 {offsets = [0, 128], sizes = [2, 128], strides = [1, 1]} : vector<2x512xf32> to vector<2x128xf32>
    %cst_137 = arith.constant 5.000000e-01 : f32
    %390 = vector.broadcast %cst_137 : f32 to vector<2x128xf32>
    %391 = arith.mulf %390, %389 : vector<2x128xf32>
    %392 = math.tanh %391 : vector<2x128xf32>
    %cst_138 = arith.constant 5.000000e-01 : f32
    %393 = vector.broadcast %cst_138 : f32 to vector<2x128xf32>
    %394 = arith.mulf %393, %392 : vector<2x128xf32>
    %cst_139 = arith.constant 5.000000e-01 : f32
    %395 = vector.broadcast %cst_139 : f32 to vector<2x128xf32>
    %396 = arith.addf %394, %395 : vector<2x128xf32>
    %397 = vector.extract_strided_slice %380 {offsets = [0, 256], sizes = [2, 128], strides = [1, 1]} : vector<2x512xf32> to vector<2x128xf32>
    %398 = math.tanh %397 : vector<2x128xf32>
    %399 = vector.extract_strided_slice %380 {offsets = [0, 384], sizes = [2, 128], strides = [1, 1]} : vector<2x512xf32> to vector<2x128xf32>
    %cst_140 = arith.constant 5.000000e-01 : f32
    %400 = vector.broadcast %cst_140 : f32 to vector<2x128xf32>
    %401 = arith.mulf %400, %399 : vector<2x128xf32>
    %402 = math.tanh %401 : vector<2x128xf32>
    %cst_141 = arith.constant 5.000000e-01 : f32
    %403 = vector.broadcast %cst_141 : f32 to vector<2x128xf32>
    %404 = arith.mulf %403, %402 : vector<2x128xf32>
    %cst_142 = arith.constant 5.000000e-01 : f32
    %405 = vector.broadcast %cst_142 : f32 to vector<2x128xf32>
    %406 = arith.addf %404, %405 : vector<2x128xf32>
    %407 = arith.mulf %396, %336 : vector<2x128xf32>
    %408 = arith.mulf %388, %398 : vector<2x128xf32>
    %409 = arith.addf %407, %408 : vector<2x128xf32>
    %410 = math.tanh %409 : vector<2x128xf32>
    %411 = arith.mulf %406, %410 : vector<2x128xf32>
    %412 = tpu.concatenate %411, %375 in 1 : vector<2x128xf32>, vector<2x128xf32> -> vector<2x256xf32>
    %413 = arith.truncf %412 : vector<2x256xf32> to vector<2x256xbf16>
    %c0_143 = arith.constant 0 : index
    %c0_144 = arith.constant 0 : index
    %414 = vector.load %arg5[%c0_143, %c0_144] : memref<256x512xbf16, #tpu.memory_space<vmem>>, vector<256x512xbf16>
    %cst_145 = arith.constant dense<0.000000e+00> : vector<2x512xf32>
    %415 = tpu.matmul %413, %414, %cst_145 {dimension_numbers = #tpu.dot_dimension_numbers<[1], [0], [0], [1], [0, 0, 1, 1], [], []>} : vector<2x256xbf16>, vector<256x512xbf16>, vector<2x512xf32> -> vector<2x512xf32>
    %416 = vector.broadcast %10 : vector<1x512xf32> to vector<2x512xf32>
    %417 = arith.addf %415, %416 : vector<2x512xf32>
    %418 = vector.extract_strided_slice %417 {offsets = [0, 0], sizes = [2, 128], strides = [1, 1]} : vector<2x512xf32> to vector<2x128xf32>
    %cst_146 = arith.constant 5.000000e-01 : f32
    %419 = vector.broadcast %cst_146 : f32 to vector<2x128xf32>
    %420 = arith.mulf %419, %418 : vector<2x128xf32>
    %421 = math.tanh %420 : vector<2x128xf32>
    %cst_147 = arith.constant 5.000000e-01 : f32
    %422 = vector.broadcast %cst_147 : f32 to vector<2x128xf32>
    %423 = arith.mulf %422, %421 : vector<2x128xf32>
    %cst_148 = arith.constant 5.000000e-01 : f32
    %424 = vector.broadcast %cst_148 : f32 to vector<2x128xf32>
    %425 = arith.addf %423, %424 : vector<2x128xf32>
    %426 = vector.extract_strided_slice %417 {offsets = [0, 128], sizes = [2, 128], strides = [1, 1]} : vector<2x512xf32> to vector<2x128xf32>
    %cst_149 = arith.constant 5.000000e-01 : f32
    %427 = vector.broadcast %cst_149 : f32 to vector<2x128xf32>
    %428 = arith.mulf %427, %426 : vector<2x128xf32>
    %429 = math.tanh %428 : vector<2x128xf32>
    %cst_150 = arith.constant 5.000000e-01 : f32
    %430 = vector.broadcast %cst_150 : f32 to vector<2x128xf32>
    %431 = arith.mulf %430, %429 : vector<2x128xf32>
    %cst_151 = arith.constant 5.000000e-01 : f32
    %432 = vector.broadcast %cst_151 : f32 to vector<2x128xf32>
    %433 = arith.addf %431, %432 : vector<2x128xf32>
    %434 = vector.extract_strided_slice %417 {offsets = [0, 256], sizes = [2, 128], strides = [1, 1]} : vector<2x512xf32> to vector<2x128xf32>
    %435 = math.tanh %434 : vector<2x128xf32>
    %436 = vector.extract_strided_slice %417 {offsets = [0, 384], sizes = [2, 128], strides = [1, 1]} : vector<2x512xf32> to vector<2x128xf32>
    %cst_152 = arith.constant 5.000000e-01 : f32
    %437 = vector.broadcast %cst_152 : f32 to vector<2x128xf32>
    %438 = arith.mulf %437, %436 : vector<2x128xf32>
    %439 = math.tanh %438 : vector<2x128xf32>
    %cst_153 = arith.constant 5.000000e-01 : f32
    %440 = vector.broadcast %cst_153 : f32 to vector<2x128xf32>
    %441 = arith.mulf %440, %439 : vector<2x128xf32>
    %cst_154 = arith.constant 5.000000e-01 : f32
    %442 = vector.broadcast %cst_154 : f32 to vector<2x128xf32>
    %443 = arith.addf %441, %442 : vector<2x128xf32>
    %444 = arith.mulf %433, %373 : vector<2x128xf32>
    %445 = arith.mulf %425, %435 : vector<2x128xf32>
    %446 = arith.addf %444, %445 : vector<2x128xf32>
    %447 = math.tanh %446 : vector<2x128xf32>
    %448 = arith.mulf %443, %447 : vector<2x128xf32>
    %449 = vector.extract_strided_slice %5 {offsets = [12, 0], sizes = [2, 512], strides = [1, 1]} : vector<16x512xf32> to vector<2x512xf32>
    %450 = arith.truncf %411 : vector<2x128xf32> to vector<2x128xbf16>
    %c0_155 = arith.constant 0 : index
    %c0_156 = arith.constant 0 : index
    %451 = vector.load %arg4[%c0_155, %c0_156] : memref<128x512xbf16, #tpu.memory_space<vmem>>, vector<128x512xbf16>
    %cst_157 = arith.constant dense<0.000000e+00> : vector<2x512xf32>
    %452 = tpu.matmul %450, %451, %cst_157 {dimension_numbers = #tpu.dot_dimension_numbers<[1], [0], [0], [1], [0, 0, 1, 1], [], []>} : vector<2x128xbf16>, vector<128x512xbf16>, vector<2x512xf32> -> vector<2x512xf32>
    %453 = arith.addf %449, %452 : vector<2x512xf32>
    %454 = vector.extract_strided_slice %453 {offsets = [0, 0], sizes = [2, 128], strides = [1, 1]} : vector<2x512xf32> to vector<2x128xf32>
    %cst_158 = arith.constant 5.000000e-01 : f32
    %455 = vector.broadcast %cst_158 : f32 to vector<2x128xf32>
    %456 = arith.mulf %455, %454 : vector<2x128xf32>
    %457 = math.tanh %456 : vector<2x128xf32>
    %cst_159 = arith.constant 5.000000e-01 : f32
    %458 = vector.broadcast %cst_159 : f32 to vector<2x128xf32>
    %459 = arith.mulf %458, %457 : vector<2x128xf32>
    %cst_160 = arith.constant 5.000000e-01 : f32
    %460 = vector.broadcast %cst_160 : f32 to vector<2x128xf32>
    %461 = arith.addf %459, %460 : vector<2x128xf32>
    %462 = vector.extract_strided_slice %453 {offsets = [0, 128], sizes = [2, 128], strides = [1, 1]} : vector<2x512xf32> to vector<2x128xf32>
    %cst_161 = arith.constant 5.000000e-01 : f32
    %463 = vector.broadcast %cst_161 : f32 to vector<2x128xf32>
    %464 = arith.mulf %463, %462 : vector<2x128xf32>
    %465 = math.tanh %464 : vector<2x128xf32>
    %cst_162 = arith.constant 5.000000e-01 : f32
    %466 = vector.broadcast %cst_162 : f32 to vector<2x128xf32>
    %467 = arith.mulf %466, %465 : vector<2x128xf32>
    %cst_163 = arith.constant 5.000000e-01 : f32
    %468 = vector.broadcast %cst_163 : f32 to vector<2x128xf32>
    %469 = arith.addf %467, %468 : vector<2x128xf32>
    %470 = vector.extract_strided_slice %453 {offsets = [0, 256], sizes = [2, 128], strides = [1, 1]} : vector<2x512xf32> to vector<2x128xf32>
    %471 = math.tanh %470 : vector<2x128xf32>
    %472 = vector.extract_strided_slice %453 {offsets = [0, 384], sizes = [2, 128], strides = [1, 1]} : vector<2x512xf32> to vector<2x128xf32>
    %cst_164 = arith.constant 5.000000e-01 : f32
    %473 = vector.broadcast %cst_164 : f32 to vector<2x128xf32>
    %474 = arith.mulf %473, %472 : vector<2x128xf32>
    %475 = math.tanh %474 : vector<2x128xf32>
    %cst_165 = arith.constant 5.000000e-01 : f32
    %476 = vector.broadcast %cst_165 : f32 to vector<2x128xf32>
    %477 = arith.mulf %476, %475 : vector<2x128xf32>
    %cst_166 = arith.constant 5.000000e-01 : f32
    %478 = vector.broadcast %cst_166 : f32 to vector<2x128xf32>
    %479 = arith.addf %477, %478 : vector<2x128xf32>
    %480 = arith.mulf %469, %409 : vector<2x128xf32>
    %481 = arith.mulf %461, %471 : vector<2x128xf32>
    %482 = arith.addf %480, %481 : vector<2x128xf32>
    %483 = math.tanh %482 : vector<2x128xf32>
    %484 = arith.mulf %479, %483 : vector<2x128xf32>
    %485 = tpu.concatenate %484, %448 in 1 : vector<2x128xf32>, vector<2x128xf32> -> vector<2x256xf32>
    %486 = arith.truncf %485 : vector<2x256xf32> to vector<2x256xbf16>
    %c0_167 = arith.constant 0 : index
    %c0_168 = arith.constant 0 : index
    %487 = vector.load %arg5[%c0_167, %c0_168] : memref<256x512xbf16, #tpu.memory_space<vmem>>, vector<256x512xbf16>
    %cst_169 = arith.constant dense<0.000000e+00> : vector<2x512xf32>
    %488 = tpu.matmul %486, %487, %cst_169 {dimension_numbers = #tpu.dot_dimension_numbers<[1], [0], [0], [1], [0, 0, 1, 1], [], []>} : vector<2x256xbf16>, vector<256x512xbf16>, vector<2x512xf32> -> vector<2x512xf32>
    %489 = vector.broadcast %10 : vector<1x512xf32> to vector<2x512xf32>
    %490 = arith.addf %488, %489 : vector<2x512xf32>
    %491 = vector.extract_strided_slice %490 {offsets = [0, 0], sizes = [2, 128], strides = [1, 1]} : vector<2x512xf32> to vector<2x128xf32>
    %cst_170 = arith.constant 5.000000e-01 : f32
    %492 = vector.broadcast %cst_170 : f32 to vector<2x128xf32>
    %493 = arith.mulf %492, %491 : vector<2x128xf32>
    %494 = math.tanh %493 : vector<2x128xf32>
    %cst_171 = arith.constant 5.000000e-01 : f32
    %495 = vector.broadcast %cst_171 : f32 to vector<2x128xf32>
    %496 = arith.mulf %495, %494 : vector<2x128xf32>
    %cst_172 = arith.constant 5.000000e-01 : f32
    %497 = vector.broadcast %cst_172 : f32 to vector<2x128xf32>
    %498 = arith.addf %496, %497 : vector<2x128xf32>
    %499 = vector.extract_strided_slice %490 {offsets = [0, 128], sizes = [2, 128], strides = [1, 1]} : vector<2x512xf32> to vector<2x128xf32>
    %cst_173 = arith.constant 5.000000e-01 : f32
    %500 = vector.broadcast %cst_173 : f32 to vector<2x128xf32>
    %501 = arith.mulf %500, %499 : vector<2x128xf32>
    %502 = math.tanh %501 : vector<2x128xf32>
    %cst_174 = arith.constant 5.000000e-01 : f32
    %503 = vector.broadcast %cst_174 : f32 to vector<2x128xf32>
    %504 = arith.mulf %503, %502 : vector<2x128xf32>
    %cst_175 = arith.constant 5.000000e-01 : f32
    %505 = vector.broadcast %cst_175 : f32 to vector<2x128xf32>
    %506 = arith.addf %504, %505 : vector<2x128xf32>
    %507 = vector.extract_strided_slice %490 {offsets = [0, 256], sizes = [2, 128], strides = [1, 1]} : vector<2x512xf32> to vector<2x128xf32>
    %508 = math.tanh %507 : vector<2x128xf32>
    %509 = vector.extract_strided_slice %490 {offsets = [0, 384], sizes = [2, 128], strides = [1, 1]} : vector<2x512xf32> to vector<2x128xf32>
    %cst_176 = arith.constant 5.000000e-01 : f32
    %510 = vector.broadcast %cst_176 : f32 to vector<2x128xf32>
    %511 = arith.mulf %510, %509 : vector<2x128xf32>
    %512 = math.tanh %511 : vector<2x128xf32>
    %cst_177 = arith.constant 5.000000e-01 : f32
    %513 = vector.broadcast %cst_177 : f32 to vector<2x128xf32>
    %514 = arith.mulf %513, %512 : vector<2x128xf32>
    %cst_178 = arith.constant 5.000000e-01 : f32
    %515 = vector.broadcast %cst_178 : f32 to vector<2x128xf32>
    %516 = arith.addf %514, %515 : vector<2x128xf32>
    %517 = arith.mulf %506, %446 : vector<2x128xf32>
    %518 = arith.mulf %498, %508 : vector<2x128xf32>
    %519 = arith.addf %517, %518 : vector<2x128xf32>
    %520 = math.tanh %519 : vector<2x128xf32>
    %521 = arith.mulf %516, %520 : vector<2x128xf32>
    %522 = vector.extract_strided_slice %5 {offsets = [14, 0], sizes = [2, 512], strides = [1, 1]} : vector<16x512xf32> to vector<2x512xf32>
    %523 = arith.truncf %484 : vector<2x128xf32> to vector<2x128xbf16>
    %c0_179 = arith.constant 0 : index
    %c0_180 = arith.constant 0 : index
    %524 = vector.load %arg4[%c0_179, %c0_180] : memref<128x512xbf16, #tpu.memory_space<vmem>>, vector<128x512xbf16>
    %cst_181 = arith.constant dense<0.000000e+00> : vector<2x512xf32>
    %525 = tpu.matmul %523, %524, %cst_181 {dimension_numbers = #tpu.dot_dimension_numbers<[1], [0], [0], [1], [0, 0, 1, 1], [], []>} : vector<2x128xbf16>, vector<128x512xbf16>, vector<2x512xf32> -> vector<2x512xf32>
    %526 = arith.addf %522, %525 : vector<2x512xf32>
    %527 = vector.extract_strided_slice %526 {offsets = [0, 0], sizes = [2, 128], strides = [1, 1]} : vector<2x512xf32> to vector<2x128xf32>
    %cst_182 = arith.constant 5.000000e-01 : f32
    %528 = vector.broadcast %cst_182 : f32 to vector<2x128xf32>
    %529 = arith.mulf %528, %527 : vector<2x128xf32>
    %530 = math.tanh %529 : vector<2x128xf32>
    %cst_183 = arith.constant 5.000000e-01 : f32
    %531 = vector.broadcast %cst_183 : f32 to vector<2x128xf32>
    %532 = arith.mulf %531, %530 : vector<2x128xf32>
    %cst_184 = arith.constant 5.000000e-01 : f32
    %533 = vector.broadcast %cst_184 : f32 to vector<2x128xf32>
    %534 = arith.addf %532, %533 : vector<2x128xf32>
    %535 = vector.extract_strided_slice %526 {offsets = [0, 128], sizes = [2, 128], strides = [1, 1]} : vector<2x512xf32> to vector<2x128xf32>
    %cst_185 = arith.constant 5.000000e-01 : f32
    %536 = vector.broadcast %cst_185 : f32 to vector<2x128xf32>
    %537 = arith.mulf %536, %535 : vector<2x128xf32>
    %538 = math.tanh %537 : vector<2x128xf32>
    %cst_186 = arith.constant 5.000000e-01 : f32
    %539 = vector.broadcast %cst_186 : f32 to vector<2x128xf32>
    %540 = arith.mulf %539, %538 : vector<2x128xf32>
    %cst_187 = arith.constant 5.000000e-01 : f32
    %541 = vector.broadcast %cst_187 : f32 to vector<2x128xf32>
    %542 = arith.addf %540, %541 : vector<2x128xf32>
    %543 = vector.extract_strided_slice %526 {offsets = [0, 256], sizes = [2, 128], strides = [1, 1]} : vector<2x512xf32> to vector<2x128xf32>
    %544 = math.tanh %543 : vector<2x128xf32>
    %545 = vector.extract_strided_slice %526 {offsets = [0, 384], sizes = [2, 128], strides = [1, 1]} : vector<2x512xf32> to vector<2x128xf32>
    %cst_188 = arith.constant 5.000000e-01 : f32
    %546 = vector.broadcast %cst_188 : f32 to vector<2x128xf32>
    %547 = arith.mulf %546, %545 : vector<2x128xf32>
    %548 = math.tanh %547 : vector<2x128xf32>
    %cst_189 = arith.constant 5.000000e-01 : f32
    %549 = vector.broadcast %cst_189 : f32 to vector<2x128xf32>
    %550 = arith.mulf %549, %548 : vector<2x128xf32>
    %cst_190 = arith.constant 5.000000e-01 : f32
    %551 = vector.broadcast %cst_190 : f32 to vector<2x128xf32>
    %552 = arith.addf %550, %551 : vector<2x128xf32>
    %553 = arith.mulf %542, %482 : vector<2x128xf32>
    %554 = arith.mulf %534, %544 : vector<2x128xf32>
    %555 = arith.addf %553, %554 : vector<2x128xf32>
    %556 = math.tanh %555 : vector<2x128xf32>
    %557 = arith.mulf %552, %556 : vector<2x128xf32>
    %558 = tpu.concatenate %557, %521 in 1 : vector<2x128xf32>, vector<2x128xf32> -> vector<2x256xf32>
    %559 = arith.truncf %558 : vector<2x256xf32> to vector<2x256xbf16>
    %c0_191 = arith.constant 0 : index
    %c0_192 = arith.constant 0 : index
    %560 = vector.load %arg5[%c0_191, %c0_192] : memref<256x512xbf16, #tpu.memory_space<vmem>>, vector<256x512xbf16>
    %cst_193 = arith.constant dense<0.000000e+00> : vector<2x512xf32>
    %561 = tpu.matmul %559, %560, %cst_193 {dimension_numbers = #tpu.dot_dimension_numbers<[1], [0], [0], [1], [0, 0, 1, 1], [], []>} : vector<2x256xbf16>, vector<256x512xbf16>, vector<2x512xf32> -> vector<2x512xf32>
    %562 = vector.broadcast %10 : vector<1x512xf32> to vector<2x512xf32>
    %563 = arith.addf %561, %562 : vector<2x512xf32>
    %564 = vector.extract_strided_slice %563 {offsets = [0, 0], sizes = [2, 128], strides = [1, 1]} : vector<2x512xf32> to vector<2x128xf32>
    %cst_194 = arith.constant 5.000000e-01 : f32
    %565 = vector.broadcast %cst_194 : f32 to vector<2x128xf32>
    %566 = arith.mulf %565, %564 : vector<2x128xf32>
    %567 = math.tanh %566 : vector<2x128xf32>
    %cst_195 = arith.constant 5.000000e-01 : f32
    %568 = vector.broadcast %cst_195 : f32 to vector<2x128xf32>
    %569 = arith.mulf %568, %567 : vector<2x128xf32>
    %cst_196 = arith.constant 5.000000e-01 : f32
    %570 = vector.broadcast %cst_196 : f32 to vector<2x128xf32>
    %571 = arith.addf %569, %570 : vector<2x128xf32>
    %572 = vector.extract_strided_slice %563 {offsets = [0, 128], sizes = [2, 128], strides = [1, 1]} : vector<2x512xf32> to vector<2x128xf32>
    %cst_197 = arith.constant 5.000000e-01 : f32
    %573 = vector.broadcast %cst_197 : f32 to vector<2x128xf32>
    %574 = arith.mulf %573, %572 : vector<2x128xf32>
    %575 = math.tanh %574 : vector<2x128xf32>
    %cst_198 = arith.constant 5.000000e-01 : f32
    %576 = vector.broadcast %cst_198 : f32 to vector<2x128xf32>
    %577 = arith.mulf %576, %575 : vector<2x128xf32>
    %cst_199 = arith.constant 5.000000e-01 : f32
    %578 = vector.broadcast %cst_199 : f32 to vector<2x128xf32>
    %579 = arith.addf %577, %578 : vector<2x128xf32>
    %580 = vector.extract_strided_slice %563 {offsets = [0, 256], sizes = [2, 128], strides = [1, 1]} : vector<2x512xf32> to vector<2x128xf32>
    %581 = math.tanh %580 : vector<2x128xf32>
    %582 = vector.extract_strided_slice %563 {offsets = [0, 384], sizes = [2, 128], strides = [1, 1]} : vector<2x512xf32> to vector<2x128xf32>
    %cst_200 = arith.constant 5.000000e-01 : f32
    %583 = vector.broadcast %cst_200 : f32 to vector<2x128xf32>
    %584 = arith.mulf %583, %582 : vector<2x128xf32>
    %585 = math.tanh %584 : vector<2x128xf32>
    %cst_201 = arith.constant 5.000000e-01 : f32
    %586 = vector.broadcast %cst_201 : f32 to vector<2x128xf32>
    %587 = arith.mulf %586, %585 : vector<2x128xf32>
    %cst_202 = arith.constant 5.000000e-01 : f32
    %588 = vector.broadcast %cst_202 : f32 to vector<2x128xf32>
    %589 = arith.addf %587, %588 : vector<2x128xf32>
    %590 = arith.mulf %579, %519 : vector<2x128xf32>
    %591 = arith.mulf %571, %581 : vector<2x128xf32>
    %592 = arith.addf %590, %591 : vector<2x128xf32>
    %593 = math.tanh %592 : vector<2x128xf32>
    %594 = arith.mulf %589, %593 : vector<2x128xf32>
    %c0_203 = arith.constant 0 : index
    %c0_204 = arith.constant 0 : index
    %595 = vector.load %arg1[%c0_203, %c0_204] : memref<2x128xf32, #tpu.memory_space<vmem>>, vector<2x128xf32>
    %596 = tpu.concatenate %594, %595 in 1 : vector<2x128xf32>, vector<2x128xf32> -> vector<2x256xf32>
    %597 = arith.truncf %596 : vector<2x256xf32> to vector<2x256xbf16>
    %c0_205 = arith.constant 0 : index
    %c0_206 = arith.constant 0 : index
    %598 = vector.load %arg7[%c0_205, %c0_206] : memref<256x128xbf16, #tpu.memory_space<vmem>>, vector<256x128xbf16>
    %cst_207 = arith.constant dense<0.000000e+00> : vector<2x128xf32>
    %599 = tpu.matmul %597, %598, %cst_207 {dimension_numbers = #tpu.dot_dimension_numbers<[1], [0], [0], [1], [0, 0, 1, 1], [], []>} : vector<2x256xbf16>, vector<256x128xbf16>, vector<2x128xf32> -> vector<2x128xf32>
    %c0_208 = arith.constant 0 : index
    %c0_209 = arith.constant 0 : index
    %600 = vector.load %arg8[%c0_208, %c0_209] : memref<1x128xf32, #tpu.memory_space<vmem>>, vector<1x128xf32>
    %601 = vector.broadcast %600 : vector<1x128xf32> to vector<2x128xf32>
    %602 = arith.addf %599, %601 : vector<2x128xf32>
    %cst_210 = arith.constant 0.000000e+00 : f32
    %603 = vector.broadcast %cst_210 : f32 to vector<2x128xf32>
    %604 = arith.maximumf %602, %603 : vector<2x128xf32>
    %c0_211 = arith.constant 0 : index
    %c0_212 = arith.constant 0 : index
    %605 = vector.load %arg9[%c0_211, %c0_212] : memref<128x32xf32, #tpu.memory_space<vmem>>, vector<128x32xf32>
    %cst_213 = arith.constant dense<0.000000e+00> : vector<2x32xf32>
    %606 = tpu.matmul %604, %605, %cst_213 {dimension_numbers = #tpu.dot_dimension_numbers<[1], [0], [0], [1], [0, 0, 1, 1], [], []>} : vector<2x128xf32>, vector<128x32xf32>, vector<2x32xf32> -> vector<2x32xf32>
    %c0_214 = arith.constant 0 : index
    %c0_215 = arith.constant 0 : index
    %607 = vector.load %arg10[%c0_214, %c0_215] : memref<1x32xf32, #tpu.memory_space<vmem>>, vector<1x32xf32>
    %608 = vector.broadcast %607 : vector<1x32xf32> to vector<2x32xf32>
    %609 = arith.addf %606, %608 : vector<2x32xf32>
    %cst_216 = arith.constant 0.000000e+00 : f32
    %610 = vector.broadcast %cst_216 : f32 to vector<2x32xf32>
    %611 = arith.maximumf %609, %610 : vector<2x32xf32>
    %c0_217 = arith.constant 0 : index
    %c0_218 = arith.constant 0 : index
    %612 = vector.load %arg11[%c0_217, %c0_218] : memref<32x8xf32, #tpu.memory_space<vmem>>, vector<32x8xf32>
    %cst_219 = arith.constant dense<0.000000e+00> : vector<2x8xf32>
    %613 = tpu.matmul %611, %612, %cst_219 {dimension_numbers = #tpu.dot_dimension_numbers<[1], [0], [0], [1], [0, 0, 1, 1], [], []>} : vector<2x32xf32>, vector<32x8xf32>, vector<2x8xf32> -> vector<2x8xf32>
    %c0_220 = arith.constant 0 : index
    %c0_221 = arith.constant 0 : index
    %614 = vector.load %arg12[%c0_220, %c0_221] : memref<1x8xf32, #tpu.memory_space<vmem>>, vector<1x8xf32>
    %615 = vector.broadcast %614 : vector<1x8xf32> to vector<2x8xf32>
    %616 = arith.addf %613, %615 : vector<2x8xf32>
    %cst_222 = arith.constant 0.000000e+00 : f32
    %617 = vector.broadcast %cst_222 : f32 to vector<2x8xf32>
    %618 = arith.maximumf %616, %617 : vector<2x8xf32>
    %c0_223 = arith.constant 0 : index
    %c0_224 = arith.constant 0 : index
    %619 = vector.load %arg13[%c0_223, %c0_224] : memref<8x1xf32, #tpu.memory_space<vmem>>, vector<8x1xf32>
    %cst_225 = arith.constant dense<0.000000e+00> : vector<2x1xf32>
    %620 = tpu.matmul %618, %619, %cst_225 {dimension_numbers = #tpu.dot_dimension_numbers<[1], [0], [0], [1], [0, 0, 1, 1], [], []>} : vector<2x8xf32>, vector<8x1xf32>, vector<2x1xf32> -> vector<2x1xf32>
    %c0_226 = arith.constant 0 : index
    %c0_227 = arith.constant 0 : index
    %621 = vector.load %arg14[%c0_226, %c0_227] : memref<1x1xf32, #tpu.memory_space<vmem>>, vector<1x1xf32>
    %622 = vector.broadcast %621 : vector<1x1xf32> to vector<2x1xf32>
    %623 = arith.addf %620, %622 : vector<2x1xf32>
    %c0_228 = arith.constant 0 : index
    %c0_229 = arith.constant 0 : index
    %624 = vector.load %arg15[%c0_228, %c0_229] : memref<2x1xf32, #tpu.memory_space<vmem>>, vector<2x1xf32>
    tpu.vector_store %arg15[%c0_228, %c0_229], %623 {strides = array<i32>} : memref<2x1xf32, #tpu.memory_space<vmem>>, vector<2x1xf32>,
    return
  }
}

</mosaic_0001>

<llo_original>
// kernel: model_forward.1
$region0: #{model_forward.1}
  #allocation0 [shape = 'u32[]', space=smem, size = 0x4, offset = 0x4, fixed_abs, tag = 'smem constant byte address 0x4 - core index']
  #allocation1 [shape = 'u32[72,128]{1,0:T(1,128)}', space=vmem, size = 0x9000, scoped, tag = 'internal scratch']
  #allocation2 [shape = 'f32[1,1]{1,0:T(1,128)S(1)}', space=vmem, size = 0x200, scoped, tag = 'scoped memory for model_forward.1']
  %s0 = inlined_call_operand.vmem [shape: f32[16,4], index: 0, kind: input, shape index: {}]
  %s1 = inlined_call_operand.vmem [shape: f32[2,128], index: 1, kind: input, shape index: {}]
  %s2 = inlined_call_operand.vmem [shape: f32[4,512], index: 2, kind: input, shape index: {}]
  %s3 = inlined_call_operand.vmem [shape: f32[1,512], index: 3, kind: input, shape index: {}]
  %s4 = inlined_call_operand.hbm [shape: bf16[128,512], index: 4, kind: input, shape index: {}]
  %s5 = inlined_call_operand.hbm [shape: bf16[256,512], index: 5, kind: input, shape index: {}]
  %s6 = inlined_call_operand.vmem [shape: f32[1,512], index: 6, kind: input, shape index: {}]
  %s7 = inlined_call_operand.vmem [shape: bf16[256,128], index: 7, kind: input, shape index: {}]
  %s8 = inlined_call_operand.vmem [shape: f32[1,128], index: 8, kind: input, shape index: {}]
  %s9 = inlined_call_operand.vmem [shape: f32[128,32], index: 9, kind: input, shape index: {}]
  %s10 = inlined_call_operand.vmem [shape: f32[1,32], index: 10, kind: input, shape index: {}]
  %s11 = inlined_call_operand.vmem [shape: f32[32,8], index: 11, kind: input, shape index: {}]
  %s12 = inlined_call_operand.vmem [shape: f32[1,8], index: 12, kind: input, shape index: {}]
  %s13 = inlined_call_operand.vmem [shape: f32[8,1], index: 13, kind: input, shape index: {}]
  %s14 = inlined_call_operand.<no memory space> [shape: f32[1,1], index: 14, kind: input, shape index: {}]
  %s15 = inlined_call_operand.vmem [shape: f32[2,1], index: 15, kind: output, shape index: {}]
  %s16 = sld [smem:[#allocation0]]
  $region78: #{model_forward.1} parent=0
    _
  %s18 = ssub.s32 1, %s16
  %s19 = scalar_select 0, %s18, %s16
  %v20 = vstv %s14
  %21 = vst [vmem:[#allocation2] sm:$0x1] %v20
  $region1: #{model_forward.1} parent=0
    #allocation3 [shape = 'u8[131072]{0}', space=vmem, size = 0x20000, scoped, tag = 'input window, operand 4, single buffered']
    #allocation4 [shape = 's32[1]{0}', space=sflag, size = 0x4, scoped, tag = 'scoped memory for model_forward.1']
    #allocation5 [shape = 'u8[262144]{0}', space=vmem, size = 0x40000, scoped, tag = 'input window, operand 5, single buffered']
    #allocation6 [shape = 's32[1]{0}', space=sflag, size = 0x4, scoped, tag = 'scoped memory for model_forward.1']
    %22 = vsyncpa [#allocation4], 0
    %23 = vsyncpa [#allocation6], 0
    // Predicated region
    $region2: #{model_forward.1} parent=1 // pred_check
      _
    $region3: #{model_forward.1} parent=1 // pred_check_branch
      %25 = sbr.rel (0) target = $region5
    $region4: #{model_forward.1} parent=1 // pred_region
      _
    $region5: #{model_forward.1} parent=1 // pred_fallthru
      _
    // Predicated region
    $region6: #{model_forward.1} parent=1 // pred_check
      _
    $region7: #{model_forward.1} parent=1 // pred_check_branch
      %27 = sbr.rel (0) target = $region9
    $region8: #{model_forward.1} parent=1 // pred_region
      _
    $region9: #{model_forward.1} parent=1 // pred_fallthru
      _
    // Predicated region
    $region10: #{model_forward.1} parent=1 // pred_check
      _
    $region11: #{model_forward.1} parent=1 // pred_check_branch
      %29 = sbr.rel (0) target = $region13
    $region12: #{model_forward.1} parent=1 // pred_region
      _
    $region13: #{model_forward.1} parent=1 // pred_fallthru
      _
    // Predicated region
    $region14: #{model_forward.1} parent=1 // pred_check
      _
    $region15: #{model_forward.1} parent=1 // pred_check_branch
      %31 = sbr.rel (0) target = $region17
    $region16: #{model_forward.1} parent=1 // pred_region
      _
    $region17: #{model_forward.1} parent=1 // pred_fallthru
      _
    // Predicated region
    $region18: #{model_forward.1} parent=1 // pred_check
      _
    $region19: #{model_forward.1} parent=1 // pred_check_branch
      %33 = sbr.rel (0) target = $region21
    $region20: #{model_forward.1} parent=1 // pred_region
      %35 = vsyncadd [#allocation4], 0
      %s36 = sshll.u32 %s4, 4
      %s37 = int_to_ptr.hbm [resolvable:$true] %s36
      %s38 = sshll.u32 [#allocation3], 4
      %s39 = int_to_ptr.vmem [resolvable:$true] %s38
      %44 = dma.hbm_to_vmem [thread:$0]  %s37, 4096, %s39, [#allocation4], 256, 256, 16
    $region21: #{model_forward.1} parent=1 // pred_fallthru
      _
    // Predicated region
    $region22: #{model_forward.1} parent=1 // pred_check
      _
    $region23: #{model_forward.1} parent=1 // pred_check_branch
      %46 = sbr.rel (0) target = $region25
    $region24: #{model_forward.1} parent=1 // pred_region
      %48 = vsyncadd [#allocation6], 0
      %s49 = sshll.u32 %s5, 4
      %s50 = int_to_ptr.hbm [resolvable:$true] %s49
      %s51 = sshll.u32 [#allocation5], 4
      %s52 = int_to_ptr.vmem [resolvable:$true] %s51
      %57 = dma.hbm_to_vmem [thread:$0]  %s50, 8192, %s52, [#allocation6], 256, 256, 16
    $region25: #{model_forward.1} parent=1 // pred_fallthru
      _
    // Predicated region
    $region26: #{model_forward.1} parent=1 // pred_check
      _
    $region27: #{model_forward.1} parent=1 // pred_check_branch
      %59 = sbr.rel (0) target = $region29
    $region28: #{model_forward.1} parent=1 // pred_region
      _
    $region29: #{model_forward.1} parent=1 // pred_fallthru
      _
    // Predicated region
    $region30: #{model_forward.1} parent=1 // pred_check
      _
    $region31: #{model_forward.1} parent=1 // pred_check_branch
      %61 = sbr.rel (0) target = $region33
    $region32: #{model_forward.1} parent=1 // pred_region
      _
    $region33: #{model_forward.1} parent=1 // pred_fallthru
      _
    // Predicated region
    $region34: #{model_forward.1} parent=1 // pred_check
      _
    $region35: #{model_forward.1} parent=1 // pred_check_branch
      %63 = sbr.rel (0) target = $region37
    $region36: #{model_forward.1} parent=1 // pred_region
      _
    $region37: #{model_forward.1} parent=1 // pred_fallthru
      _
    // Predicated region
    $region38: #{model_forward.1} parent=1 // pred_check
      _
    $region39: #{model_forward.1} parent=1 // pred_check_branch
      %65 = sbr.rel (0) target = $region41
    $region40: #{model_forward.1} parent=1 // pred_region
      _
    $region41: #{model_forward.1} parent=1 // pred_fallthru
      _
    // Predicated region
    $region42: #{model_forward.1} parent=1 // pred_check
      _
    $region43: #{model_forward.1} parent=1 // pred_check_branch
      %67 = sbr.rel (0) target = $region45
    $region44: #{model_forward.1} parent=1 // pred_region
      _
    $region45: #{model_forward.1} parent=1 // pred_fallthru
      _
    // Predicated region
    $region46: #{model_forward.1} parent=1 // pred_check
      _
    $region47: #{model_forward.1} parent=1 // pred_check_branch
      %69 = sbr.rel (0) target = $region49
    $region48: #{model_forward.1} parent=1 // pred_region
      _
    $region49: #{model_forward.1} parent=1 // pred_fallthru
      _
    // Predicated region
    $region50: #{model_forward.1} parent=1 // pred_check
      _
    $region51: #{model_forward.1} parent=1 // pred_check_branch
      %71 = sbr.rel (0) target = $region53
    $region52: #{model_forward.1} parent=1 // pred_region
      _
    $region53: #{model_forward.1} parent=1 // pred_fallthru
      _
    // Predicated region
    $region54: #{model_forward.1} parent=1 // pred_check
      _
    $region55: #{model_forward.1} parent=1 // pred_check_branch
      %73 = sbr.rel (0) target = $region57
    $region56: #{model_forward.1} parent=1 // pred_region
      _
    $region57: #{model_forward.1} parent=1 // pred_fallthru
      _
    // Predicated region
    $region58: #{model_forward.1} parent=1 // pred_check
      _
    $region59: #{model_forward.1} parent=1 // pred_check_branch
      %75 = sbr.rel (0) target = $region61
    $region60: #{model_forward.1} parent=1 // pred_region
      _
    $region61: #{model_forward.1} parent=1 // pred_fallthru
      _
    // Predicated region
    $region62: #{model_forward.1} parent=1 // pred_check
      _
    $region63: #{model_forward.1} parent=1 // pred_check_branch
      %77 = sbr.rel (0) target = $region65
    $region64: #{model_forward.1} parent=1 // pred_region
      %79 = dma.done [#allocation4], 4096
    $region65: #{model_forward.1} parent=1 // pred_fallthru
      _
    // Predicated region
    $region66: #{model_forward.1} parent=1 // pred_check
      _
    $region67: #{model_forward.1} parent=1 // pred_check_branch
      %81 = sbr.rel (0) target = $region69
    $region68: #{model_forward.1} parent=1 // pred_region
      %83 = dma.done [#allocation6], 8192
    $region69: #{model_forward.1} parent=1 // pred_fallthru
      _
    %v85 = vld [vmem:[%s0] sm:$0xff]
    %v86 = vld [vmem:[%s0 + $0x8] sm:$0xff]
    %v87 = vld [vmem:[%s2] sm:$0xff]
    %v88 = vld [vmem:[%s2 + $0x8] sm:$0xff]
    %v89 = vld [vmem:[%s3] sm:$0xf]
    %v91 = vperm.slane %v89, 0
    %v92 = vperm.slane %v89, 1
    %v93 = vperm.slane %v89, 2
    %v94 = vperm.slane %v89, 3
    %101 = vst [vmem:[#allocation1] ss:$2 sm:$0xff] %v87
    %s102 = scalar_lea.vmem [#allocation1], 16
    %103 = vst [vmem:[%s102] ss:$2 sm:$0xff] %v88
    %v104 = vld.sshfl [vmem:[#allocation1] sm:$0xff pattern:$0x75316420]
    %v105 = vld.sshfl [vmem:[#allocation1 + $0x8] sm:$0xff pattern:$0x75316420]
    %v106 = vld.sshfl [vmem:[#allocation1 + $0x10] sm:$0xff pattern:$0x75316420]
    %v107 = vld.sshfl [vmem:[#allocation1 + $0x18] sm:$0xff pattern:$0x75316420]
    %vm108 = vcmask 31744
    %v110 = vsel %vm108, %v85, 0
    %v113 = vsel %vm108, %v86, 0
    %vm115 = vcmask 1043456
    %v116 = vsel %vm115, %v104, 0
    %v118 = vsel %vm115, %v105, 0
    %v120 = vsel %vm115, %v106, 0
    %v122 = vsel %vm115, %v107, 0
    %124 = vmatpush.msra.mxu0 0.0
    %125 = vmatpush.msra.mxu0 0.0
    %126 = vmatpush.msra.mxu0 0.0
    %127 = vmatpush.msra.mxu0 0.0
    %128 = vmatpush.msra.mxu0 0.0
    %129 = vmatpush.msra.mxu0 0.0
    %130 = vmatpush.msra.mxu0 0.0
    %131 = vmatpush.msra.mxu0 0.0
    %132 = vmatpush.msra.mxu0 0.0
    %133 = vmatpush.msra.mxu0 0.0
    %134 = vmatpush.msra.mxu0 0.0
    %135 = vmatpush.msra.mxu0 0.0
    %136 = vmatpush.msra.mxu0 0.0
    %137 = vmatpush.msra.mxu0 0.0
    %138 = vmatpush.msra.mxu0 0.0
    %139 = vmatpush.msra.mxu0 %v116
    %140 = vmatmul.f32.gmra.mxu0 %v110
    %v141 = vpop.f32.mrf.mxu0
    %v142 = vadd.f32 %v91, %v141
    %143 = vmatmul.f32.gmra.mxu0 %v113
    %v144 = vpop.f32.mrf.mxu0
    %v145 = vadd.f32 %v91, %v144
    %146 = vdwg.mxu0
    %147 = vmatpush.msra.mxu0 0.0
    %148 = vmatpush.msra.mxu0 0.0
    %149 = vmatpush.msra.mxu0 0.0
    %150 = vmatpush.msra.mxu0 0.0
    %151 = vmatpush.msra.mxu0 0.0
    %152 = vmatpush.msra.mxu0 0.0
    %153 = vmatpush.msra.mxu0 0.0
    %154 = vmatpush.msra.mxu0 0.0
    %155 = vmatpush.msra.mxu0 0.0
    %156 = vmatpush.msra.mxu0 0.0
    %157 = vmatpush.msra.mxu0 0.0
    %158 = vmatpush.msra.mxu0 0.0
    %159 = vmatpush.msra.mxu0 0.0
    %160 = vmatpush.msra.mxu0 0.0
    %161 = vmatpush.msra.mxu0 0.0
    %162 = vmatpush.msra.mxu0 %v118
    %163 = vmatmul.f32.gmra.mxu0 %v110
    %v164 = vpop.f32.mrf.mxu0
    %v165 = vadd.f32 %v92, %v164
    %166 = vmatmul.f32.gmra.mxu0 %v113
    %v167 = vpop.f32.mrf.mxu0
    %v168 = vadd.f32 %v92, %v167
    %169 = vdwg.mxu0
    %170 = vmatpush.msra.mxu0 0.0
    %171 = vmatpush.msra.mxu0 0.0
    %172 = vmatpush.msra.mxu0 0.0
    %173 = vmatpush.msra.mxu0 0.0
    %174 = vmatpush.msra.mxu0 0.0
    %175 = vmatpush.msra.mxu0 0.0
    %176 = vmatpush.msra.mxu0 0.0
    %177 = vmatpush.msra.mxu0 0.0
    %178 = vmatpush.msra.mxu0 0.0
    %179 = vmatpush.msra.mxu0 0.0
    %180 = vmatpush.msra.mxu0 0.0
    %181 = vmatpush.msra.mxu0 0.0
    %182 = vmatpush.msra.mxu0 0.0
    %183 = vmatpush.msra.mxu0 0.0
    %184 = vmatpush.msra.mxu0 0.0
    %185 = vmatpush.msra.mxu0 %v120
    %186 = vmatmul.f32.gmra.mxu0 %v110
    %v187 = vpop.f32.mrf.mxu0
    %v188 = vadd.f32 %v93, %v187
    %189 = vmatmul.f32.gmra.mxu0 %v113
    %v190 = vpop.f32.mrf.mxu0
    %v191 = vadd.f32 %v93, %v190
    %192 = vdwg.mxu0
    %193 = vmatpush.msra.mxu0 0.0
    %194 = vmatpush.msra.mxu0 0.0
    %195 = vmatpush.msra.mxu0 0.0
    %196 = vmatpush.msra.mxu0 0.0
    %197 = vmatpush.msra.mxu0 0.0
    %198 = vmatpush.msra.mxu0 0.0
    %199 = vmatpush.msra.mxu0 0.0
    %200 = vmatpush.msra.mxu0 0.0
    %201 = vmatpush.msra.mxu0 0.0
    %202 = vmatpush.msra.mxu0 0.0
    %203 = vmatpush.msra.mxu0 0.0
    %204 = vmatpush.msra.mxu0 0.0
    %205 = vmatpush.msra.mxu0 0.0
    %206 = vmatpush.msra.mxu0 0.0
    %207 = vmatpush.msra.mxu0 0.0
    %208 = vmatpush.msra.mxu0 %v122
    %209 = vmatmul.f32.gmra.mxu0 %v110
    %v210 = vpop.f32.mrf.mxu0
    %v211 = vadd.f32 %v94, %v210
    %212 = vmatmul.f32.gmra.mxu0 %v113
    %v213 = vpop.f32.mrf.mxu0
    %v214 = vadd.f32 %v94, %v213
    %215 = vdwg.mxu0
    %v216 = vld [vmem:[%s6] sm:$0xf]
    %v217 = vld [vmem:[#allocation3] sm:$0xff]
    %v218 = vld [vmem:[#allocation3 + $0x8] sm:$0xff]
    %v219 = vld [vmem:[#allocation3 + $0x10] sm:$0xff]
    %v220 = vld [vmem:[#allocation3 + $0x18] sm:$0xff]
    %v221 = vld [vmem:[#allocation3 + $0x20] sm:$0xff]
    %v222 = vld [vmem:[#allocation3 + $0x28] sm:$0xff]
    %v223 = vld [vmem:[#allocation3 + $0x30] sm:$0xff]
    %v224 = vld [vmem:[#allocation3 + $0x38] sm:$0xff]
    %v225 = vld [vmem:[#allocation3 + $0x40] sm:$0xff]
    %v226 = vld [vmem:[#allocation3 + $0x48] sm:$0xff]
    %v227 = vld [vmem:[#allocation3 + $0x50] sm:$0xff]
    %v228 = vld [vmem:[#allocation3 + $0x58] sm:$0xff]
    %v229 = vld [vmem:[#allocation3 + $0x60] sm:$0xff]
    %v230 = vld [vmem:[#allocation3 + $0x68] sm:$0xff]
    %v231 = vld [vmem:[#allocation3 + $0x70] sm:$0xff]
    %v232 = vld [vmem:[#allocation3 + $0x78] sm:$0xff]
    %v233 = vld [vmem:[#allocation3 + $0x80] sm:$0xff]
    %v234 = vld [vmem:[#allocation3 + $0x88] sm:$0xff]
    %v235 = vld [vmem:[#allocation3 + $0x90] sm:$0xff]
    %v236 = vld [vmem:[#allocation3 + $0x98] sm:$0xff]
    %v237 = vld [vmem:[#allocation3 + $0xa0] sm:$0xff]
    %v238 = vld [vmem:[#allocation3 + $0xa8] sm:$0xff]
    %v239 = vld [vmem:[#allocation3 + $0xb0] sm:$0xff]
    %v240 = vld [vmem:[#allocation3 + $0xb8] sm:$0xff]
    %v241 = vld [vmem:[#allocation3 + $0xc0] sm:$0xff]
    %v242 = vld [vmem:[#allocation3 + $0xc8] sm:$0xff]
    %v243 = vld [vmem:[#allocation3 + $0xd0] sm:$0xff]
    %v244 = vld [vmem:[#allocation3 + $0xd8] sm:$0xff]
    %v245 = vld [vmem:[#allocation3 + $0xe0] sm:$0xff]
    %v246 = vld [vmem:[#allocation3 + $0xe8] sm:$0xff]
    %v247 = vld [vmem:[#allocation3 + $0xf0] sm:$0xff]
    %v248 = vld [vmem:[#allocation3 + $0xf8] sm:$0xff]
    %v281 = vunpack.c.l.b16 %v217
    %v282 = vunpack.c.h.b16 %v217
    %v283 = vunpack.c.l.b16 %v218
    %v284 = vunpack.c.h.b16 %v218
    %v285 = vunpack.c.l.b16 %v219
    %v286 = vunpack.c.h.b16 %v219
    %v287 = vunpack.c.l.b16 %v220
    %v288 = vunpack.c.h.b16 %v220
    %v289 = vunpack.c.l.b16 %v221
    %v290 = vunpack.c.h.b16 %v221
    %v291 = vunpack.c.l.b16 %v222
    %v292 = vunpack.c.h.b16 %v222
    %v293 = vunpack.c.l.b16 %v223
    %v294 = vunpack.c.h.b16 %v223
    %v295 = vunpack.c.l.b16 %v224
    %v296 = vunpack.c.h.b16 %v224
    %v297 = vunpack.c.l.b16 %v225
    %v298 = vunpack.c.h.b16 %v225
    %v299 = vunpack.c.l.b16 %v226
    %v300 = vunpack.c.h.b16 %v226
    %v301 = vunpack.c.l.b16 %v227
    %v302 = vunpack.c.h.b16 %v227
    %v303 = vunpack.c.l.b16 %v228
    %v304 = vunpack.c.h.b16 %v228
    %v305 = vunpack.c.l.b16 %v229
    %v306 = vunpack.c.h.b16 %v229
    %v307 = vunpack.c.l.b16 %v230
    %v308 = vunpack.c.h.b16 %v230
    %v309 = vunpack.c.l.b16 %v231
    %v310 = vunpack.c.h.b16 %v231
    %v311 = vunpack.c.l.b16 %v232
    %v312 = vunpack.c.h.b16 %v232
    %v313 = vunpack.c.l.b16 %v233
    %v314 = vunpack.c.h.b16 %v233
    %v315 = vunpack.c.l.b16 %v234
    %v316 = vunpack.c.h.b16 %v234
    %v317 = vunpack.c.l.b16 %v235
    %v318 = vunpack.c.h.b16 %v235
    %v319 = vunpack.c.l.b16 %v236
    %v320 = vunpack.c.h.b16 %v236
    %v321 = vunpack.c.l.b16 %v237
    %v322 = vunpack.c.h.b16 %v237
    %v323 = vunpack.c.l.b16 %v238
    %v324 = vunpack.c.h.b16 %v238
    %v325 = vunpack.c.l.b16 %v239
    %v326 = vunpack.c.h.b16 %v239
    %v327 = vunpack.c.l.b16 %v240
    %v328 = vunpack.c.h.b16 %v240
    %v329 = vunpack.c.l.b16 %v241
    %v330 = vunpack.c.h.b16 %v241
    %v331 = vunpack.c.l.b16 %v242
    %v332 = vunpack.c.h.b16 %v242
    %v333 = vunpack.c.l.b16 %v243
    %v334 = vunpack.c.h.b16 %v243
    %v335 = vunpack.c.l.b16 %v244
    %v336 = vunpack.c.h.b16 %v244
    %v337 = vunpack.c.l.b16 %v245
    %v338 = vunpack.c.h.b16 %v245
    %v339 = vunpack.c.l.b16 %v246
    %v340 = vunpack.c.h.b16 %v246
    %v341 = vunpack.c.l.b16 %v247
    %v342 = vunpack.c.h.b16 %v247
    %v343 = vunpack.c.l.b16 %v248
    %v344 = vunpack.c.h.b16 %v248
    %v345 = vpack.c.b16 %v285, %v281
    %v346 = vpack.c.b16 %v286, %v282
    %v347 = vpack.c.b16 %v287, %v283
    %v348 = vpack.c.b16 %v288, %v284
    %v349 = vpack.c.b16 %v293, %v289
    %v350 = vpack.c.b16 %v294, %v290
    %v351 = vpack.c.b16 %v295, %v291
    %v352 = vpack.c.b16 %v296, %v292
    %v353 = vpack.c.b16 %v301, %v297
    %v354 = vpack.c.b16 %v302, %v298
    %v355 = vpack.c.b16 %v303, %v299
    %v356 = vpack.c.b16 %v304, %v300
    %v357 = vpack.c.b16 %v309, %v305
    %v358 = vpack.c.b16 %v310, %v306
    %v359 = vpack.c.b16 %v311, %v307
    %v360 = vpack.c.b16 %v312, %v308
    %v361 = vpack.c.b16 %v317, %v313
    %v362 = vpack.c.b16 %v318, %v314
    %v363 = vpack.c.b16 %v319, %v315
    %v364 = vpack.c.b16 %v320, %v316
    %v365 = vpack.c.b16 %v325, %v321
    %v366 = vpack.c.b16 %v326, %v322
    %v367 = vpack.c.b16 %v327, %v323
    %v368 = vpack.c.b16 %v328, %v324
    %v369 = vpack.c.b16 %v333, %v329
    %v370 = vpack.c.b16 %v334, %v330
    %v371 = vpack.c.b16 %v335, %v331
    %v372 = vpack.c.b16 %v336, %v332
    %v373 = vpack.c.b16 %v341, %v337
    %v374 = vpack.c.b16 %v342, %v338
    %v375 = vpack.c.b16 %v343, %v339
    %v376 = vpack.c.b16 %v344, %v340
    %409 = vmatpush.bf16.msra.mxu0 %v373
    %410 = vmatpush.bf16.msra.mxu0 %v369
    %411 = vmatpush.bf16.msra.mxu0 %v365
    %412 = vmatpush.bf16.msra.mxu0 %v361
    %413 = vmatpush.bf16.msra.mxu0 %v357
    %414 = vmatpush.bf16.msra.mxu0 %v353
    %415 = vmatpush.bf16.msra.mxu0 %v349
    %416 = vmatpush.bf16.msra.mxu0 %v345
    %417 = vmatmul.bf16.gmra.mxu0 0
    %v418 = vpop.f32.mrf.mxu0
    %v419 = vadd.f32 0.0, %v418
    %v420 = vpop.f32.mrf.mxu0
    %421 = vdwg.mxu0
    %422 = vmatpush.bf16.msra.mxu0 %v374
    %423 = vmatpush.bf16.msra.mxu0 %v370
    %424 = vmatpush.bf16.msra.mxu0 %v366
    %425 = vmatpush.bf16.msra.mxu0 %v362
    %426 = vmatpush.bf16.msra.mxu0 %v358
    %427 = vmatpush.bf16.msra.mxu0 %v354
    %428 = vmatpush.bf16.msra.mxu0 %v350
    %429 = vmatpush.bf16.msra.mxu0 %v346
    %430 = vmatmul.bf16.gmra.mxu0 0
    %v431 = vpop.f32.mrf.mxu0
    %v432 = vadd.f32 0.0, %v431
    %v433 = vpop.f32.mrf.mxu0
    %434 = vdwg.mxu0
    %435 = vmatpush.bf16.msra.mxu0 %v375
    %436 = vmatpush.bf16.msra.mxu0 %v371
    %437 = vmatpush.bf16.msra.mxu0 %v367
    %438 = vmatpush.bf16.msra.mxu0 %v363
    %439 = vmatpush.bf16.msra.mxu0 %v359
    %440 = vmatpush.bf16.msra.mxu0 %v355
    %441 = vmatpush.bf16.msra.mxu0 %v351
    %442 = vmatpush.bf16.msra.mxu0 %v347
    %443 = vmatmul.bf16.gmra.mxu0 0
    %v444 = vpop.f32.mrf.mxu0
    %v445 = vadd.f32 0.0, %v444
    %v446 = vpop.f32.mrf.mxu0
    %447 = vdwg.mxu0
    %448 = vmatpush.bf16.msra.mxu0 %v376
    %449 = vmatpush.bf16.msra.mxu0 %v372
    %450 = vmatpush.bf16.msra.mxu0 %v368
    %451 = vmatpush.bf16.msra.mxu0 %v364
    %452 = vmatpush.bf16.msra.mxu0 %v360
    %453 = vmatpush.bf16.msra.mxu0 %v356
    %454 = vmatpush.bf16.msra.mxu0 %v352
    %455 = vmatpush.bf16.msra.mxu0 %v348
    %456 = vmatmul.bf16.gmra.mxu0 0
    %v457 = vpop.f32.mrf.mxu0
    %v458 = vadd.f32 0.0, %v457
    %v459 = vpop.f32.mrf.mxu0
    %460 = vdwg.mxu0
    %v461 = vadd.f32 %v142, %v419
    %v462 = vadd.f32 %v165, %v432
    %v463 = vadd.f32 %v188, %v445
    %v464 = vadd.f32 %v211, %v458
    %v465 = vmul.f32 %v461, 0.5
    %v466 = vtanh.pop %v465
    %v467 = vmul.f32 %v466, 0.5
    %v468 = vadd.f32 %v467, 0.5
    %v469 = vmul.f32 %v462, 0.5
    %v470 = vtanh.pop %v469
    %v471 = vmul.f32 %v470, 0.5
    %v472 = vadd.f32 %v471, 0.5
    %v473 = vtanh.pop %v463
    %v474 = vmul.f32 %v464, 0.5
    %v475 = vtanh.pop %v474
    %v476 = vmul.f32 %v475, 0.5
    %v477 = vadd.f32 %v476, 0.5
    %v478 = vmul.f32 %v472, 0.0
    %v479 = vmul.f32 %v468, %v473
    %v480 = vadd.f32 %v478, %v479
    %v481 = vtanh.pop %v480
    %v482 = vmul.f32 %v477, %v481
    %v483 = vpack.c.bf16 %v482, %v482
    %v484 = vpack.c.bf16 0.0, 0.0
    %v485 = vld [vmem:[#allocation5] sm:$0xff]
    %v486 = vld [vmem:[#allocation5 + $0x8] sm:$0xff]
    %v487 = vld [vmem:[#allocation5 + $0x10] sm:$0xff]
    %v488 = vld [vmem:[#allocation5 + $0x18] sm:$0xff]
    %v489 = vld [vmem:[#allocation5 + $0x20] sm:$0xff]
    %v490 = vld [vmem:[#allocation5 + $0x28] sm:$0xff]
    %v491 = vld [vmem:[#allocation5 + $0x30] sm:$0xff]
    %v492 = vld [vmem:[#allocation5 + $0x38] sm:$0xff]
    %v493 = vld [vmem:[#allocation5 + $0x40] sm:$0xff]
    %v494 = vld [vmem:[#allocation5 + $0x48] sm:$0xff]
    %v495 = vld [vmem:[#allocation5 + $0x50] sm:$0xff]
    %v496 = vld [vmem:[#allocation5 + $0x58] sm:$0xff]
    %v497 = vld [vmem:[#allocation5 + $0x60] sm:$0xff]
    %v498 = vld [vmem:[#allocation5 + $0x68] sm:$0xff]
    %v499 = vld [vmem:[#allocation5 + $0x70] sm:$0xff]
    %v500 = vld [vmem:[#allocation5 + $0x78] sm:$0xff]
    %v501 = vld [vmem:[#allocation5 + $0x80] sm:$0xff]
    %v502 = vld [vmem:[#allocation5 + $0x88] sm:$0xff]
    %v503 = vld [vmem:[#allocation5 + $0x90] sm:$0xff]
    %v504 = vld [vmem:[#allocation5 + $0x98] sm:$0xff]
    %v505 = vld [vmem:[#allocation5 + $0xa0] sm:$0xff]
    %v506 = vld [vmem:[#allocation5 + $0xa8] sm:$0xff]
    %v507 = vld [vmem:[#allocation5 + $0xb0] sm:$0xff]
    %v508 = vld [vmem:[#allocation5 + $0xb8] sm:$0xff]
    %v509 = vld [vmem:[#allocation5 + $0xc0] sm:$0xff]
    %v510 = vld [vmem:[#allocation5 + $0xc8] sm:$0xff]
    %v511 = vld [vmem:[#allocation5 + $0xd0] sm:$0xff]
    %v512 = vld [vmem:[#allocation5 + $0xd8] sm:$0xff]
    %v513 = vld [vmem:[#allocation5 + $0xe0] sm:$0xff]
    %v514 = vld [vmem:[#allocation5 + $0xe8] sm:$0xff]
    %v515 = vld [vmem:[#allocation5 + $0xf0] sm:$0xff]
    %v516 = vld [vmem:[#allocation5 + $0xf8] sm:$0xff]
    %v517 = vld [vmem:[#allocation5 + $0x100] sm:$0xff]
    %v518 = vld [vmem:[#allocation5 + $0x108] sm:$0xff]
    %v519 = vld [vmem:[#allocation5 + $0x110] sm:$0xff]
    %v520 = vld [vmem:[#allocation5 + $0x118] sm:$0xff]
    %v521 = vld [vmem:[#allocation5 + $0x120] sm:$0xff]
    %v522 = vld [vmem:[#allocation5 + $0x128] sm:$0xff]
    %v523 = vld [vmem:[#allocation5 + $0x130] sm:$0xff]
    %v524 = vld [vmem:[#allocation5 + $0x138] sm:$0xff]
    %v525 = vld [vmem:[#allocation5 + $0x140] sm:$0xff]
    %v526 = vld [vmem:[#allocation5 + $0x148] sm:$0xff]
    %v527 = vld [vmem:[#allocation5 + $0x150] sm:$0xff]
    %v528 = vld [vmem:[#allocation5 + $0x158] sm:$0xff]
    %v529 = vld [vmem:[#allocation5 + $0x160] sm:$0xff]
    %v530 = vld [vmem:[#allocation5 + $0x168] sm:$0xff]
    %v531 = vld [vmem:[#allocation5 + $0x170] sm:$0xff]
    %v532 = vld [vmem:[#allocation5 + $0x178] sm:$0xff]
    %v533 = vld [vmem:[#allocation5 + $0x180] sm:$0xff]
    %v534 = vld [vmem:[#allocation5 + $0x188] sm:$0xff]
    %v535 = vld [vmem:[#allocation5 + $0x190] sm:$0xff]
    %v536 = vld [vmem:[#allocation5 + $0x198] sm:$0xff]
    %v537 = vld [vmem:[#allocation5 + $0x1a0] sm:$0xff]
    %v538 = vld [vmem:[#allocation5 + $0x1a8] sm:$0xff]
    %v539 = vld [vmem:[#allocation5 + $0x1b0] sm:$0xff]
    %v540 = vld [vmem:[#allocation5 + $0x1b8] sm:$0xff]
    %v541 = vld [vmem:[#allocation5 + $0x1c0] sm:$0xff]
    %v542 = vld [vmem:[#allocation5 + $0x1c8] sm:$0xff]
    %v543 = vld [vmem:[#allocation5 + $0x1d0] sm:$0xff]
    %v544 = vld [vmem:[#allocation5 + $0x1d8] sm:$0xff]
    %v545 = vld [vmem:[#allocation5 + $0x1e0] sm:$0xff]
    %v546 = vld [vmem:[#allocation5 + $0x1e8] sm:$0xff]
    %v547 = vld [vmem:[#allocation5 + $0x1f0] sm:$0xff]
    %v548 = vld [vmem:[#allocation5 + $0x1f8] sm:$0xff]
    %v550 = vperm.slane %v216, 0
    %v551 = vperm.slane %v216, 1
    %v552 = vperm.slane %v216, 2
    %v553 = vperm.slane %v216, 3
    %v622 = vunpack.c.l.b16 %v485
    %v623 = vunpack.c.h.b16 %v485
    %v624 = vunpack.c.l.b16 %v486
    %v625 = vunpack.c.h.b16 %v486
    %v626 = vunpack.c.l.b16 %v487
    %v627 = vunpack.c.h.b16 %v487
    %v628 = vunpack.c.l.b16 %v488
    %v629 = vunpack.c.h.b16 %v488
    %v630 = vunpack.c.l.b16 %v489
    %v631 = vunpack.c.h.b16 %v489
    %v632 = vunpack.c.l.b16 %v490
    %v633 = vunpack.c.h.b16 %v490
    %v634 = vunpack.c.l.b16 %v491
    %v635 = vunpack.c.h.b16 %v491
    %v636 = vunpack.c.l.b16 %v492
    %v637 = vunpack.c.h.b16 %v492
    %v638 = vunpack.c.l.b16 %v493
    %v639 = vunpack.c.h.b16 %v493
    %v640 = vunpack.c.l.b16 %v494
    %v641 = vunpack.c.h.b16 %v494
    %v642 = vunpack.c.l.b16 %v495
    %v643 = vunpack.c.h.b16 %v495
    %v644 = vunpack.c.l.b16 %v496
    %v645 = vunpack.c.h.b16 %v496
    %v646 = vunpack.c.l.b16 %v497
    %v647 = vunpack.c.h.b16 %v497
    %v648 = vunpack.c.l.b16 %v498
    %v649 = vunpack.c.h.b16 %v498
    %v650 = vunpack.c.l.b16 %v499
    %v651 = vunpack.c.h.b16 %v499
    %v652 = vunpack.c.l.b16 %v500
    %v653 = vunpack.c.h.b16 %v500
    %v654 = vunpack.c.l.b16 %v501
    %v655 = vunpack.c.h.b16 %v501
    %v656 = vunpack.c.l.b16 %v502
    %v657 = vunpack.c.h.b16 %v502
    %v658 = vunpack.c.l.b16 %v503
    %v659 = vunpack.c.h.b16 %v503
    %v660 = vunpack.c.l.b16 %v504
    %v661 = vunpack.c.h.b16 %v504
    %v662 = vunpack.c.l.b16 %v505
    %v663 = vunpack.c.h.b16 %v505
    %v664 = vunpack.c.l.b16 %v506
    %v665 = vunpack.c.h.b16 %v506
    %v666 = vunpack.c.l.b16 %v507
    %v667 = vunpack.c.h.b16 %v507
    %v668 = vunpack.c.l.b16 %v508
    %v669 = vunpack.c.h.b16 %v508
    %v670 = vunpack.c.l.b16 %v509
    %v671 = vunpack.c.h.b16 %v509
    %v672 = vunpack.c.l.b16 %v510
    %v673 = vunpack.c.h.b16 %v510
    %v674 = vunpack.c.l.b16 %v511
    %v675 = vunpack.c.h.b16 %v511
    %v676 = vunpack.c.l.b16 %v512
    %v677 = vunpack.c.h.b16 %v512
    %v678 = vunpack.c.l.b16 %v513
    %v679 = vunpack.c.h.b16 %v513
    %v680 = vunpack.c.l.b16 %v514
    %v681 = vunpack.c.h.b16 %v514
    %v682 = vunpack.c.l.b16 %v515
    %v683 = vunpack.c.h.b16 %v515
    %v684 = vunpack.c.l.b16 %v516
    %v685 = vunpack.c.h.b16 %v516
    %v686 = vunpack.c.l.b16 %v517
    %v687 = vunpack.c.h.b16 %v517
    %v688 = vunpack.c.l.b16 %v518
    %v689 = vunpack.c.h.b16 %v518
    %v690 = vunpack.c.l.b16 %v519
    %v691 = vunpack.c.h.b16 %v519
    %v692 = vunpack.c.l.b16 %v520
    %v693 = vunpack.c.h.b16 %v520
    %v694 = vunpack.c.l.b16 %v521
    %v695 = vunpack.c.h.b16 %v521
    %v696 = vunpack.c.l.b16 %v522
    %v697 = vunpack.c.h.b16 %v522
    %v698 = vunpack.c.l.b16 %v523
    %v699 = vunpack.c.h.b16 %v523
    %v700 = vunpack.c.l.b16 %v524
    %v701 = vunpack.c.h.b16 %v524
    %v702 = vunpack.c.l.b16 %v525
    %v703 = vunpack.c.h.b16 %v525
    %v704 = vunpack.c.l.b16 %v526
    %v705 = vunpack.c.h.b16 %v526
    %v706 = vunpack.c.l.b16 %v527
    %v707 = vunpack.c.h.b16 %v527
    %v708 = vunpack.c.l.b16 %v528
    %v709 = vunpack.c.h.b16 %v528
    %v710 = vunpack.c.l.b16 %v529
    %v711 = vunpack.c.h.b16 %v529
    %v712 = vunpack.c.l.b16 %v530
    %v713 = vunpack.c.h.b16 %v530
    %v714 = vunpack.c.l.b16 %v531
    %v715 = vunpack.c.h.b16 %v531
    %v716 = vunpack.c.l.b16 %v532
    %v717 = vunpack.c.h.b16 %v532
    %v718 = vunpack.c.l.b16 %v533
    %v719 = vunpack.c.h.b16 %v533
    %v720 = vunpack.c.l.b16 %v534
    %v721 = vunpack.c.h.b16 %v534
    %v722 = vunpack.c.l.b16 %v535
    %v723 = vunpack.c.h.b16 %v535
    %v724 = vunpack.c.l.b16 %v536
    %v725 = vunpack.c.h.b16 %v536
    %v726 = vunpack.c.l.b16 %v537
    %v727 = vunpack.c.h.b16 %v537
    %v728 = vunpack.c.l.b16 %v538
    %v729 = vunpack.c.h.b16 %v538
    %v730 = vunpack.c.l.b16 %v539
    %v731 = vunpack.c.h.b16 %v539
    %v732 = vunpack.c.l.b16 %v540
    %v733 = vunpack.c.h.b16 %v540
    %v734 = vunpack.c.l.b16 %v541
    %v735 = vunpack.c.h.b16 %v541
    %v736 = vunpack.c.l.b16 %v542
    %v737 = vunpack.c.h.b16 %v542
    %v738 = vunpack.c.l.b16 %v543
    %v739 = vunpack.c.h.b16 %v543
    %v740 = vunpack.c.l.b16 %v544
    %v741 = vunpack.c.h.b16 %v544
    %v742 = vunpack.c.l.b16 %v545
    %v743 = vunpack.c.h.b16 %v545
    %v744 = vunpack.c.l.b16 %v546
    %v745 = vunpack.c.h.b16 %v546
    %v746 = vunpack.c.l.b16 %v547
    %v747 = vunpack.c.h.b16 %v547
    %v748 = vunpack.c.l.b16 %v548
    %v749 = vunpack.c.h.b16 %v548
    %v750 = vpack.c.b16 %v626, %v622
    %v751 = vpack.c.b16 %v627, %v623
    %v752 = vpack.c.b16 %v628, %v624
    %v753 = vpack.c.b16 %v629, %v625
    %v754 = vpack.c.b16 %v634, %v630
    %v755 = vpack.c.b16 %v635, %v631
    %v756 = vpack.c.b16 %v636, %v632
    %v757 = vpack.c.b16 %v637, %v633
    %v758 = vpack.c.b16 %v642, %v638
    %v759 = vpack.c.b16 %v643, %v639
    %v760 = vpack.c.b16 %v644, %v640
    %v761 = vpack.c.b16 %v645, %v641
    %v762 = vpack.c.b16 %v650, %v646
    %v763 = vpack.c.b16 %v651, %v647
    %v764 = vpack.c.b16 %v652, %v648
    %v765 = vpack.c.b16 %v653, %v649
    %v766 = vpack.c.b16 %v658, %v654
    %v767 = vpack.c.b16 %v659, %v655
    %v768 = vpack.c.b16 %v660, %v656
    %v769 = vpack.c.b16 %v661, %v657
    %v770 = vpack.c.b16 %v666, %v662
    %v771 = vpack.c.b16 %v667, %v663
    %v772 = vpack.c.b16 %v668, %v664
    %v773 = vpack.c.b16 %v669, %v665
    %v774 = vpack.c.b16 %v674, %v670
    %v775 = vpack.c.b16 %v675, %v671
    %v776 = vpack.c.b16 %v676, %v672
    %v777 = vpack.c.b16 %v677, %v673
    %v778 = vpack.c.b16 %v682, %v678
    %v779 = vpack.c.b16 %v683, %v679
    %v780 = vpack.c.b16 %v684, %v680
    %v781 = vpack.c.b16 %v685, %v681
    %v782 = vpack.c.b16 %v690, %v686
    %v783 = vpack.c.b16 %v691, %v687
    %v784 = vpack.c.b16 %v692, %v688
    %v785 = vpack.c.b16 %v693, %v689
    %v786 = vpack.c.b16 %v698, %v694
    %v787 = vpack.c.b16 %v699, %v695
    %v788 = vpack.c.b16 %v700, %v696
    %v789 = vpack.c.b16 %v701, %v697
    %v790 = vpack.c.b16 %v706, %v702
    %v791 = vpack.c.b16 %v707, %v703
    %v792 = vpack.c.b16 %v708, %v704
    %v793 = vpack.c.b16 %v709, %v705
    %v794 = vpack.c.b16 %v714, %v710
    %v795 = vpack.c.b16 %v715, %v711
    %v796 = vpack.c.b16 %v716, %v712
    %v797 = vpack.c.b16 %v717, %v713
    %v798 = vpack.c.b16 %v722, %v718
    %v799 = vpack.c.b16 %v723, %v719
    %v800 = vpack.c.b16 %v724, %v720
    %v801 = vpack.c.b16 %v725, %v721
    %v802 = vpack.c.b16 %v730, %v726
    %v803 = vpack.c.b16 %v731, %v727
    %v804 = vpack.c.b16 %v732, %v728
    %v805 = vpack.c.b16 %v733, %v729
    %v806 = vpack.c.b16 %v738, %v734
    %v807 = vpack.c.b16 %v739, %v735
    %v808 = vpack.c.b16 %v740, %v736
    %v809 = vpack.c.b16 %v741, %v737
    %v810 = vpack.c.b16 %v746, %v742
    %v811 = vpack.c.b16 %v747, %v743
    %v812 = vpack.c.b16 %v748, %v744
    %v813 = vpack.c.b16 %v749, %v745
    %878 = vmatpush.bf16.msra.mxu0 %v778
    %879 = vmatpush.bf16.msra.mxu0 %v774
    %880 = vmatpush.bf16.msra.mxu0 %v770
    %881 = vmatpush.bf16.msra.mxu0 %v766
    %882 = vmatpush.bf16.msra.mxu0 %v762
    %883 = vmatpush.bf16.msra.mxu0 %v758
    %884 = vmatpush.bf16.msra.mxu0 %v754
    %885 = vmatpush.bf16.msra.mxu0 %v750
    %886 = vmatmul.bf16.gmra.mxu0 %v483
    %v887 = vpop.f32.mrf.mxu0
    %v888 = vadd.f32 %v550, %v887
    %v889 = vpop.f32.mrf.mxu0
    %890 = vdwg.mxu0
    %891 = vmatpush.bf16.msra.mxu0 %v810
    %892 = vmatpush.bf16.msra.mxu0 %v806
    %893 = vmatpush.bf16.msra.mxu0 %v802
    %894 = vmatpush.bf16.msra.mxu0 %v798
    %895 = vmatpush.bf16.msra.mxu0 %v794
    %896 = vmatpush.bf16.msra.mxu0 %v790
    %897 = vmatpush.bf16.msra.mxu0 %v786
    %898 = vmatpush.bf16.msra.mxu0 %v782
    %899 = vmatmul.bf16.gmra.mxu0 %v484
    %v900 = vpop.f32.mrf.mxu0
    %v901 = vadd.f32 %v888, %v900
    %v902 = vpop.f32.mrf.mxu0
    %903 = vdwg.mxu0
    %904 = vmatpush.bf16.msra.mxu0 %v779
    %905 = vmatpush.bf16.msra.mxu0 %v775
    %906 = vmatpush.bf16.msra.mxu0 %v771
    %907 = vmatpush.bf16.msra.mxu0 %v767
    %908 = vmatpush.bf16.msra.mxu0 %v763
    %909 = vmatpush.bf16.msra.mxu0 %v759
    %910 = vmatpush.bf16.msra.mxu0 %v755
    %911 = vmatpush.bf16.msra.mxu0 %v751
    %912 = vmatmul.bf16.gmra.mxu0 %v483
    %v913 = vpop.f32.mrf.mxu0
    %v914 = vadd.f32 %v551, %v913
    %v915 = vpop.f32.mrf.mxu0
    %916 = vdwg.mxu0
    %917 = vmatpush.bf16.msra.mxu0 %v811
    %918 = vmatpush.bf16.msra.mxu0 %v807
    %919 = vmatpush.bf16.msra.mxu0 %v803
    %920 = vmatpush.bf16.msra.mxu0 %v799
    %921 = vmatpush.bf16.msra.mxu0 %v795
    %922 = vmatpush.bf16.msra.mxu0 %v791
    %923 = vmatpush.bf16.msra.mxu0 %v787
    %924 = vmatpush.bf16.msra.mxu0 %v783
    %925 = vmatmul.bf16.gmra.mxu0 %v484
    %v926 = vpop.f32.mrf.mxu0
    %v927 = vadd.f32 %v914, %v926
    %v928 = vpop.f32.mrf.mxu0
    %929 = vdwg.mxu0
    %930 = vmatpush.bf16.msra.mxu0 %v780
    %931 = vmatpush.bf16.msra.mxu0 %v776
    %932 = vmatpush.bf16.msra.mxu0 %v772
    %933 = vmatpush.bf16.msra.mxu0 %v768
    %934 = vmatpush.bf16.msra.mxu0 %v764
    %935 = vmatpush.bf16.msra.mxu0 %v760
    %936 = vmatpush.bf16.msra.mxu0 %v756
    %937 = vmatpush.bf16.msra.mxu0 %v752
    %938 = vmatmul.bf16.gmra.mxu0 %v483
    %v939 = vpop.f32.mrf.mxu0
    %v940 = vadd.f32 %v552, %v939
    %v941 = vpop.f32.mrf.mxu0
    %942 = vdwg.mxu0
    %943 = vmatpush.bf16.msra.mxu0 %v812
    %944 = vmatpush.bf16.msra.mxu0 %v808
    %945 = vmatpush.bf16.msra.mxu0 %v804
    %946 = vmatpush.bf16.msra.mxu0 %v800
    %947 = vmatpush.bf16.msra.mxu0 %v796
    %948 = vmatpush.bf16.msra.mxu0 %v792
    %949 = vmatpush.bf16.msra.mxu0 %v788
    %950 = vmatpush.bf16.msra.mxu0 %v784
    %951 = vmatmul.bf16.gmra.mxu0 %v484
    %v952 = vpop.f32.mrf.mxu0
    %v953 = vadd.f32 %v940, %v952
    %v954 = vpop.f32.mrf.mxu0
    %955 = vdwg.mxu0
    %956 = vmatpush.bf16.msra.mxu0 %v781
    %957 = vmatpush.bf16.msra.mxu0 %v777
    %958 = vmatpush.bf16.msra.mxu0 %v773
    %959 = vmatpush.bf16.msra.mxu0 %v769
    %960 = vmatpush.bf16.msra.mxu0 %v765
    %961 = vmatpush.bf16.msra.mxu0 %v761
    %962 = vmatpush.bf16.msra.mxu0 %v757
    %963 = vmatpush.bf16.msra.mxu0 %v753
    %964 = vmatmul.bf16.gmra.mxu0 %v483
    %v965 = vpop.f32.mrf.mxu0
    %v966 = vadd.f32 %v553, %v965
    %v967 = vpop.f32.mrf.mxu0
    %968 = vdwg.mxu0
    %969 = vmatpush.bf16.msra.mxu0 %v813
    %970 = vmatpush.bf16.msra.mxu0 %v809
    %971 = vmatpush.bf16.msra.mxu0 %v805
    %972 = vmatpush.bf16.msra.mxu0 %v801
    %973 = vmatpush.bf16.msra.mxu0 %v797
    %974 = vmatpush.bf16.msra.mxu0 %v793
    %975 = vmatpush.bf16.msra.mxu0 %v789
    %976 = vmatpush.bf16.msra.mxu0 %v785
    %977 = vmatmul.bf16.gmra.mxu0 %v484
    %v978 = vpop.f32.mrf.mxu0
    %v979 = vadd.f32 %v966, %v978
    %v980 = vpop.f32.mrf.mxu0
    %981 = vdwg.mxu0
    %v982 = vmul.f32 %v901, 0.5
    %v983 = vtanh.pop %v982
    %v984 = vmul.f32 %v983, 0.5
    %v985 = vadd.f32 %v984, 0.5
    %v986 = vmul.f32 %v927, 0.5
    %v987 = vtanh.pop %v986
    %v988 = vmul.f32 %v987, 0.5
    %v989 = vadd.f32 %v988, 0.5
    %v990 = vtanh.pop %v953
    %v991 = vmul.f32 %v979, 0.5
    %v992 = vtanh.pop %v991
    %v993 = vmul.f32 %v992, 0.5
    %v994 = vadd.f32 %v993, 0.5
    %v995 = vmul.f32 %v989, 0.0
    %v996 = vmul.f32 %v985, %v990
    %v997 = vadd.f32 %v995, %v996
    %v998 = vtanh.pop %v997
    %v999 = vmul.f32 %v994, %v998
    %1000 = vmatpush.bf16.msra.mxu0 %v373
    %1001 = vmatpush.bf16.msra.mxu0 %v369
    %1002 = vmatpush.bf16.msra.mxu0 %v365
    %1003 = vmatpush.bf16.msra.mxu0 %v361
    %1004 = vmatpush.bf16.msra.mxu0 %v357
    %1005 = vmatpush.bf16.msra.mxu0 %v353
    %1006 = vmatpush.bf16.msra.mxu0 %v349
    %1007 = vmatpush.bf16.msra.mxu0 %v345
    %1008 = vmatmul.bf16.gmra.mxu0 %v483
    %v1009 = vpop.f32.mrf.mxu0
    %v1010 = vadd.f32 0.0, %v1009
    %v1011 = vpop.f32.mrf.mxu0
    %1012 = vdwg.mxu0
    %1013 = vmatpush.bf16.msra.mxu0 %v374
    %1014 = vmatpush.bf16.msra.mxu0 %v370
    %1015 = vmatpush.bf16.msra.mxu0 %v366
    %1016 = vmatpush.bf16.msra.mxu0 %v362
    %1017 = vmatpush.bf16.msra.mxu0 %v358
    %1018 = vmatpush.bf16.msra.mxu0 %v354
    %1019 = vmatpush.bf16.msra.mxu0 %v350
    %1020 = vmatpush.bf16.msra.mxu0 %v346
    %1021 = vmatmul.bf16.gmra.mxu0 %v483
    %v1022 = vpop.f32.mrf.mxu0
    %v1023 = vadd.f32 0.0, %v1022
    %v1024 = vpop.f32.mrf.mxu0
    %1025 = vdwg.mxu0
    %1026 = vmatpush.bf16.msra.mxu0 %v375
    %1027 = vmatpush.bf16.msra.mxu0 %v371
    %1028 = vmatpush.bf16.msra.mxu0 %v367
    %1029 = vmatpush.bf16.msra.mxu0 %v363
    %1030 = vmatpush.bf16.msra.mxu0 %v359
    %1031 = vmatpush.bf16.msra.mxu0 %v355
    %1032 = vmatpush.bf16.msra.mxu0 %v351
    %1033 = vmatpush.bf16.msra.mxu0 %v347
    %1034 = vmatmul.bf16.gmra.mxu0 %v483
    %v1035 = vpop.f32.mrf.mxu0
    %v1036 = vadd.f32 0.0, %v1035
    %v1037 = vpop.f32.mrf.mxu0
    %1038 = vdwg.mxu0
    %1039 = vmatpush.bf16.msra.mxu0 %v376
    %1040 = vmatpush.bf16.msra.mxu0 %v372
    %1041 = vmatpush.bf16.msra.mxu0 %v368
    %1042 = vmatpush.bf16.msra.mxu0 %v364
    %1043 = vmatpush.bf16.msra.mxu0 %v360
    %1044 = vmatpush.bf16.msra.mxu0 %v356
    %1045 = vmatpush.bf16.msra.mxu0 %v352
    %1046 = vmatpush.bf16.msra.mxu0 %v348
    %1047 = vmatmul.bf16.gmra.mxu0 %v483
    %v1048 = vpop.f32.mrf.mxu0
    %v1049 = vadd.f32 0.0, %v1048
    %v1050 = vpop.f32.mrf.mxu0
    %1051 = vdwg.mxu0
    %v1056 = vrot.slane %v1010, 6
    %v1057 = vrot.slane %v1023, 6
    %v1058 = vrot.slane %v1036, 6
    %v1059 = vrot.slane %v1049, 6
    %v1064 = vadd.f32 %v142, %v1056
    %v1065 = vadd.f32 %v165, %v1057
    %v1066 = vadd.f32 %v188, %v1058
    %v1067 = vadd.f32 %v211, %v1059
    %v1068 = vmul.f32 %v1064, 0.5
    %v1069 = vtanh.pop %v1068
    %v1070 = vmul.f32 %v1069, 0.5
    %v1071 = vadd.f32 %v1070, 0.5
    %v1072 = vmul.f32 %v1065, 0.5
    %v1073 = vtanh.pop %v1072
    %v1074 = vmul.f32 %v1073, 0.5
    %v1075 = vadd.f32 %v1074, 0.5
    %v1076 = vtanh.pop %v1066
    %v1077 = vmul.f32 %v1067, 0.5
    %v1078 = vtanh.pop %v1077
    %v1079 = vmul.f32 %v1078, 0.5
    %v1080 = vadd.f32 %v1079, 0.5
    %v1082 = vrot.slane %v480, 6
    %v1084 = vmul.f32 %v1075, %v1082
    %v1085 = vmul.f32 %v1071, %v1076
    %v1086 = vadd.f32 %v1084, %v1085
    %v1087 = vtanh.pop %v1086
    %v1088 = vmul.f32 %v1080, %v1087
    %v1090 = vrot.slane %v999, 6
    %v1092 = vpack.c.bf16 %v1088, %v1088
    %v1093 = vpack.c.bf16 %v1090, %v1090
    %v1096 = vrot.slane %v1092, 1
    %v1097 = vrot.slane %v1093, 1
    %1100 = vmatpush.bf16.msra.mxu0 %v778
    %1101 = vmatpush.bf16.msra.mxu0 %v774
    %1102 = vmatpush.bf16.msra.mxu0 %v770
    %1103 = vmatpush.bf16.msra.mxu0 %v766
    %1104 = vmatpush.bf16.msra.mxu0 %v762
    %1105 = vmatpush.bf16.msra.mxu0 %v758
    %1106 = vmatpush.bf16.msra.mxu0 %v754
    %1107 = vmatpush.bf16.msra.mxu0 %v750
    %1108 = vmatmul.bf16.gmra.mxu0 %v1096
    %v1109 = vpop.f32.mrf.mxu0
    %v1110 = vadd.f32 %v550, %v1109
    %v1111 = vpop.f32.mrf.mxu0
    %1112 = vdwg.mxu0
    %1113 = vmatpush.bf16.msra.mxu0 %v810
    %1114 = vmatpush.bf16.msra.mxu0 %v806
    %1115 = vmatpush.bf16.msra.mxu0 %v802
    %1116 = vmatpush.bf16.msra.mxu0 %v798
    %1117 = vmatpush.bf16.msra.mxu0 %v794
    %1118 = vmatpush.bf16.msra.mxu0 %v790
    %1119 = vmatpush.bf16.msra.mxu0 %v786
    %1120 = vmatpush.bf16.msra.mxu0 %v782
    %1121 = vmatmul.bf16.gmra.mxu0 %v1097
    %v1122 = vpop.f32.mrf.mxu0
    %v1123 = vadd.f32 %v1110, %v1122
    %v1124 = vpop.f32.mrf.mxu0
    %1125 = vdwg.mxu0
    %1126 = vmatpush.bf16.msra.mxu0 %v779
    %1127 = vmatpush.bf16.msra.mxu0 %v775
    %1128 = vmatpush.bf16.msra.mxu0 %v771
    %1129 = vmatpush.bf16.msra.mxu0 %v767
    %1130 = vmatpush.bf16.msra.mxu0 %v763
    %1131 = vmatpush.bf16.msra.mxu0 %v759
    %1132 = vmatpush.bf16.msra.mxu0 %v755
    %1133 = vmatpush.bf16.msra.mxu0 %v751
    %1134 = vmatmul.bf16.gmra.mxu0 %v1096
    %v1135 = vpop.f32.mrf.mxu0
    %v1136 = vadd.f32 %v551, %v1135
    %v1137 = vpop.f32.mrf.mxu0
    %1138 = vdwg.mxu0
    %1139 = vmatpush.bf16.msra.mxu0 %v811
    %1140 = vmatpush.bf16.msra.mxu0 %v807
    %1141 = vmatpush.bf16.msra.mxu0 %v803
    %1142 = vmatpush.bf16.msra.mxu0 %v799
    %1143 = vmatpush.bf16.msra.mxu0 %v795
    %1144 = vmatpush.bf16.msra.mxu0 %v791
    %1145 = vmatpush.bf16.msra.mxu0 %v787
    %1146 = vmatpush.bf16.msra.mxu0 %v783
    %1147 = vmatmul.bf16.gmra.mxu0 %v1097
    %v1148 = vpop.f32.mrf.mxu0
    %v1149 = vadd.f32 %v1136, %v1148
    %v1150 = vpop.f32.mrf.mxu0
    %1151 = vdwg.mxu0
    %1152 = vmatpush.bf16.msra.mxu0 %v780
    %1153 = vmatpush.bf16.msra.mxu0 %v776
    %1154 = vmatpush.bf16.msra.mxu0 %v772
    %1155 = vmatpush.bf16.msra.mxu0 %v768
    %1156 = vmatpush.bf16.msra.mxu0 %v764
    %1157 = vmatpush.bf16.msra.mxu0 %v760
    %1158 = vmatpush.bf16.msra.mxu0 %v756
    %1159 = vmatpush.bf16.msra.mxu0 %v752
    %1160 = vmatmul.bf16.gmra.mxu0 %v1096
    %v1161 = vpop.f32.mrf.mxu0
    %v1162 = vadd.f32 %v552, %v1161
    %v1163 = vpop.f32.mrf.mxu0
    %1164 = vdwg.mxu0
    %1165 = vmatpush.bf16.msra.mxu0 %v812
    %1166 = vmatpush.bf16.msra.mxu0 %v808
    %1167 = vmatpush.bf16.msra.mxu0 %v804
    %1168 = vmatpush.bf16.msra.mxu0 %v800
    %1169 = vmatpush.bf16.msra.mxu0 %v796
    %1170 = vmatpush.bf16.msra.mxu0 %v792
    %1171 = vmatpush.bf16.msra.mxu0 %v788
    %1172 = vmatpush.bf16.msra.mxu0 %v784
    %1173 = vmatmul.bf16.gmra.mxu0 %v1097
    %v1174 = vpop.f32.mrf.mxu0
    %v1175 = vadd.f32 %v1162, %v1174
    %v1176 = vpop.f32.mrf.mxu0
    %1177 = vdwg.mxu0
    %1178 = vmatpush.bf16.msra.mxu0 %v781
    %1179 = vmatpush.bf16.msra.mxu0 %v777
    %1180 = vmatpush.bf16.msra.mxu0 %v773
    %1181 = vmatpush.bf16.msra.mxu0 %v769
    %1182 = vmatpush.bf16.msra.mxu0 %v765
    %1183 = vmatpush.bf16.msra.mxu0 %v761
    %1184 = vmatpush.bf16.msra.mxu0 %v757
    %1185 = vmatpush.bf16.msra.mxu0 %v753
    %1186 = vmatmul.bf16.gmra.mxu0 %v1096
    %v1187 = vpop.f32.mrf.mxu0
    %v1188 = vadd.f32 %v553, %v1187
    %v1189 = vpop.f32.mrf.mxu0
    %1190 = vdwg.mxu0
    %1191 = vmatpush.bf16.msra.mxu0 %v813
    %1192 = vmatpush.bf16.msra.mxu0 %v809
    %1193 = vmatpush.bf16.msra.mxu0 %v805
    %1194 = vmatpush.bf16.msra.mxu0 %v801
    %1195 = vmatpush.bf16.msra.mxu0 %v797
    %1196 = vmatpush.bf16.msra.mxu0 %v793
    %1197 = vmatpush.bf16.msra.mxu0 %v789
    %1198 = vmatpush.bf16.msra.mxu0 %v785
    %1199 = vmatmul.bf16.gmra.mxu0 %v1097
    %v1200 = vpop.f32.mrf.mxu0
    %v1201 = vadd.f32 %v1188, %v1200
    %v1202 = vpop.f32.mrf.mxu0
    %1203 = vdwg.mxu0
    %v1204 = vmul.f32 %v1123, 0.5
    %v1205 = vtanh.pop %v1204
    %v1206 = vmul.f32 %v1205, 0.5
    %v1207 = vadd.f32 %v1206, 0.5
    %v1208 = vmul.f32 %v1149, 0.5
    %v1209 = vtanh.pop %v1208
    %v1210 = vmul.f32 %v1209, 0.5
    %v1211 = vadd.f32 %v1210, 0.5
    %v1212 = vtanh.pop %v1175
    %v1213 = vmul.f32 %v1201, 0.5
    %v1214 = vtanh.pop %v1213
    %v1215 = vmul.f32 %v1214, 0.5
    %v1216 = vadd.f32 %v1215, 0.5
    %v1217 = vmul.f32 %v1211, %v997
    %v1218 = vmul.f32 %v1207, %v1212
    %v1219 = vadd.f32 %v1217, %v1218
    %v1220 = vtanh.pop %v1219
    %v1221 = vmul.f32 %v1216, %v1220
    %1222 = vmatpush.bf16.msra.mxu0 %v373
    %1223 = vmatpush.bf16.msra.mxu0 %v369
    %1224 = vmatpush.bf16.msra.mxu0 %v365
    %1225 = vmatpush.bf16.msra.mxu0 %v361
    %1226 = vmatpush.bf16.msra.mxu0 %v357
    %1227 = vmatpush.bf16.msra.mxu0 %v353
    %1228 = vmatpush.bf16.msra.mxu0 %v349
    %1229 = vmatpush.bf16.msra.mxu0 %v345
    %1230 = vmatmul.bf16.gmra.mxu0 %v1096
    %v1231 = vpop.f32.mrf.mxu0
    %v1232 = vadd.f32 0.0, %v1231
    %v1233 = vpop.f32.mrf.mxu0
    %1234 = vdwg.mxu0
    %1235 = vmatpush.bf16.msra.mxu0 %v374
    %1236 = vmatpush.bf16.msra.mxu0 %v370
    %1237 = vmatpush.bf16.msra.mxu0 %v366
    %1238 = vmatpush.bf16.msra.mxu0 %v362
    %1239 = vmatpush.bf16.msra.mxu0 %v358
    %1240 = vmatpush.bf16.msra.mxu0 %v354
    %1241 = vmatpush.bf16.msra.mxu0 %v350
    %1242 = vmatpush.bf16.msra.mxu0 %v346
    %1243 = vmatmul.bf16.gmra.mxu0 %v1096
    %v1244 = vpop.f32.mrf.mxu0
    %v1245 = vadd.f32 0.0, %v1244
    %v1246 = vpop.f32.mrf.mxu0
    %1247 = vdwg.mxu0
    %1248 = vmatpush.bf16.msra.mxu0 %v375
    %1249 = vmatpush.bf16.msra.mxu0 %v371
    %1250 = vmatpush.bf16.msra.mxu0 %v367
    %1251 = vmatpush.bf16.msra.mxu0 %v363
    %1252 = vmatpush.bf16.msra.mxu0 %v359
    %1253 = vmatpush.bf16.msra.mxu0 %v355
    %1254 = vmatpush.bf16.msra.mxu0 %v351
    %1255 = vmatpush.bf16.msra.mxu0 %v347
    %1256 = vmatmul.bf16.gmra.mxu0 %v1096
    %v1257 = vpop.f32.mrf.mxu0
    %v1258 = vadd.f32 0.0, %v1257
    %v1259 = vpop.f32.mrf.mxu0
    %1260 = vdwg.mxu0
    %1261 = vmatpush.bf16.msra.mxu0 %v376
    %1262 = vmatpush.bf16.msra.mxu0 %v372
    %1263 = vmatpush.bf16.msra.mxu0 %v368
    %1264 = vmatpush.bf16.msra.mxu0 %v364
    %1265 = vmatpush.bf16.msra.mxu0 %v360
    %1266 = vmatpush.bf16.msra.mxu0 %v356
    %1267 = vmatpush.bf16.msra.mxu0 %v352
    %1268 = vmatpush.bf16.msra.mxu0 %v348
    %1269 = vmatmul.bf16.gmra.mxu0 %v1096
    %v1270 = vpop.f32.mrf.mxu0
    %v1271 = vadd.f32 0.0, %v1270
    %v1272 = vpop.f32.mrf.mxu0
    %1273 = vdwg.mxu0
    %v1278 = vrot.slane %v1232, 4
    %v1279 = vrot.slane %v1245, 4
    %v1280 = vrot.slane %v1258, 4
    %v1281 = vrot.slane %v1271, 4
    %v1286 = vadd.f32 %v142, %v1278
    %v1287 = vadd.f32 %v165, %v1279
    %v1288 = vadd.f32 %v188, %v1280
    %v1289 = vadd.f32 %v211, %v1281
    %v1290 = vmul.f32 %v1286, 0.5
    %v1291 = vtanh.pop %v1290
    %v1292 = vmul.f32 %v1291, 0.5
    %v1293 = vadd.f32 %v1292, 0.5
    %v1294 = vmul.f32 %v1287, 0.5
    %v1295 = vtanh.pop %v1294
    %v1296 = vmul.f32 %v1295, 0.5
    %v1297 = vadd.f32 %v1296, 0.5
    %v1298 = vtanh.pop %v1288
    %v1299 = vmul.f32 %v1289, 0.5
    %v1300 = vtanh.pop %v1299
    %v1301 = vmul.f32 %v1300, 0.5
    %v1302 = vadd.f32 %v1301, 0.5
    %v1304 = vrot.slane %v1086, 6
    %v1306 = vmul.f32 %v1297, %v1304
    %v1307 = vmul.f32 %v1293, %v1298
    %v1308 = vadd.f32 %v1306, %v1307
    %v1309 = vtanh.pop %v1308
    %v1310 = vmul.f32 %v1302, %v1309
    %v1312 = vrot.slane %v1221, 4
    %v1314 = vpack.c.bf16 %v1310, %v1310
    %v1315 = vpack.c.bf16 %v1312, %v1312
    %v1318 = vrot.slane %v1314, 2
    %v1319 = vrot.slane %v1315, 2
    %1322 = vmatpush.bf16.msra.mxu0 %v778
    %1323 = vmatpush.bf16.msra.mxu0 %v774
    %1324 = vmatpush.bf16.msra.mxu0 %v770
    %1325 = vmatpush.bf16.msra.mxu0 %v766
    %1326 = vmatpush.bf16.msra.mxu0 %v762
    %1327 = vmatpush.bf16.msra.mxu0 %v758
    %1328 = vmatpush.bf16.msra.mxu0 %v754
    %1329 = vmatpush.bf16.msra.mxu0 %v750
    %1330 = vmatmul.bf16.gmra.mxu0 %v1318
    %v1331 = vpop.f32.mrf.mxu0
    %v1332 = vadd.f32 %v550, %v1331
    %v1333 = vpop.f32.mrf.mxu0
    %1334 = vdwg.mxu0
    %1335 = vmatpush.bf16.msra.mxu0 %v810
    %1336 = vmatpush.bf16.msra.mxu0 %v806
    %1337 = vmatpush.bf16.msra.mxu0 %v802
    %1338 = vmatpush.bf16.msra.mxu0 %v798
    %1339 = vmatpush.bf16.msra.mxu0 %v794
    %1340 = vmatpush.bf16.msra.mxu0 %v790
    %1341 = vmatpush.bf16.msra.mxu0 %v786
    %1342 = vmatpush.bf16.msra.mxu0 %v782
    %1343 = vmatmul.bf16.gmra.mxu0 %v1319
    %v1344 = vpop.f32.mrf.mxu0
    %v1345 = vadd.f32 %v1332, %v1344
    %v1346 = vpop.f32.mrf.mxu0
    %1347 = vdwg.mxu0
    %1348 = vmatpush.bf16.msra.mxu0 %v779
    %1349 = vmatpush.bf16.msra.mxu0 %v775
    %1350 = vmatpush.bf16.msra.mxu0 %v771
    %1351 = vmatpush.bf16.msra.mxu0 %v767
    %1352 = vmatpush.bf16.msra.mxu0 %v763
    %1353 = vmatpush.bf16.msra.mxu0 %v759
    %1354 = vmatpush.bf16.msra.mxu0 %v755
    %1355 = vmatpush.bf16.msra.mxu0 %v751
    %1356 = vmatmul.bf16.gmra.mxu0 %v1318
    %v1357 = vpop.f32.mrf.mxu0
    %v1358 = vadd.f32 %v551, %v1357
    %v1359 = vpop.f32.mrf.mxu0
    %1360 = vdwg.mxu0
    %1361 = vmatpush.bf16.msra.mxu0 %v811
    %1362 = vmatpush.bf16.msra.mxu0 %v807
    %1363 = vmatpush.bf16.msra.mxu0 %v803
    %1364 = vmatpush.bf16.msra.mxu0 %v799
    %1365 = vmatpush.bf16.msra.mxu0 %v795
    %1366 = vmatpush.bf16.msra.mxu0 %v791
    %1367 = vmatpush.bf16.msra.mxu0 %v787
    %1368 = vmatpush.bf16.msra.mxu0 %v783
    %1369 = vmatmul.bf16.gmra.mxu0 %v1319
    %v1370 = vpop.f32.mrf.mxu0
    %v1371 = vadd.f32 %v1358, %v1370
    %v1372 = vpop.f32.mrf.mxu0
    %1373 = vdwg.mxu0
    %1374 = vmatpush.bf16.msra.mxu0 %v780
    %1375 = vmatpush.bf16.msra.mxu0 %v776
    %1376 = vmatpush.bf16.msra.mxu0 %v772
    %1377 = vmatpush.bf16.msra.mxu0 %v768
    %1378 = vmatpush.bf16.msra.mxu0 %v764
    %1379 = vmatpush.bf16.msra.mxu0 %v760
    %1380 = vmatpush.bf16.msra.mxu0 %v756
    %1381 = vmatpush.bf16.msra.mxu0 %v752
    %1382 = vmatmul.bf16.gmra.mxu0 %v1318
    %v1383 = vpop.f32.mrf.mxu0
    %v1384 = vadd.f32 %v552, %v1383
    %v1385 = vpop.f32.mrf.mxu0
    %1386 = vdwg.mxu0
    %1387 = vmatpush.bf16.msra.mxu0 %v812
    %1388 = vmatpush.bf16.msra.mxu0 %v808
    %1389 = vmatpush.bf16.msra.mxu0 %v804
    %1390 = vmatpush.bf16.msra.mxu0 %v800
    %1391 = vmatpush.bf16.msra.mxu0 %v796
    %1392 = vmatpush.bf16.msra.mxu0 %v792
    %1393 = vmatpush.bf16.msra.mxu0 %v788
    %1394 = vmatpush.bf16.msra.mxu0 %v784
    %1395 = vmatmul.bf16.gmra.mxu0 %v1319
    %v1396 = vpop.f32.mrf.mxu0
    %v1397 = vadd.f32 %v1384, %v1396
    %v1398 = vpop.f32.mrf.mxu0
    %1399 = vdwg.mxu0
    %1400 = vmatpush.bf16.msra.mxu0 %v781
    %1401 = vmatpush.bf16.msra.mxu0 %v777
    %1402 = vmatpush.bf16.msra.mxu0 %v773
    %1403 = vmatpush.bf16.msra.mxu0 %v769
    %1404 = vmatpush.bf16.msra.mxu0 %v765
    %1405 = vmatpush.bf16.msra.mxu0 %v761
    %1406 = vmatpush.bf16.msra.mxu0 %v757
    %1407 = vmatpush.bf16.msra.mxu0 %v753
    %1408 = vmatmul.bf16.gmra.mxu0 %v1318
    %v1409 = vpop.f32.mrf.mxu0
    %v1410 = vadd.f32 %v553, %v1409
    %v1411 = vpop.f32.mrf.mxu0
    %1412 = vdwg.mxu0
    %1413 = vmatpush.bf16.msra.mxu0 %v813
    %1414 = vmatpush.bf16.msra.mxu0 %v809
    %1415 = vmatpush.bf16.msra.mxu0 %v805
    %1416 = vmatpush.bf16.msra.mxu0 %v801
    %1417 = vmatpush.bf16.msra.mxu0 %v797
    %1418 = vmatpush.bf16.msra.mxu0 %v793
    %1419 = vmatpush.bf16.msra.mxu0 %v789
    %1420 = vmatpush.bf16.msra.mxu0 %v785
    %1421 = vmatmul.bf16.gmra.mxu0 %v1319
    %v1422 = vpop.f32.mrf.mxu0
    %v1423 = vadd.f32 %v1410, %v1422
    %v1424 = vpop.f32.mrf.mxu0
    %1425 = vdwg.mxu0
    %v1426 = vmul.f32 %v1345, 0.5
    %v1427 = vtanh.pop %v1426
    %v1428 = vmul.f32 %v1427, 0.5
    %v1429 = vadd.f32 %v1428, 0.5
    %v1430 = vmul.f32 %v1371, 0.5
    %v1431 = vtanh.pop %v1430
    %v1432 = vmul.f32 %v1431, 0.5
    %v1433 = vadd.f32 %v1432, 0.5
    %v1434 = vtanh.pop %v1397
    %v1435 = vmul.f32 %v1423, 0.5
    %v1436 = vtanh.pop %v1435
    %v1437 = vmul.f32 %v1436, 0.5
    %v1438 = vadd.f32 %v1437, 0.5
    %v1439 = vmul.f32 %v1433, %v1219
    %v1440 = vmul.f32 %v1429, %v1434
    %v1441 = vadd.f32 %v1439, %v1440
    %v1442 = vtanh.pop %v1441
    %v1443 = vmul.f32 %v1438, %v1442
    %1444 = vmatpush.bf16.msra.mxu0 %v373
    %1445 = vmatpush.bf16.msra.mxu0 %v369
    %1446 = vmatpush.bf16.msra.mxu0 %v365
    %1447 = vmatpush.bf16.msra.mxu0 %v361
    %1448 = vmatpush.bf16.msra.mxu0 %v357
    %1449 = vmatpush.bf16.msra.mxu0 %v353
    %1450 = vmatpush.bf16.msra.mxu0 %v349
    %1451 = vmatpush.bf16.msra.mxu0 %v345
    %1452 = vmatmul.bf16.gmra.mxu0 %v1318
    %v1453 = vpop.f32.mrf.mxu0
    %v1454 = vadd.f32 0.0, %v1453
    %v1455 = vpop.f32.mrf.mxu0
    %1456 = vdwg.mxu0
    %1457 = vmatpush.bf16.msra.mxu0 %v374
    %1458 = vmatpush.bf16.msra.mxu0 %v370
    %1459 = vmatpush.bf16.msra.mxu0 %v366
    %1460 = vmatpush.bf16.msra.mxu0 %v362
    %1461 = vmatpush.bf16.msra.mxu0 %v358
    %1462 = vmatpush.bf16.msra.mxu0 %v354
    %1463 = vmatpush.bf16.msra.mxu0 %v350
    %1464 = vmatpush.bf16.msra.mxu0 %v346
    %1465 = vmatmul.bf16.gmra.mxu0 %v1318
    %v1466 = vpop.f32.mrf.mxu0
    %v1467 = vadd.f32 0.0, %v1466
    %v1468 = vpop.f32.mrf.mxu0
    %1469 = vdwg.mxu0
    %1470 = vmatpush.bf16.msra.mxu0 %v375
    %1471 = vmatpush.bf16.msra.mxu0 %v371
    %1472 = vmatpush.bf16.msra.mxu0 %v367
    %1473 = vmatpush.bf16.msra.mxu0 %v363
    %1474 = vmatpush.bf16.msra.mxu0 %v359
    %1475 = vmatpush.bf16.msra.mxu0 %v355
    %1476 = vmatpush.bf16.msra.mxu0 %v351
    %1477 = vmatpush.bf16.msra.mxu0 %v347
    %1478 = vmatmul.bf16.gmra.mxu0 %v1318
    %v1479 = vpop.f32.mrf.mxu0
    %v1480 = vadd.f32 0.0, %v1479
    %v1481 = vpop.f32.mrf.mxu0
    %1482 = vdwg.mxu0
    %1483 = vmatpush.bf16.msra.mxu0 %v376
    %1484 = vmatpush.bf16.msra.mxu0 %v372
    %1485 = vmatpush.bf16.msra.mxu0 %v368
    %1486 = vmatpush.bf16.msra.mxu0 %v364
    %1487 = vmatpush.bf16.msra.mxu0 %v360
    %1488 = vmatpush.bf16.msra.mxu0 %v356
    %1489 = vmatpush.bf16.msra.mxu0 %v352
    %1490 = vmatpush.bf16.msra.mxu0 %v348
    %1491 = vmatmul.bf16.gmra.mxu0 %v1318
    %v1492 = vpop.f32.mrf.mxu0
    %v1493 = vadd.f32 0.0, %v1492
    %v1494 = vpop.f32.mrf.mxu0
    %1495 = vdwg.mxu0
    %v1500 = vrot.slane %v1454, 2
    %v1501 = vrot.slane %v1467, 2
    %v1502 = vrot.slane %v1480, 2
    %v1503 = vrot.slane %v1493, 2
    %v1508 = vadd.f32 %v142, %v1500
    %v1509 = vadd.f32 %v165, %v1501
    %v1510 = vadd.f32 %v188, %v1502
    %v1511 = vadd.f32 %v211, %v1503
    %v1512 = vmul.f32 %v1508, 0.5
    %v1513 = vtanh.pop %v1512
    %v1514 = vmul.f32 %v1513, 0.5
    %v1515 = vadd.f32 %v1514, 0.5
    %v1516 = vmul.f32 %v1509, 0.5
    %v1517 = vtanh.pop %v1516
    %v1518 = vmul.f32 %v1517, 0.5
    %v1519 = vadd.f32 %v1518, 0.5
    %v1520 = vtanh.pop %v1510
    %v1521 = vmul.f32 %v1511, 0.5
    %v1522 = vtanh.pop %v1521
    %v1523 = vmul.f32 %v1522, 0.5
    %v1524 = vadd.f32 %v1523, 0.5
    %v1526 = vrot.slane %v1308, 6
    %v1528 = vmul.f32 %v1519, %v1526
    %v1529 = vmul.f32 %v1515, %v1520
    %v1530 = vadd.f32 %v1528, %v1529
    %v1531 = vtanh.pop %v1530
    %v1532 = vmul.f32 %v1524, %v1531
    %v1534 = vrot.slane %v1443, 2
    %v1536 = vpack.c.bf16 %v1532, %v1532
    %v1537 = vpack.c.bf16 %v1534, %v1534
    %v1540 = vrot.slane %v1536, 3
    %v1541 = vrot.slane %v1537, 3
    %1544 = vmatpush.bf16.msra.mxu0 %v778
    %1545 = vmatpush.bf16.msra.mxu0 %v774
    %1546 = vmatpush.bf16.msra.mxu0 %v770
    %1547 = vmatpush.bf16.msra.mxu0 %v766
    %1548 = vmatpush.bf16.msra.mxu0 %v762
    %1549 = vmatpush.bf16.msra.mxu0 %v758
    %1550 = vmatpush.bf16.msra.mxu0 %v754
    %1551 = vmatpush.bf16.msra.mxu0 %v750
    %1552 = vmatmul.bf16.gmra.mxu0 %v1540
    %v1553 = vpop.f32.mrf.mxu0
    %v1554 = vadd.f32 %v550, %v1553
    %v1555 = vpop.f32.mrf.mxu0
    %1556 = vdwg.mxu0
    %1557 = vmatpush.bf16.msra.mxu0 %v810
    %1558 = vmatpush.bf16.msra.mxu0 %v806
    %1559 = vmatpush.bf16.msra.mxu0 %v802
    %1560 = vmatpush.bf16.msra.mxu0 %v798
    %1561 = vmatpush.bf16.msra.mxu0 %v794
    %1562 = vmatpush.bf16.msra.mxu0 %v790
    %1563 = vmatpush.bf16.msra.mxu0 %v786
    %1564 = vmatpush.bf16.msra.mxu0 %v782
    %1565 = vmatmul.bf16.gmra.mxu0 %v1541
    %v1566 = vpop.f32.mrf.mxu0
    %v1567 = vadd.f32 %v1554, %v1566
    %v1568 = vpop.f32.mrf.mxu0
    %1569 = vdwg.mxu0
    %1570 = vmatpush.bf16.msra.mxu0 %v779
    %1571 = vmatpush.bf16.msra.mxu0 %v775
    %1572 = vmatpush.bf16.msra.mxu0 %v771
    %1573 = vmatpush.bf16.msra.mxu0 %v767
    %1574 = vmatpush.bf16.msra.mxu0 %v763
    %1575 = vmatpush.bf16.msra.mxu0 %v759
    %1576 = vmatpush.bf16.msra.mxu0 %v755
    %1577 = vmatpush.bf16.msra.mxu0 %v751
    %1578 = vmatmul.bf16.gmra.mxu0 %v1540
    %v1579 = vpop.f32.mrf.mxu0
    %v1580 = vadd.f32 %v551, %v1579
    %v1581 = vpop.f32.mrf.mxu0
    %1582 = vdwg.mxu0
    %1583 = vmatpush.bf16.msra.mxu0 %v811
    %1584 = vmatpush.bf16.msra.mxu0 %v807
    %1585 = vmatpush.bf16.msra.mxu0 %v803
    %1586 = vmatpush.bf16.msra.mxu0 %v799
    %1587 = vmatpush.bf16.msra.mxu0 %v795
    %1588 = vmatpush.bf16.msra.mxu0 %v791
    %1589 = vmatpush.bf16.msra.mxu0 %v787
    %1590 = vmatpush.bf16.msra.mxu0 %v783
    %1591 = vmatmul.bf16.gmra.mxu0 %v1541
    %v1592 = vpop.f32.mrf.mxu0
    %v1593 = vadd.f32 %v1580, %v1592
    %v1594 = vpop.f32.mrf.mxu0
    %1595 = vdwg.mxu0
    %1596 = vmatpush.bf16.msra.mxu0 %v780
    %1597 = vmatpush.bf16.msra.mxu0 %v776
    %1598 = vmatpush.bf16.msra.mxu0 %v772
    %1599 = vmatpush.bf16.msra.mxu0 %v768
    %1600 = vmatpush.bf16.msra.mxu0 %v764
    %1601 = vmatpush.bf16.msra.mxu0 %v760
    %1602 = vmatpush.bf16.msra.mxu0 %v756
    %1603 = vmatpush.bf16.msra.mxu0 %v752
    %1604 = vmatmul.bf16.gmra.mxu0 %v1540
    %v1605 = vpop.f32.mrf.mxu0
    %v1606 = vadd.f32 %v552, %v1605
    %v1607 = vpop.f32.mrf.mxu0
    %1608 = vdwg.mxu0
    %1609 = vmatpush.bf16.msra.mxu0 %v812
    %1610 = vmatpush.bf16.msra.mxu0 %v808
    %1611 = vmatpush.bf16.msra.mxu0 %v804
    %1612 = vmatpush.bf16.msra.mxu0 %v800
    %1613 = vmatpush.bf16.msra.mxu0 %v796
    %1614 = vmatpush.bf16.msra.mxu0 %v792
    %1615 = vmatpush.bf16.msra.mxu0 %v788
    %1616 = vmatpush.bf16.msra.mxu0 %v784
    %1617 = vmatmul.bf16.gmra.mxu0 %v1541
    %v1618 = vpop.f32.mrf.mxu0
    %v1619 = vadd.f32 %v1606, %v1618
    %v1620 = vpop.f32.mrf.mxu0
    %1621 = vdwg.mxu0
    %1622 = vmatpush.bf16.msra.mxu0 %v781
    %1623 = vmatpush.bf16.msra.mxu0 %v777
    %1624 = vmatpush.bf16.msra.mxu0 %v773
    %1625 = vmatpush.bf16.msra.mxu0 %v769
    %1626 = vmatpush.bf16.msra.mxu0 %v765
    %1627 = vmatpush.bf16.msra.mxu0 %v761
    %1628 = vmatpush.bf16.msra.mxu0 %v757
    %1629 = vmatpush.bf16.msra.mxu0 %v753
    %1630 = vmatmul.bf16.gmra.mxu0 %v1540
    %v1631 = vpop.f32.mrf.mxu0
    %v1632 = vadd.f32 %v553, %v1631
    %v1633 = vpop.f32.mrf.mxu0
    %1634 = vdwg.mxu0
    %1635 = vmatpush.bf16.msra.mxu0 %v813
    %1636 = vmatpush.bf16.msra.mxu0 %v809
    %1637 = vmatpush.bf16.msra.mxu0 %v805
    %1638 = vmatpush.bf16.msra.mxu0 %v801
    %1639 = vmatpush.bf16.msra.mxu0 %v797
    %1640 = vmatpush.bf16.msra.mxu0 %v793
    %1641 = vmatpush.bf16.msra.mxu0 %v789
    %1642 = vmatpush.bf16.msra.mxu0 %v785
    %1643 = vmatmul.bf16.gmra.mxu0 %v1541
    %v1644 = vpop.f32.mrf.mxu0
    %v1645 = vadd.f32 %v1632, %v1644
    %v1646 = vpop.f32.mrf.mxu0
    %1647 = vdwg.mxu0
    %v1648 = vmul.f32 %v1567, 0.5
    %v1649 = vtanh.pop %v1648
    %v1650 = vmul.f32 %v1649, 0.5
    %v1651 = vadd.f32 %v1650, 0.5
    %v1652 = vmul.f32 %v1593, 0.5
    %v1653 = vtanh.pop %v1652
    %v1654 = vmul.f32 %v1653, 0.5
    %v1655 = vadd.f32 %v1654, 0.5
    %v1656 = vtanh.pop %v1619
    %v1657 = vmul.f32 %v1645, 0.5
    %v1658 = vtanh.pop %v1657
    %v1659 = vmul.f32 %v1658, 0.5
    %v1660 = vadd.f32 %v1659, 0.5
    %v1661 = vmul.f32 %v1655, %v1441
    %v1662 = vmul.f32 %v1651, %v1656
    %v1663 = vadd.f32 %v1661, %v1662
    %v1664 = vtanh.pop %v1663
    %v1665 = vmul.f32 %v1660, %v1664
    %1666 = vmatpush.bf16.msra.mxu0 %v373
    %1667 = vmatpush.bf16.msra.mxu0 %v369
    %1668 = vmatpush.bf16.msra.mxu0 %v365
    %1669 = vmatpush.bf16.msra.mxu0 %v361
    %1670 = vmatpush.bf16.msra.mxu0 %v357
    %1671 = vmatpush.bf16.msra.mxu0 %v353
    %1672 = vmatpush.bf16.msra.mxu0 %v349
    %1673 = vmatpush.bf16.msra.mxu0 %v345
    %1674 = vmatmul.bf16.gmra.mxu0 %v1540
    %v1675 = vpop.f32.mrf.mxu0
    %v1676 = vadd.f32 0.0, %v1675
    %v1677 = vpop.f32.mrf.mxu0
    %1678 = vdwg.mxu0
    %1679 = vmatpush.bf16.msra.mxu0 %v374
    %1680 = vmatpush.bf16.msra.mxu0 %v370
    %1681 = vmatpush.bf16.msra.mxu0 %v366
    %1682 = vmatpush.bf16.msra.mxu0 %v362
    %1683 = vmatpush.bf16.msra.mxu0 %v358
    %1684 = vmatpush.bf16.msra.mxu0 %v354
    %1685 = vmatpush.bf16.msra.mxu0 %v350
    %1686 = vmatpush.bf16.msra.mxu0 %v346
    %1687 = vmatmul.bf16.gmra.mxu0 %v1540
    %v1688 = vpop.f32.mrf.mxu0
    %v1689 = vadd.f32 0.0, %v1688
    %v1690 = vpop.f32.mrf.mxu0
    %1691 = vdwg.mxu0
    %1692 = vmatpush.bf16.msra.mxu0 %v375
    %1693 = vmatpush.bf16.msra.mxu0 %v371
    %1694 = vmatpush.bf16.msra.mxu0 %v367
    %1695 = vmatpush.bf16.msra.mxu0 %v363
    %1696 = vmatpush.bf16.msra.mxu0 %v359
    %1697 = vmatpush.bf16.msra.mxu0 %v355
    %1698 = vmatpush.bf16.msra.mxu0 %v351
    %1699 = vmatpush.bf16.msra.mxu0 %v347
    %1700 = vmatmul.bf16.gmra.mxu0 %v1540
    %v1701 = vpop.f32.mrf.mxu0
    %v1702 = vadd.f32 0.0, %v1701
    %v1703 = vpop.f32.mrf.mxu0
    %1704 = vdwg.mxu0
    %1705 = vmatpush.bf16.msra.mxu0 %v376
    %1706 = vmatpush.bf16.msra.mxu0 %v372
    %1707 = vmatpush.bf16.msra.mxu0 %v368
    %1708 = vmatpush.bf16.msra.mxu0 %v364
    %1709 = vmatpush.bf16.msra.mxu0 %v360
    %1710 = vmatpush.bf16.msra.mxu0 %v356
    %1711 = vmatpush.bf16.msra.mxu0 %v352
    %1712 = vmatpush.bf16.msra.mxu0 %v348
    %1713 = vmatmul.bf16.gmra.mxu0 %v1540
    %v1714 = vpop.f32.mrf.mxu0
    %v1715 = vadd.f32 0.0, %v1714
    %v1716 = vpop.f32.mrf.mxu0
    %1717 = vdwg.mxu0
    %v1718 = vadd.f32 %v145, %v1676
    %v1719 = vadd.f32 %v168, %v1689
    %v1720 = vadd.f32 %v191, %v1702
    %v1721 = vadd.f32 %v214, %v1715
    %v1722 = vmul.f32 %v1718, 0.5
    %v1723 = vtanh.pop %v1722
    %v1724 = vmul.f32 %v1723, 0.5
    %v1725 = vadd.f32 %v1724, 0.5
    %v1726 = vmul.f32 %v1719, 0.5
    %v1727 = vtanh.pop %v1726
    %v1728 = vmul.f32 %v1727, 0.5
    %v1729 = vadd.f32 %v1728, 0.5
    %v1730 = vtanh.pop %v1720
    %v1731 = vmul.f32 %v1721, 0.5
    %v1732 = vtanh.pop %v1731
    %v1733 = vmul.f32 %v1732, 0.5
    %v1734 = vadd.f32 %v1733, 0.5
    %v1736 = vrot.slane %v1530, 6
    %v1738 = vmul.f32 %v1729, %v1736
    %v1739 = vmul.f32 %v1725, %v1730
    %v1740 = vadd.f32 %v1738, %v1739
    %v1741 = vtanh.pop %v1740
    %v1742 = vmul.f32 %v1734, %v1741
    %v1743 = vpack.c.bf16 %v1742, %v1742
    %v1744 = vpack.c.bf16 %v1665, %v1665
    %1745 = vmatpush.bf16.msra.mxu0 %v778
    %1746 = vmatpush.bf16.msra.mxu0 %v774
    %1747 = vmatpush.bf16.msra.mxu0 %v770
    %1748 = vmatpush.bf16.msra.mxu0 %v766
    %1749 = vmatpush.bf16.msra.mxu0 %v762
    %1750 = vmatpush.bf16.msra.mxu0 %v758
    %1751 = vmatpush.bf16.msra.mxu0 %v754
    %1752 = vmatpush.bf16.msra.mxu0 %v750
    %1753 = vmatmul.bf16.gmra.mxu0 %v1743
    %v1754 = vpop.f32.mrf.mxu0
    %v1755 = vadd.f32 %v550, %v1754
    %v1756 = vpop.f32.mrf.mxu0
    %1757 = vdwg.mxu0
    %1758 = vmatpush.bf16.msra.mxu0 %v810
    %1759 = vmatpush.bf16.msra.mxu0 %v806
    %1760 = vmatpush.bf16.msra.mxu0 %v802
    %1761 = vmatpush.bf16.msra.mxu0 %v798
    %1762 = vmatpush.bf16.msra.mxu0 %v794
    %1763 = vmatpush.bf16.msra.mxu0 %v790
    %1764 = vmatpush.bf16.msra.mxu0 %v786
    %1765 = vmatpush.bf16.msra.mxu0 %v782
    %1766 = vmatmul.bf16.gmra.mxu0 %v1744
    %v1767 = vpop.f32.mrf.mxu0
    %v1768 = vadd.f32 %v1755, %v1767
    %v1769 = vpop.f32.mrf.mxu0
    %1770 = vdwg.mxu0
    %1771 = vmatpush.bf16.msra.mxu0 %v779
    %1772 = vmatpush.bf16.msra.mxu0 %v775
    %1773 = vmatpush.bf16.msra.mxu0 %v771
    %1774 = vmatpush.bf16.msra.mxu0 %v767
    %1775 = vmatpush.bf16.msra.mxu0 %v763
    %1776 = vmatpush.bf16.msra.mxu0 %v759
    %1777 = vmatpush.bf16.msra.mxu0 %v755
    %1778 = vmatpush.bf16.msra.mxu0 %v751
    %1779 = vmatmul.bf16.gmra.mxu0 %v1743
    %v1780 = vpop.f32.mrf.mxu0
    %v1781 = vadd.f32 %v551, %v1780
    %v1782 = vpop.f32.mrf.mxu0
    %1783 = vdwg.mxu0
    %1784 = vmatpush.bf16.msra.mxu0 %v811
    %1785 = vmatpush.bf16.msra.mxu0 %v807
    %1786 = vmatpush.bf16.msra.mxu0 %v803
    %1787 = vmatpush.bf16.msra.mxu0 %v799
    %1788 = vmatpush.bf16.msra.mxu0 %v795
    %1789 = vmatpush.bf16.msra.mxu0 %v791
    %1790 = vmatpush.bf16.msra.mxu0 %v787
    %1791 = vmatpush.bf16.msra.mxu0 %v783
    %1792 = vmatmul.bf16.gmra.mxu0 %v1744
    %v1793 = vpop.f32.mrf.mxu0
    %v1794 = vadd.f32 %v1781, %v1793
    %v1795 = vpop.f32.mrf.mxu0
    %1796 = vdwg.mxu0
    %1797 = vmatpush.bf16.msra.mxu0 %v780
    %1798 = vmatpush.bf16.msra.mxu0 %v776
    %1799 = vmatpush.bf16.msra.mxu0 %v772
    %1800 = vmatpush.bf16.msra.mxu0 %v768
    %1801 = vmatpush.bf16.msra.mxu0 %v764
    %1802 = vmatpush.bf16.msra.mxu0 %v760
    %1803 = vmatpush.bf16.msra.mxu0 %v756
    %1804 = vmatpush.bf16.msra.mxu0 %v752
    %1805 = vmatmul.bf16.gmra.mxu0 %v1743
    %v1806 = vpop.f32.mrf.mxu0
    %v1807 = vadd.f32 %v552, %v1806
    %v1808 = vpop.f32.mrf.mxu0
    %1809 = vdwg.mxu0
    %1810 = vmatpush.bf16.msra.mxu0 %v812
    %1811 = vmatpush.bf16.msra.mxu0 %v808
    %1812 = vmatpush.bf16.msra.mxu0 %v804
    %1813 = vmatpush.bf16.msra.mxu0 %v800
    %1814 = vmatpush.bf16.msra.mxu0 %v796
    %1815 = vmatpush.bf16.msra.mxu0 %v792
    %1816 = vmatpush.bf16.msra.mxu0 %v788
    %1817 = vmatpush.bf16.msra.mxu0 %v784
    %1818 = vmatmul.bf16.gmra.mxu0 %v1744
    %v1819 = vpop.f32.mrf.mxu0
    %v1820 = vadd.f32 %v1807, %v1819
    %v1821 = vpop.f32.mrf.mxu0
    %1822 = vdwg.mxu0
    %1823 = vmatpush.bf16.msra.mxu0 %v781
    %1824 = vmatpush.bf16.msra.mxu0 %v777
    %1825 = vmatpush.bf16.msra.mxu0 %v773
    %1826 = vmatpush.bf16.msra.mxu0 %v769
    %1827 = vmatpush.bf16.msra.mxu0 %v765
    %1828 = vmatpush.bf16.msra.mxu0 %v761
    %1829 = vmatpush.bf16.msra.mxu0 %v757
    %1830 = vmatpush.bf16.msra.mxu0 %v753
    %1831 = vmatmul.bf16.gmra.mxu0 %v1743
    %v1832 = vpop.f32.mrf.mxu0
    %v1833 = vadd.f32 %v553, %v1832
    %v1834 = vpop.f32.mrf.mxu0
    %1835 = vdwg.mxu0
    %1836 = vmatpush.bf16.msra.mxu0 %v813
    %1837 = vmatpush.bf16.msra.mxu0 %v809
    %1838 = vmatpush.bf16.msra.mxu0 %v805
    %1839 = vmatpush.bf16.msra.mxu0 %v801
    %1840 = vmatpush.bf16.msra.mxu0 %v797
    %1841 = vmatpush.bf16.msra.mxu0 %v793
    %1842 = vmatpush.bf16.msra.mxu0 %v789
    %1843 = vmatpush.bf16.msra.mxu0 %v785
    %1844 = vmatmul.bf16.gmra.mxu0 %v1744
    %v1845 = vpop.f32.mrf.mxu0
    %v1846 = vadd.f32 %v1833, %v1845
    %v1847 = vpop.f32.mrf.mxu0
    %1848 = vdwg.mxu0
    %v1849 = vmul.f32 %v1768, 0.5
    %v1850 = vtanh.pop %v1849
    %v1851 = vmul.f32 %v1850, 0.5
    %v1852 = vadd.f32 %v1851, 0.5
    %v1853 = vmul.f32 %v1794, 0.5
    %v1854 = vtanh.pop %v1853
    %v1855 = vmul.f32 %v1854, 0.5
    %v1856 = vadd.f32 %v1855, 0.5
    %v1857 = vtanh.pop %v1820
    %v1858 = vmul.f32 %v1846, 0.5
    %v1859 = vtanh.pop %v1858
    %v1860 = vmul.f32 %v1859, 0.5
    %v1861 = vadd.f32 %v1860, 0.5
    %v1862 = vmul.f32 %v1856, %v1663
    %v1863 = vmul.f32 %v1852, %v1857
    %v1864 = vadd.f32 %v1862, %v1863
    %v1865 = vtanh.pop %v1864
    %v1866 = vmul.f32 %v1861, %v1865
    %1867 = vmatpush.bf16.msra.mxu0 %v373
    %1868 = vmatpush.bf16.msra.mxu0 %v369
    %1869 = vmatpush.bf16.msra.mxu0 %v365
    %1870 = vmatpush.bf16.msra.mxu0 %v361
    %1871 = vmatpush.bf16.msra.mxu0 %v357
    %1872 = vmatpush.bf16.msra.mxu0 %v353
    %1873 = vmatpush.bf16.msra.mxu0 %v349
    %1874 = vmatpush.bf16.msra.mxu0 %v345
    %1875 = vmatmul.bf16.gmra.mxu0 %v1743
    %v1876 = vpop.f32.mrf.mxu0
    %v1877 = vadd.f32 0.0, %v1876
    %v1878 = vpop.f32.mrf.mxu0
    %1879 = vdwg.mxu0
    %1880 = vmatpush.bf16.msra.mxu0 %v374
    %1881 = vmatpush.bf16.msra.mxu0 %v370
    %1882 = vmatpush.bf16.msra.mxu0 %v366
    %1883 = vmatpush.bf16.msra.mxu0 %v362
    %1884 = vmatpush.bf16.msra.mxu0 %v358
    %1885 = vmatpush.bf16.msra.mxu0 %v354
    %1886 = vmatpush.bf16.msra.mxu0 %v350
    %1887 = vmatpush.bf16.msra.mxu0 %v346
    %1888 = vmatmul.bf16.gmra.mxu0 %v1743
    %v1889 = vpop.f32.mrf.mxu0
    %v1890 = vadd.f32 0.0, %v1889
    %v1891 = vpop.f32.mrf.mxu0
    %1892 = vdwg.mxu0
    %1893 = vmatpush.bf16.msra.mxu0 %v375
    %1894 = vmatpush.bf16.msra.mxu0 %v371
    %1895 = vmatpush.bf16.msra.mxu0 %v367
    %1896 = vmatpush.bf16.msra.mxu0 %v363
    %1897 = vmatpush.bf16.msra.mxu0 %v359
    %1898 = vmatpush.bf16.msra.mxu0 %v355
    %1899 = vmatpush.bf16.msra.mxu0 %v351
    %1900 = vmatpush.bf16.msra.mxu0 %v347
    %1901 = vmatmul.bf16.gmra.mxu0 %v1743
    %v1902 = vpop.f32.mrf.mxu0
    %v1903 = vadd.f32 0.0, %v1902
    %v1904 = vpop.f32.mrf.mxu0
    %1905 = vdwg.mxu0
    %1906 = vmatpush.bf16.msra.mxu0 %v376
    %1907 = vmatpush.bf16.msra.mxu0 %v372
    %1908 = vmatpush.bf16.msra.mxu0 %v368
    %1909 = vmatpush.bf16.msra.mxu0 %v364
    %1910 = vmatpush.bf16.msra.mxu0 %v360
    %1911 = vmatpush.bf16.msra.mxu0 %v356
    %1912 = vmatpush.bf16.msra.mxu0 %v352
    %1913 = vmatpush.bf16.msra.mxu0 %v348
    %1914 = vmatmul.bf16.gmra.mxu0 %v1743
    %v1915 = vpop.f32.mrf.mxu0
    %v1916 = vadd.f32 0.0, %v1915
    %v1917 = vpop.f32.mrf.mxu0
    %1918 = vdwg.mxu0
    %v1923 = vrot.slane %v1877, 6
    %v1924 = vrot.slane %v1890, 6
    %v1925 = vrot.slane %v1903, 6
    %v1926 = vrot.slane %v1916, 6
    %v1931 = vadd.f32 %v145, %v1923
    %v1932 = vadd.f32 %v168, %v1924
    %v1933 = vadd.f32 %v191, %v1925
    %v1934 = vadd.f32 %v214, %v1926
    %v1935 = vmul.f32 %v1931, 0.5
    %v1936 = vtanh.pop %v1935
    %v1937 = vmul.f32 %v1936, 0.5
    %v1938 = vadd.f32 %v1937, 0.5
    %v1939 = vmul.f32 %v1932, 0.5
    %v1940 = vtanh.pop %v1939
    %v1941 = vmul.f32 %v1940, 0.5
    %v1942 = vadd.f32 %v1941, 0.5
    %v1943 = vtanh.pop %v1933
    %v1944 = vmul.f32 %v1934, 0.5
    %v1945 = vtanh.pop %v1944
    %v1946 = vmul.f32 %v1945, 0.5
    %v1947 = vadd.f32 %v1946, 0.5
    %v1949 = vrot.slane %v1740, 6
    %v1951 = vmul.f32 %v1942, %v1949
    %v1952 = vmul.f32 %v1938, %v1943
    %v1953 = vadd.f32 %v1951, %v1952
    %v1954 = vtanh.pop %v1953
    %v1955 = vmul.f32 %v1947, %v1954
    %v1957 = vrot.slane %v1866, 6
    %v1959 = vpack.c.bf16 %v1955, %v1955
    %v1960 = vpack.c.bf16 %v1957, %v1957
    %v1963 = vrot.slane %v1959, 1
    %v1964 = vrot.slane %v1960, 1
    %1967 = vmatpush.bf16.msra.mxu0 %v778
    %1968 = vmatpush.bf16.msra.mxu0 %v774
    %1969 = vmatpush.bf16.msra.mxu0 %v770
    %1970 = vmatpush.bf16.msra.mxu0 %v766
    %1971 = vmatpush.bf16.msra.mxu0 %v762
    %1972 = vmatpush.bf16.msra.mxu0 %v758
    %1973 = vmatpush.bf16.msra.mxu0 %v754
    %1974 = vmatpush.bf16.msra.mxu0 %v750
    %1975 = vmatmul.bf16.gmra.mxu0 %v1963
    %v1976 = vpop.f32.mrf.mxu0
    %v1977 = vadd.f32 %v550, %v1976
    %v1978 = vpop.f32.mrf.mxu0
    %1979 = vdwg.mxu0
    %1980 = vmatpush.bf16.msra.mxu0 %v810
    %1981 = vmatpush.bf16.msra.mxu0 %v806
    %1982 = vmatpush.bf16.msra.mxu0 %v802
    %1983 = vmatpush.bf16.msra.mxu0 %v798
    %1984 = vmatpush.bf16.msra.mxu0 %v794
    %1985 = vmatpush.bf16.msra.mxu0 %v790
    %1986 = vmatpush.bf16.msra.mxu0 %v786
    %1987 = vmatpush.bf16.msra.mxu0 %v782
    %1988 = vmatmul.bf16.gmra.mxu0 %v1964
    %v1989 = vpop.f32.mrf.mxu0
    %v1990 = vadd.f32 %v1977, %v1989
    %v1991 = vpop.f32.mrf.mxu0
    %1992 = vdwg.mxu0
    %1993 = vmatpush.bf16.msra.mxu0 %v779
    %1994 = vmatpush.bf16.msra.mxu0 %v775
    %1995 = vmatpush.bf16.msra.mxu0 %v771
    %1996 = vmatpush.bf16.msra.mxu0 %v767
    %1997 = vmatpush.bf16.msra.mxu0 %v763
    %1998 = vmatpush.bf16.msra.mxu0 %v759
    %1999 = vmatpush.bf16.msra.mxu0 %v755
    %2000 = vmatpush.bf16.msra.mxu0 %v751
    %2001 = vmatmul.bf16.gmra.mxu0 %v1963
    %v2002 = vpop.f32.mrf.mxu0
    %v2003 = vadd.f32 %v551, %v2002
    %v2004 = vpop.f32.mrf.mxu0
    %2005 = vdwg.mxu0
    %2006 = vmatpush.bf16.msra.mxu0 %v811
    %2007 = vmatpush.bf16.msra.mxu0 %v807
    %2008 = vmatpush.bf16.msra.mxu0 %v803
    %2009 = vmatpush.bf16.msra.mxu0 %v799
    %2010 = vmatpush.bf16.msra.mxu0 %v795
    %2011 = vmatpush.bf16.msra.mxu0 %v791
    %2012 = vmatpush.bf16.msra.mxu0 %v787
    %2013 = vmatpush.bf16.msra.mxu0 %v783
    %2014 = vmatmul.bf16.gmra.mxu0 %v1964
    %v2015 = vpop.f32.mrf.mxu0
    %v2016 = vadd.f32 %v2003, %v2015
    %v2017 = vpop.f32.mrf.mxu0
    %2018 = vdwg.mxu0
    %2019 = vmatpush.bf16.msra.mxu0 %v780
    %2020 = vmatpush.bf16.msra.mxu0 %v776
    %2021 = vmatpush.bf16.msra.mxu0 %v772
    %2022 = vmatpush.bf16.msra.mxu0 %v768
    %2023 = vmatpush.bf16.msra.mxu0 %v764
    %2024 = vmatpush.bf16.msra.mxu0 %v760
    %2025 = vmatpush.bf16.msra.mxu0 %v756
    %2026 = vmatpush.bf16.msra.mxu0 %v752
    %2027 = vmatmul.bf16.gmra.mxu0 %v1963
    %v2028 = vpop.f32.mrf.mxu0
    %v2029 = vadd.f32 %v552, %v2028
    %v2030 = vpop.f32.mrf.mxu0
    %2031 = vdwg.mxu0
    %2032 = vmatpush.bf16.msra.mxu0 %v812
    %2033 = vmatpush.bf16.msra.mxu0 %v808
    %2034 = vmatpush.bf16.msra.mxu0 %v804
    %2035 = vmatpush.bf16.msra.mxu0 %v800
    %2036 = vmatpush.bf16.msra.mxu0 %v796
    %2037 = vmatpush.bf16.msra.mxu0 %v792
    %2038 = vmatpush.bf16.msra.mxu0 %v788
    %2039 = vmatpush.bf16.msra.mxu0 %v784
    %2040 = vmatmul.bf16.gmra.mxu0 %v1964
    %v2041 = vpop.f32.mrf.mxu0
    %v2042 = vadd.f32 %v2029, %v2041
    %v2043 = vpop.f32.mrf.mxu0
    %2044 = vdwg.mxu0
    %2045 = vmatpush.bf16.msra.mxu0 %v781
    %2046 = vmatpush.bf16.msra.mxu0 %v777
    %2047 = vmatpush.bf16.msra.mxu0 %v773
    %2048 = vmatpush.bf16.msra.mxu0 %v769
    %2049 = vmatpush.bf16.msra.mxu0 %v765
    %2050 = vmatpush.bf16.msra.mxu0 %v761
    %2051 = vmatpush.bf16.msra.mxu0 %v757
    %2052 = vmatpush.bf16.msra.mxu0 %v753
    %2053 = vmatmul.bf16.gmra.mxu0 %v1963
    %v2054 = vpop.f32.mrf.mxu0
    %v2055 = vadd.f32 %v553, %v2054
    %v2056 = vpop.f32.mrf.mxu0
    %2057 = vdwg.mxu0
    %2058 = vmatpush.bf16.msra.mxu0 %v813
    %2059 = vmatpush.bf16.msra.mxu0 %v809
    %2060 = vmatpush.bf16.msra.mxu0 %v805
    %2061 = vmatpush.bf16.msra.mxu0 %v801
    %2062 = vmatpush.bf16.msra.mxu0 %v797
    %2063 = vmatpush.bf16.msra.mxu0 %v793
    %2064 = vmatpush.bf16.msra.mxu0 %v789
    %2065 = vmatpush.bf16.msra.mxu0 %v785
    %2066 = vmatmul.bf16.gmra.mxu0 %v1964
    %v2067 = vpop.f32.mrf.mxu0
    %v2068 = vadd.f32 %v2055, %v2067
    %v2069 = vpop.f32.mrf.mxu0
    %2070 = vdwg.mxu0
    %v2071 = vmul.f32 %v1990, 0.5
    %v2072 = vtanh.pop %v2071
    %v2073 = vmul.f32 %v2072, 0.5
    %v2074 = vadd.f32 %v2073, 0.5
    %v2075 = vmul.f32 %v2016, 0.5
    %v2076 = vtanh.pop %v2075
    %v2077 = vmul.f32 %v2076, 0.5
    %v2078 = vadd.f32 %v2077, 0.5
    %v2079 = vtanh.pop %v2042
    %v2080 = vmul.f32 %v2068, 0.5
    %v2081 = vtanh.pop %v2080
    %v2082 = vmul.f32 %v2081, 0.5
    %v2083 = vadd.f32 %v2082, 0.5
    %v2084 = vmul.f32 %v2078, %v1864
    %v2085 = vmul.f32 %v2074, %v2079
    %v2086 = vadd.f32 %v2084, %v2085
    %v2087 = vtanh.pop %v2086
    %v2088 = vmul.f32 %v2083, %v2087
    %2089 = vmatpush.bf16.msra.mxu0 %v373
    %2090 = vmatpush.bf16.msra.mxu0 %v369
    %2091 = vmatpush.bf16.msra.mxu0 %v365
    %2092 = vmatpush.bf16.msra.mxu0 %v361
    %2093 = vmatpush.bf16.msra.mxu0 %v357
    %2094 = vmatpush.bf16.msra.mxu0 %v353
    %2095 = vmatpush.bf16.msra.mxu0 %v349
    %2096 = vmatpush.bf16.msra.mxu0 %v345
    %2097 = vmatmul.bf16.gmra.mxu0 %v1963
    %v2098 = vpop.f32.mrf.mxu0
    %v2099 = vadd.f32 0.0, %v2098
    %v2100 = vpop.f32.mrf.mxu0
    %2101 = vdwg.mxu0
    %2102 = vmatpush.bf16.msra.mxu0 %v374
    %2103 = vmatpush.bf16.msra.mxu0 %v370
    %2104 = vmatpush.bf16.msra.mxu0 %v366
    %2105 = vmatpush.bf16.msra.mxu0 %v362
    %2106 = vmatpush.bf16.msra.mxu0 %v358
    %2107 = vmatpush.bf16.msra.mxu0 %v354
    %2108 = vmatpush.bf16.msra.mxu0 %v350
    %2109 = vmatpush.bf16.msra.mxu0 %v346
    %2110 = vmatmul.bf16.gmra.mxu0 %v1963
    %v2111 = vpop.f32.mrf.mxu0
    %v2112 = vadd.f32 0.0, %v2111
    %v2113 = vpop.f32.mrf.mxu0
    %2114 = vdwg.mxu0
    %2115 = vmatpush.bf16.msra.mxu0 %v375
    %2116 = vmatpush.bf16.msra.mxu0 %v371
    %2117 = vmatpush.bf16.msra.mxu0 %v367
    %2118 = vmatpush.bf16.msra.mxu0 %v363
    %2119 = vmatpush.bf16.msra.mxu0 %v359
    %2120 = vmatpush.bf16.msra.mxu0 %v355
    %2121 = vmatpush.bf16.msra.mxu0 %v351
    %2122 = vmatpush.bf16.msra.mxu0 %v347
    %2123 = vmatmul.bf16.gmra.mxu0 %v1963
    %v2124 = vpop.f32.mrf.mxu0
    %v2125 = vadd.f32 0.0, %v2124
    %v2126 = vpop.f32.mrf.mxu0
    %2127 = vdwg.mxu0
    %2128 = vmatpush.bf16.msra.mxu0 %v376
    %2129 = vmatpush.bf16.msra.mxu0 %v372
    %2130 = vmatpush.bf16.msra.mxu0 %v368
    %2131 = vmatpush.bf16.msra.mxu0 %v364
    %2132 = vmatpush.bf16.msra.mxu0 %v360
    %2133 = vmatpush.bf16.msra.mxu0 %v356
    %2134 = vmatpush.bf16.msra.mxu0 %v352
    %2135 = vmatpush.bf16.msra.mxu0 %v348
    %2136 = vmatmul.bf16.gmra.mxu0 %v1963
    %v2137 = vpop.f32.mrf.mxu0
    %v2138 = vadd.f32 0.0, %v2137
    %v2139 = vpop.f32.mrf.mxu0
    %2140 = vdwg.mxu0
    %v2145 = vrot.slane %v2099, 4
    %v2146 = vrot.slane %v2112, 4
    %v2147 = vrot.slane %v2125, 4
    %v2148 = vrot.slane %v2138, 4
    %v2153 = vadd.f32 %v145, %v2145
    %v2154 = vadd.f32 %v168, %v2146
    %v2155 = vadd.f32 %v191, %v2147
    %v2156 = vadd.f32 %v214, %v2148
    %v2157 = vmul.f32 %v2153, 0.5
    %v2158 = vtanh.pop %v2157
    %v2159 = vmul.f32 %v2158, 0.5
    %v2160 = vadd.f32 %v2159, 0.5
    %v2161 = vmul.f32 %v2154, 0.5
    %v2162 = vtanh.pop %v2161
    %v2163 = vmul.f32 %v2162, 0.5
    %v2164 = vadd.f32 %v2163, 0.5
    %v2165 = vtanh.pop %v2155
    %v2166 = vmul.f32 %v2156, 0.5
    %v2167 = vtanh.pop %v2166
    %v2168 = vmul.f32 %v2167, 0.5
    %v2169 = vadd.f32 %v2168, 0.5
    %v2171 = vrot.slane %v1953, 6
    %v2173 = vmul.f32 %v2164, %v2171
    %v2174 = vmul.f32 %v2160, %v2165
    %v2175 = vadd.f32 %v2173, %v2174
    %v2176 = vtanh.pop %v2175
    %v2177 = vmul.f32 %v2169, %v2176
    %v2179 = vrot.slane %v2088, 4
    %v2181 = vpack.c.bf16 %v2177, %v2177
    %v2182 = vpack.c.bf16 %v2179, %v2179
    %v2185 = vrot.slane %v2181, 2
    %v2186 = vrot.slane %v2182, 2
    %2189 = vmatpush.bf16.msra.mxu0 %v778
    %2190 = vmatpush.bf16.msra.mxu0 %v774
    %2191 = vmatpush.bf16.msra.mxu0 %v770
    %2192 = vmatpush.bf16.msra.mxu0 %v766
    %2193 = vmatpush.bf16.msra.mxu0 %v762
    %2194 = vmatpush.bf16.msra.mxu0 %v758
    %2195 = vmatpush.bf16.msra.mxu0 %v754
    %2196 = vmatpush.bf16.msra.mxu0 %v750
    %2197 = vmatmul.bf16.gmra.mxu0 %v2185
    %v2198 = vpop.f32.mrf.mxu0
    %v2199 = vadd.f32 %v550, %v2198
    %v2200 = vpop.f32.mrf.mxu0
    %2201 = vdwg.mxu0
    %2202 = vmatpush.bf16.msra.mxu0 %v810
    %2203 = vmatpush.bf16.msra.mxu0 %v806
    %2204 = vmatpush.bf16.msra.mxu0 %v802
    %2205 = vmatpush.bf16.msra.mxu0 %v798
    %2206 = vmatpush.bf16.msra.mxu0 %v794
    %2207 = vmatpush.bf16.msra.mxu0 %v790
    %2208 = vmatpush.bf16.msra.mxu0 %v786
    %2209 = vmatpush.bf16.msra.mxu0 %v782
    %2210 = vmatmul.bf16.gmra.mxu0 %v2186
    %v2211 = vpop.f32.mrf.mxu0
    %v2212 = vadd.f32 %v2199, %v2211
    %v2213 = vpop.f32.mrf.mxu0
    %2214 = vdwg.mxu0
    %2215 = vmatpush.bf16.msra.mxu0 %v779
    %2216 = vmatpush.bf16.msra.mxu0 %v775
    %2217 = vmatpush.bf16.msra.mxu0 %v771
    %2218 = vmatpush.bf16.msra.mxu0 %v767
    %2219 = vmatpush.bf16.msra.mxu0 %v763
    %2220 = vmatpush.bf16.msra.mxu0 %v759
    %2221 = vmatpush.bf16.msra.mxu0 %v755
    %2222 = vmatpush.bf16.msra.mxu0 %v751
    %2223 = vmatmul.bf16.gmra.mxu0 %v2185
    %v2224 = vpop.f32.mrf.mxu0
    %v2225 = vadd.f32 %v551, %v2224
    %v2226 = vpop.f32.mrf.mxu0
    %2227 = vdwg.mxu0
    %2228 = vmatpush.bf16.msra.mxu0 %v811
    %2229 = vmatpush.bf16.msra.mxu0 %v807
    %2230 = vmatpush.bf16.msra.mxu0 %v803
    %2231 = vmatpush.bf16.msra.mxu0 %v799
    %2232 = vmatpush.bf16.msra.mxu0 %v795
    %2233 = vmatpush.bf16.msra.mxu0 %v791
    %2234 = vmatpush.bf16.msra.mxu0 %v787
    %2235 = vmatpush.bf16.msra.mxu0 %v783
    %2236 = vmatmul.bf16.gmra.mxu0 %v2186
    %v2237 = vpop.f32.mrf.mxu0
    %v2238 = vadd.f32 %v2225, %v2237
    %v2239 = vpop.f32.mrf.mxu0
    %2240 = vdwg.mxu0
    %2241 = vmatpush.bf16.msra.mxu0 %v780
    %2242 = vmatpush.bf16.msra.mxu0 %v776
    %2243 = vmatpush.bf16.msra.mxu0 %v772
    %2244 = vmatpush.bf16.msra.mxu0 %v768
    %2245 = vmatpush.bf16.msra.mxu0 %v764
    %2246 = vmatpush.bf16.msra.mxu0 %v760
    %2247 = vmatpush.bf16.msra.mxu0 %v756
    %2248 = vmatpush.bf16.msra.mxu0 %v752
    %2249 = vmatmul.bf16.gmra.mxu0 %v2185
    %v2250 = vpop.f32.mrf.mxu0
    %v2251 = vadd.f32 %v552, %v2250
    %v2252 = vpop.f32.mrf.mxu0
    %2253 = vdwg.mxu0
    %2254 = vmatpush.bf16.msra.mxu0 %v812
    %2255 = vmatpush.bf16.msra.mxu0 %v808
    %2256 = vmatpush.bf16.msra.mxu0 %v804
    %2257 = vmatpush.bf16.msra.mxu0 %v800
    %2258 = vmatpush.bf16.msra.mxu0 %v796
    %2259 = vmatpush.bf16.msra.mxu0 %v792
    %2260 = vmatpush.bf16.msra.mxu0 %v788
    %2261 = vmatpush.bf16.msra.mxu0 %v784
    %2262 = vmatmul.bf16.gmra.mxu0 %v2186
    %v2263 = vpop.f32.mrf.mxu0
    %v2264 = vadd.f32 %v2251, %v2263
    %v2265 = vpop.f32.mrf.mxu0
    %2266 = vdwg.mxu0
    %2267 = vmatpush.bf16.msra.mxu0 %v781
    %2268 = vmatpush.bf16.msra.mxu0 %v777
    %2269 = vmatpush.bf16.msra.mxu0 %v773
    %2270 = vmatpush.bf16.msra.mxu0 %v769
    %2271 = vmatpush.bf16.msra.mxu0 %v765
    %2272 = vmatpush.bf16.msra.mxu0 %v761
    %2273 = vmatpush.bf16.msra.mxu0 %v757
    %2274 = vmatpush.bf16.msra.mxu0 %v753
    %2275 = vmatmul.bf16.gmra.mxu0 %v2185
    %v2276 = vpop.f32.mrf.mxu0
    %v2277 = vadd.f32 %v553, %v2276
    %v2278 = vpop.f32.mrf.mxu0
    %2279 = vdwg.mxu0
    %2280 = vmatpush.bf16.msra.mxu0 %v813
    %2281 = vmatpush.bf16.msra.mxu0 %v809
    %2282 = vmatpush.bf16.msra.mxu0 %v805
    %2283 = vmatpush.bf16.msra.mxu0 %v801
    %2284 = vmatpush.bf16.msra.mxu0 %v797
    %2285 = vmatpush.bf16.msra.mxu0 %v793
    %2286 = vmatpush.bf16.msra.mxu0 %v789
    %2287 = vmatpush.bf16.msra.mxu0 %v785
    %2288 = vmatmul.bf16.gmra.mxu0 %v2186
    %v2289 = vpop.f32.mrf.mxu0
    %v2290 = vadd.f32 %v2277, %v2289
    %v2291 = vpop.f32.mrf.mxu0
    %2292 = vdwg.mxu0
    %v2293 = vmul.f32 %v2212, 0.5
    %v2294 = vtanh.pop %v2293
    %v2295 = vmul.f32 %v2294, 0.5
    %v2296 = vadd.f32 %v2295, 0.5
    %v2297 = vmul.f32 %v2238, 0.5
    %v2298 = vtanh.pop %v2297
    %v2299 = vmul.f32 %v2298, 0.5
    %v2300 = vadd.f32 %v2299, 0.5
    %v2301 = vtanh.pop %v2264
    %v2302 = vmul.f32 %v2290, 0.5
    %v2303 = vtanh.pop %v2302
    %v2304 = vmul.f32 %v2303, 0.5
    %v2305 = vadd.f32 %v2304, 0.5
    %v2306 = vmul.f32 %v2300, %v2086
    %v2307 = vmul.f32 %v2296, %v2301
    %v2308 = vadd.f32 %v2306, %v2307
    %v2309 = vtanh.pop %v2308
    %v2310 = vmul.f32 %v2305, %v2309
    %2311 = vmatpush.bf16.msra.mxu0 %v373
    %2312 = vmatpush.bf16.msra.mxu0 %v369
    %2313 = vmatpush.bf16.msra.mxu0 %v365
    %2314 = vmatpush.bf16.msra.mxu0 %v361
    %2315 = vmatpush.bf16.msra.mxu0 %v357
    %2316 = vmatpush.bf16.msra.mxu0 %v353
    %2317 = vmatpush.bf16.msra.mxu0 %v349
    %2318 = vmatpush.bf16.msra.mxu0 %v345
    %2319 = vmatmul.bf16.gmra.mxu0 %v2185
    %v2320 = vpop.f32.mrf.mxu0
    %v2321 = vadd.f32 0.0, %v2320
    %v2322 = vpop.f32.mrf.mxu0
    %2323 = vdwg.mxu0
    %2324 = vmatpush.bf16.msra.mxu0 %v374
    %2325 = vmatpush.bf16.msra.mxu0 %v370
    %2326 = vmatpush.bf16.msra.mxu0 %v366
    %2327 = vmatpush.bf16.msra.mxu0 %v362
    %2328 = vmatpush.bf16.msra.mxu0 %v358
    %2329 = vmatpush.bf16.msra.mxu0 %v354
    %2330 = vmatpush.bf16.msra.mxu0 %v350
    %2331 = vmatpush.bf16.msra.mxu0 %v346
    %2332 = vmatmul.bf16.gmra.mxu0 %v2185
    %v2333 = vpop.f32.mrf.mxu0
    %v2334 = vadd.f32 0.0, %v2333
    %v2335 = vpop.f32.mrf.mxu0
    %2336 = vdwg.mxu0
    %2337 = vmatpush.bf16.msra.mxu0 %v375
    %2338 = vmatpush.bf16.msra.mxu0 %v371
    %2339 = vmatpush.bf16.msra.mxu0 %v367
    %2340 = vmatpush.bf16.msra.mxu0 %v363
    %2341 = vmatpush.bf16.msra.mxu0 %v359
    %2342 = vmatpush.bf16.msra.mxu0 %v355
    %2343 = vmatpush.bf16.msra.mxu0 %v351
    %2344 = vmatpush.bf16.msra.mxu0 %v347
    %2345 = vmatmul.bf16.gmra.mxu0 %v2185
    %v2346 = vpop.f32.mrf.mxu0
    %v2347 = vadd.f32 0.0, %v2346
    %v2348 = vpop.f32.mrf.mxu0
    %2349 = vdwg.mxu0
    %2350 = vmatpush.bf16.msra.mxu0 %v376
    %2351 = vmatpush.bf16.msra.mxu0 %v372
    %2352 = vmatpush.bf16.msra.mxu0 %v368
    %2353 = vmatpush.bf16.msra.mxu0 %v364
    %2354 = vmatpush.bf16.msra.mxu0 %v360
    %2355 = vmatpush.bf16.msra.mxu0 %v356
    %2356 = vmatpush.bf16.msra.mxu0 %v352
    %2357 = vmatpush.bf16.msra.mxu0 %v348
    %2358 = vmatmul.bf16.gmra.mxu0 %v2185
    %v2359 = vpop.f32.mrf.mxu0
    %v2360 = vadd.f32 0.0, %v2359
    %v2361 = vpop.f32.mrf.mxu0
    %2362 = vdwg.mxu0
    %v2367 = vrot.slane %v2321, 2
    %v2368 = vrot.slane %v2334, 2
    %v2369 = vrot.slane %v2347, 2
    %v2370 = vrot.slane %v2360, 2
    %v2375 = vadd.f32 %v145, %v2367
    %v2376 = vadd.f32 %v168, %v2368
    %v2377 = vadd.f32 %v191, %v2369
    %v2378 = vadd.f32 %v214, %v2370
    %v2379 = vmul.f32 %v2375, 0.5
    %v2380 = vtanh.pop %v2379
    %v2381 = vmul.f32 %v2380, 0.5
    %v2382 = vadd.f32 %v2381, 0.5
    %v2383 = vmul.f32 %v2376, 0.5
    %v2384 = vtanh.pop %v2383
    %v2385 = vmul.f32 %v2384, 0.5
    %v2386 = vadd.f32 %v2385, 0.5
    %v2387 = vtanh.pop %v2377
    %v2388 = vmul.f32 %v2378, 0.5
    %v2389 = vtanh.pop %v2388
    %v2390 = vmul.f32 %v2389, 0.5
    %v2391 = vadd.f32 %v2390, 0.5
    %v2393 = vrot.slane %v2175, 6
    %v2395 = vmul.f32 %v2386, %v2393
    %v2396 = vmul.f32 %v2382, %v2387
    %v2397 = vadd.f32 %v2395, %v2396
    %v2398 = vtanh.pop %v2397
    %v2399 = vmul.f32 %v2391, %v2398
    %v2401 = vrot.slane %v2310, 2
    %v2403 = vpack.c.bf16 %v2399, %v2399
    %v2404 = vpack.c.bf16 %v2401, %v2401
    %v2407 = vrot.slane %v2403, 3
    %v2408 = vrot.slane %v2404, 3
    %2411 = vmatpush.bf16.msra.mxu0 %v778
    %2412 = vmatpush.bf16.msra.mxu0 %v774
    %2413 = vmatpush.bf16.msra.mxu0 %v770
    %2414 = vmatpush.bf16.msra.mxu0 %v766
    %2415 = vmatpush.bf16.msra.mxu0 %v762
    %2416 = vmatpush.bf16.msra.mxu0 %v758
    %2417 = vmatpush.bf16.msra.mxu0 %v754
    %2418 = vmatpush.bf16.msra.mxu0 %v750
    %2419 = vmatmul.bf16.gmra.mxu0 %v2407
    %v2420 = vpop.f32.mrf.mxu0
    %v2421 = vadd.f32 %v550, %v2420
    %v2422 = vpop.f32.mrf.mxu0
    %2423 = vdwg.mxu0
    %2424 = vmatpush.bf16.msra.mxu0 %v810
    %2425 = vmatpush.bf16.msra.mxu0 %v806
    %2426 = vmatpush.bf16.msra.mxu0 %v802
    %2427 = vmatpush.bf16.msra.mxu0 %v798
    %2428 = vmatpush.bf16.msra.mxu0 %v794
    %2429 = vmatpush.bf16.msra.mxu0 %v790
    %2430 = vmatpush.bf16.msra.mxu0 %v786
    %2431 = vmatpush.bf16.msra.mxu0 %v782
    %2432 = vmatmul.bf16.gmra.mxu0 %v2408
    %v2433 = vpop.f32.mrf.mxu0
    %v2434 = vadd.f32 %v2421, %v2433
    %v2435 = vpop.f32.mrf.mxu0
    %2436 = vdwg.mxu0
    %2437 = vmatpush.bf16.msra.mxu0 %v779
    %2438 = vmatpush.bf16.msra.mxu0 %v775
    %2439 = vmatpush.bf16.msra.mxu0 %v771
    %2440 = vmatpush.bf16.msra.mxu0 %v767
    %2441 = vmatpush.bf16.msra.mxu0 %v763
    %2442 = vmatpush.bf16.msra.mxu0 %v759
    %2443 = vmatpush.bf16.msra.mxu0 %v755
    %2444 = vmatpush.bf16.msra.mxu0 %v751
    %2445 = vmatmul.bf16.gmra.mxu0 %v2407
    %v2446 = vpop.f32.mrf.mxu0
    %v2447 = vadd.f32 %v551, %v2446
    %v2448 = vpop.f32.mrf.mxu0
    %2449 = vdwg.mxu0
    %2450 = vmatpush.bf16.msra.mxu0 %v811
    %2451 = vmatpush.bf16.msra.mxu0 %v807
    %2452 = vmatpush.bf16.msra.mxu0 %v803
    %2453 = vmatpush.bf16.msra.mxu0 %v799
    %2454 = vmatpush.bf16.msra.mxu0 %v795
    %2455 = vmatpush.bf16.msra.mxu0 %v791
    %2456 = vmatpush.bf16.msra.mxu0 %v787
    %2457 = vmatpush.bf16.msra.mxu0 %v783
    %2458 = vmatmul.bf16.gmra.mxu0 %v2408
    %v2459 = vpop.f32.mrf.mxu0
    %v2460 = vadd.f32 %v2447, %v2459
    %v2461 = vpop.f32.mrf.mxu0
    %2462 = vdwg.mxu0
    %2463 = vmatpush.bf16.msra.mxu0 %v780
    %2464 = vmatpush.bf16.msra.mxu0 %v776
    %2465 = vmatpush.bf16.msra.mxu0 %v772
    %2466 = vmatpush.bf16.msra.mxu0 %v768
    %2467 = vmatpush.bf16.msra.mxu0 %v764
    %2468 = vmatpush.bf16.msra.mxu0 %v760
    %2469 = vmatpush.bf16.msra.mxu0 %v756
    %2470 = vmatpush.bf16.msra.mxu0 %v752
    %2471 = vmatmul.bf16.gmra.mxu0 %v2407
    %v2472 = vpop.f32.mrf.mxu0
    %v2473 = vadd.f32 %v552, %v2472
    %v2474 = vpop.f32.mrf.mxu0
    %2475 = vdwg.mxu0
    %2476 = vmatpush.bf16.msra.mxu0 %v812
    %2477 = vmatpush.bf16.msra.mxu0 %v808
    %2478 = vmatpush.bf16.msra.mxu0 %v804
    %2479 = vmatpush.bf16.msra.mxu0 %v800
    %2480 = vmatpush.bf16.msra.mxu0 %v796
    %2481 = vmatpush.bf16.msra.mxu0 %v792
    %2482 = vmatpush.bf16.msra.mxu0 %v788
    %2483 = vmatpush.bf16.msra.mxu0 %v784
    %2484 = vmatmul.bf16.gmra.mxu0 %v2408
    %v2485 = vpop.f32.mrf.mxu0
    %v2486 = vadd.f32 %v2473, %v2485
    %v2487 = vpop.f32.mrf.mxu0
    %2488 = vdwg.mxu0
    %2489 = vmatpush.bf16.msra.mxu0 %v781
    %2490 = vmatpush.bf16.msra.mxu0 %v777
    %2491 = vmatpush.bf16.msra.mxu0 %v773
    %2492 = vmatpush.bf16.msra.mxu0 %v769
    %2493 = vmatpush.bf16.msra.mxu0 %v765
    %2494 = vmatpush.bf16.msra.mxu0 %v761
    %2495 = vmatpush.bf16.msra.mxu0 %v757
    %2496 = vmatpush.bf16.msra.mxu0 %v753
    %2497 = vmatmul.bf16.gmra.mxu0 %v2407
    %v2498 = vpop.f32.mrf.mxu0
    %v2499 = vadd.f32 %v553, %v2498
    %v2500 = vpop.f32.mrf.mxu0
    %2501 = vdwg.mxu0
    %2502 = vmatpush.bf16.msra.mxu0 %v813
    %2503 = vmatpush.bf16.msra.mxu0 %v809
    %2504 = vmatpush.bf16.msra.mxu0 %v805
    %2505 = vmatpush.bf16.msra.mxu0 %v801
    %2506 = vmatpush.bf16.msra.mxu0 %v797
    %2507 = vmatpush.bf16.msra.mxu0 %v793
    %2508 = vmatpush.bf16.msra.mxu0 %v789
    %2509 = vmatpush.bf16.msra.mxu0 %v785
    %2510 = vmatmul.bf16.gmra.mxu0 %v2408
    %v2511 = vpop.f32.mrf.mxu0
    %v2512 = vadd.f32 %v2499, %v2511
    %v2513 = vpop.f32.mrf.mxu0
    %2514 = vdwg.mxu0
    %v2515 = vmul.f32 %v2434, 0.5
    %v2516 = vtanh.pop %v2515
    %v2517 = vmul.f32 %v2516, 0.5
    %v2518 = vadd.f32 %v2517, 0.5
    %v2519 = vmul.f32 %v2460, 0.5
    %v2520 = vtanh.pop %v2519
    %v2521 = vmul.f32 %v2520, 0.5
    %v2522 = vadd.f32 %v2521, 0.5
    %v2523 = vtanh.pop %v2486
    %v2524 = vmul.f32 %v2512, 0.5
    %v2525 = vtanh.pop %v2524
    %v2526 = vmul.f32 %v2525, 0.5
    %v2527 = vadd.f32 %v2526, 0.5
    %v2528 = vmul.f32 %v2522, %v2308
    %v2529 = vmul.f32 %v2518, %v2523
    %v2530 = vadd.f32 %v2528, %v2529
    %v2531 = vtanh.pop %v2530
    %v2532 = vmul.f32 %v2527, %v2531
    %v2533 = vld [vmem:[%s1] sm:$0x3]
    %v2534 = vpack.c.bf16 %v2532, %v2532
    %v2535 = vpack.c.bf16 %v2533, %v2533
    %v2536 = vld [vmem:[%s7] sm:$0xf]
    %v2537 = vld [vmem:[%s7 + $0x4] sm:$0xf]
    %v2538 = vld [vmem:[%s7 + $0x8] sm:$0xf]
    %v2539 = vld [vmem:[%s7 + $0xc] sm:$0xf]
    %v2540 = vld [vmem:[%s7 + $0x10] sm:$0xf]
    %v2541 = vld [vmem:[%s7 + $0x14] sm:$0xf]
    %v2542 = vld [vmem:[%s7 + $0x18] sm:$0xf]
    %v2543 = vld [vmem:[%s7 + $0x1c] sm:$0xf]
    %v2544 = vld [vmem:[%s7 + $0x20] sm:$0xf]
    %v2545 = vld [vmem:[%s7 + $0x24] sm:$0xf]
    %v2546 = vld [vmem:[%s7 + $0x28] sm:$0xf]
    %v2547 = vld [vmem:[%s7 + $0x2c] sm:$0xf]
    %v2548 = vld [vmem:[%s7 + $0x30] sm:$0xf]
    %v2549 = vld [vmem:[%s7 + $0x34] sm:$0xf]
    %v2550 = vld [vmem:[%s7 + $0x38] sm:$0xf]
    %v2551 = vld [vmem:[%s7 + $0x3c] sm:$0xf]
    %v2552 = vld [vmem:[%s7 + $0x40] sm:$0xf]
    %v2553 = vld [vmem:[%s7 + $0x44] sm:$0xf]
    %v2554 = vld [vmem:[%s7 + $0x48] sm:$0xf]
    %v2555 = vld [vmem:[%s7 + $0x4c] sm:$0xf]
    %v2556 = vld [vmem:[%s7 + $0x50] sm:$0xf]
    %v2557 = vld [vmem:[%s7 + $0x54] sm:$0xf]
    %v2558 = vld [vmem:[%s7 + $0x58] sm:$0xf]
    %v2559 = vld [vmem:[%s7 + $0x5c] sm:$0xf]
    %v2560 = vld [vmem:[%s7 + $0x60] sm:$0xf]
    %v2561 = vld [vmem:[%s7 + $0x64] sm:$0xf]
    %v2562 = vld [vmem:[%s7 + $0x68] sm:$0xf]
    %v2563 = vld [vmem:[%s7 + $0x6c] sm:$0xf]
    %v2564 = vld [vmem:[%s7 + $0x70] sm:$0xf]
    %v2565 = vld [vmem:[%s7 + $0x74] sm:$0xf]
    %v2566 = vld [vmem:[%s7 + $0x78] sm:$0xf]
    %v2567 = vld [vmem:[%s7 + $0x7c] sm:$0xf]
    %v2568 = vld [vmem:[%s8] sm:$0x1]
    %v2570 = vperm.slane %v2568, 0
    %v2604 = vunpack.c.l.b16 %v2536
    %v2605 = vunpack.c.l.b16 %v2537
    %v2606 = vunpack.c.l.b16 %v2538
    %v2607 = vunpack.c.l.b16 %v2539
    %v2608 = vunpack.c.l.b16 %v2540
    %v2609 = vunpack.c.l.b16 %v2541
    %v2610 = vunpack.c.l.b16 %v2542
    %v2611 = vunpack.c.l.b16 %v2543
    %v2612 = vunpack.c.l.b16 %v2544
    %v2613 = vunpack.c.l.b16 %v2545
    %v2614 = vunpack.c.l.b16 %v2546
    %v2615 = vunpack.c.l.b16 %v2547
    %v2616 = vunpack.c.l.b16 %v2548
    %v2617 = vunpack.c.l.b16 %v2549
    %v2618 = vunpack.c.l.b16 %v2550
    %v2619 = vunpack.c.l.b16 %v2551
    %v2620 = vunpack.c.l.b16 %v2552
    %v2621 = vunpack.c.l.b16 %v2553
    %v2622 = vunpack.c.l.b16 %v2554
    %v2623 = vunpack.c.l.b16 %v2555
    %v2624 = vunpack.c.l.b16 %v2556
    %v2625 = vunpack.c.l.b16 %v2557
    %v2626 = vunpack.c.l.b16 %v2558
    %v2627 = vunpack.c.l.b16 %v2559
    %v2628 = vunpack.c.l.b16 %v2560
    %v2629 = vunpack.c.l.b16 %v2561
    %v2630 = vunpack.c.l.b16 %v2562
    %v2631 = vunpack.c.l.b16 %v2563
    %v2632 = vunpack.c.l.b16 %v2564
    %v2633 = vunpack.c.l.b16 %v2565
    %v2634 = vunpack.c.l.b16 %v2566
    %v2635 = vunpack.c.l.b16 %v2567
    %v2636 = vpack.c.b16 %v2605, %v2604
    %v2637 = vpack.c.b16 %v2607, %v2606
    %v2638 = vpack.c.b16 %v2609, %v2608
    %v2639 = vpack.c.b16 %v2611, %v2610
    %v2640 = vpack.c.b16 %v2613, %v2612
    %v2641 = vpack.c.b16 %v2615, %v2614
    %v2642 = vpack.c.b16 %v2617, %v2616
    %v2643 = vpack.c.b16 %v2619, %v2618
    %v2644 = vpack.c.b16 %v2621, %v2620
    %v2645 = vpack.c.b16 %v2623, %v2622
    %v2646 = vpack.c.b16 %v2625, %v2624
    %v2647 = vpack.c.b16 %v2627, %v2626
    %v2648 = vpack.c.b16 %v2629, %v2628
    %v2649 = vpack.c.b16 %v2631, %v2630
    %v2650 = vpack.c.b16 %v2633, %v2632
    %v2651 = vpack.c.b16 %v2635, %v2634
    %2668 = vmatpush.bf16.msra.mxu0 %v2643
    %2669 = vmatpush.bf16.msra.mxu0 %v2642
    %2670 = vmatpush.bf16.msra.mxu0 %v2641
    %2671 = vmatpush.bf16.msra.mxu0 %v2640
    %2672 = vmatpush.bf16.msra.mxu0 %v2639
    %2673 = vmatpush.bf16.msra.mxu0 %v2638
    %2674 = vmatpush.bf16.msra.mxu0 %v2637
    %2675 = vmatpush.bf16.msra.mxu0 %v2636
    %2676 = vmatmul.bf16.gmra.mxu0 %v2534
    %v2677 = vpop.f32.mrf.mxu0
    %v2678 = vadd.f32 %v2570, %v2677
    %v2679 = vpop.f32.mrf.mxu0
    %2680 = vdwg.mxu0
    %2681 = vmatpush.bf16.msra.mxu0 %v2651
    %2682 = vmatpush.bf16.msra.mxu0 %v2650
    %2683 = vmatpush.bf16.msra.mxu0 %v2649
    %2684 = vmatpush.bf16.msra.mxu0 %v2648
    %2685 = vmatpush.bf16.msra.mxu0 %v2647
    %2686 = vmatpush.bf16.msra.mxu0 %v2646
    %2687 = vmatpush.bf16.msra.mxu0 %v2645
    %2688 = vmatpush.bf16.msra.mxu0 %v2644
    %2689 = vmatmul.bf16.gmra.mxu0 %v2535
    %v2690 = vpop.f32.mrf.mxu0
    %v2691 = vadd.f32 %v2678, %v2690
    %v2692 = vpop.f32.mrf.mxu0
    %2693 = vdwg.mxu0
    %v2694 = vmax.f32 %v2691, 0.0
    %v2695 = vld [vmem:[%s9] sm:$0xff]
    %v2696 = vld [vmem:[%s9 + $0x8] sm:$0xff]
    %v2697 = vld [vmem:[%s9 + $0x10] sm:$0xff]
    %v2698 = vld [vmem:[%s9 + $0x18] sm:$0xff]
    %v2699 = vld [vmem:[%s9 + $0x20] sm:$0xff]
    %v2700 = vld [vmem:[%s9 + $0x28] sm:$0xff]
    %v2701 = vld [vmem:[%s9 + $0x30] sm:$0xff]
    %v2702 = vld [vmem:[%s9 + $0x38] sm:$0xff]
    %v2703 = vld [vmem:[%s9 + $0x40] sm:$0xff]
    %v2704 = vld [vmem:[%s9 + $0x48] sm:$0xff]
    %v2705 = vld [vmem:[%s9 + $0x50] sm:$0xff]
    %v2706 = vld [vmem:[%s9 + $0x58] sm:$0xff]
    %v2707 = vld [vmem:[%s9 + $0x60] sm:$0xff]
    %v2708 = vld [vmem:[%s9 + $0x68] sm:$0xff]
    %v2709 = vld [vmem:[%s9 + $0x70] sm:$0xff]
    %v2710 = vld [vmem:[%s9 + $0x78] sm:$0xff]
    %v2711 = vld [vmem:[%s10] sm:$0x1]
    %v2713 = vperm.slane %v2711, 0
    %2715 = vmatpush.msra.mxu0 %v2710
    %2716 = vmatpush.msra.mxu0 %v2709
    %2717 = vmatpush.msra.mxu0 %v2708
    %2718 = vmatpush.msra.mxu0 %v2707
    %2719 = vmatpush.msra.mxu0 %v2706
    %2720 = vmatpush.msra.mxu0 %v2705
    %2721 = vmatpush.msra.mxu0 %v2704
    %2722 = vmatpush.msra.mxu0 %v2703
    %2723 = vmatpush.msra.mxu0 %v2702
    %2724 = vmatpush.msra.mxu0 %v2701
    %2725 = vmatpush.msra.mxu0 %v2700
    %2726 = vmatpush.msra.mxu0 %v2699
    %2727 = vmatpush.msra.mxu0 %v2698
    %2728 = vmatpush.msra.mxu0 %v2697
    %2729 = vmatpush.msra.mxu0 %v2696
    %2730 = vmatpush.msra.mxu0 %v2695
    %2731 = vmatmul.f32.gmra.mxu0 %v2694
    %v2732 = vpop.f32.mrf.mxu0
    %v2733 = vadd.f32 %v2713, %v2732
    %2734 = vdwg.mxu0
    %v2735 = vmax.f32 %v2733, 0.0
    %v2736 = vld [vmem:[%s11] sm:$0xff]
    %v2737 = vld [vmem:[%s11 + $0x8] sm:$0xff]
    %v2738 = vld [vmem:[%s11 + $0x10] sm:$0xff]
    %v2739 = vld [vmem:[%s11 + $0x18] sm:$0xff]
    %v2740 = vld [vmem:[%s12] sm:$0x1]
    %v2742 = vperm.slane %v2740, 0
    %vm2744 = vcmask 261120
    %v2746 = vsel %vm2744, %v2735, 0
    %2748 = vmatpush.msra.mxu0 0.0
    %2749 = vmatpush.msra.mxu0 0.0
    %2750 = vmatpush.msra.mxu0 0.0
    %2751 = vmatpush.msra.mxu0 0.0
    %2752 = vmatpush.msra.mxu0 0.0
    %2753 = vmatpush.msra.mxu0 0.0
    %2754 = vmatpush.msra.mxu0 0.0
    %2755 = vmatpush.msra.mxu0 0.0
    %2756 = vmatpush.msra.mxu0 0.0
    %2757 = vmatpush.msra.mxu0 0.0
    %2758 = vmatpush.msra.mxu0 0.0
    %2759 = vmatpush.msra.mxu0 0.0
    %2760 = vmatpush.msra.mxu0 %v2739
    %2761 = vmatpush.msra.mxu0 %v2738
    %2762 = vmatpush.msra.mxu0 %v2737
    %2763 = vmatpush.msra.mxu0 %v2736
    %2764 = vmatmul.f32.gmra.mxu0 %v2746
    %v2765 = vpop.f32.mrf.mxu0
    %v2766 = vadd.f32 %v2742, %v2765
    %2767 = vdwg.mxu0
    %v2768 = vmax.f32 %v2766, 0.0
    %v2769 = vld [vmem:[%s13] sm:$0xff]
    %v2770 = vld [vmem:[#allocation2] sm:$0x1]
    %v2772 = vperm.slane %v2770, 0
    %vm2774 = vcmask 64512
    %v2776 = vsel %vm2774, %v2768, 0
    %2778 = vmatpush.msra.mxu0 0.0
    %2779 = vmatpush.msra.mxu0 0.0
    %2780 = vmatpush.msra.mxu0 0.0
    %2781 = vmatpush.msra.mxu0 0.0
    %2782 = vmatpush.msra.mxu0 0.0
    %2783 = vmatpush.msra.mxu0 0.0
    %2784 = vmatpush.msra.mxu0 0.0
    %2785 = vmatpush.msra.mxu0 0.0
    %2786 = vmatpush.msra.mxu0 0.0
    %2787 = vmatpush.msra.mxu0 0.0
    %2788 = vmatpush.msra.mxu0 0.0
    %2789 = vmatpush.msra.mxu0 0.0
    %2790 = vmatpush.msra.mxu0 0.0
    %2791 = vmatpush.msra.mxu0 0.0
    %2792 = vmatpush.msra.mxu0 0.0
    %2793 = vmatpush.msra.mxu0 %v2769
    %2794 = vmatmul.f32.gmra.mxu0 %v2776
    %v2795 = vpop.f32.mrf.mxu0
    %v2796 = vadd.f32 %v2772, %v2795
    %2797 = vdwg.mxu0
    %vm2798 = vcmask 1024
    %2799 = vst.msk [vmem:[%s15] sm:$0x3] %vm2798, %v2796
    // Predicated region
    $region70: #{model_forward.1} parent=1 // pred_check
      _
    $region71: #{model_forward.1} parent=1 // pred_check_branch
      %2801 = sbr.rel (0) target = $region73
    $region72: #{model_forward.1} parent=1 // pred_region
      _
    $region73: #{model_forward.1} parent=1 // pred_fallthru
      _
    // Predicated region
    $region74: #{model_forward.1} parent=1 // pred_check
      _
    $region75: #{model_forward.1} parent=1 // pred_check_branch
      %2803 = sbr.rel (0) target = $region77
    $region76: #{model_forward.1} parent=1 // pred_region
      _
    $region77: #{model_forward.1} parent=1 // pred_fallthru
      _
    %2804 = vsyncpa [#allocation4], 1
    %2805 = vsyncpa [#allocation6], 1

</llo_original>
